<compile_context>
chip_gen: v7x
topology: tpu7x:2x2x1
jax: 0.10.0
libtpu: 0.0.40
codegen_flags: <defaults>
</compile_context>

<pallas_src>
import jax
import jax.numpy as jnp
from jax import lax
from jax.experimental import pallas as pl
from jax.experimental.pallas import tpu as pltpu

HIDDEN = 256            # hidden_sizes = [256, 256]
STATE_SIZE = 64         # stateSize == messageSize
INPUT_SIZE = 20         # 6 node features + 10 global + 4 local state entries
EDGE_IN_SIZE = 1 + INPUT_SIZE   # edge feature column merged with gathered src node input
LN_EPS = 1e-5           # torch.nn.LayerNorm default eps
NUM_MP_ITERS = 6        # numMessagePassingIterations
OUT_PAD = 128           # output head padded to one full lane group (sliced in-kernel)


def _round_up(x, m):
    return ((x + m - 1) // m) * m


def _pick_batch_tile(batch, num_nodes, num_edges, target_rows=2048):
    """Per-grid-step batch tile Bb (multiple of 8, so in-kernel row offsets stay aligned)."""
    b_pad = _round_up(max(batch, 1), 8)
    per = max(num_nodes, num_edges, 1)
    bb = (target_rows // per) // 8 * 8
    bb = max(8, min(b_pad, bb))
    # v7x megacore: keep >= 2 parallel grid steps when the batch allows it.
    if b_pad // bb < 2 and b_pad >= 16:
        bb = max(8, (b_pad // 2) // 8 * 8)
    b_pad = _round_up(b_pad, bb)
    return bb, b_pad


# ---------------------------------------------------------------------------
# In-kernel MLP helpers (Network: Linear -> LN -> ReLU -> Linear -> LN -> ReLU -> Linear [-> Tanh])
# ---------------------------------------------------------------------------
def _ln(h, gamma, beta):
    mu = jnp.mean(h, axis=-1, keepdims=True)
    ms = jnp.mean(h * h, axis=-1, keepdims=True)
    var = jnp.maximum(ms - mu * mu, 0.0)
    return (h - mu) * lax.rsqrt(var + LN_EPS) * gamma + beta


def _net_tail(h1, vec, w2_ref, w3_ref, final_tanh):
    """Given layer-1 pre-bias activations h1 (f32), finish the 3-layer network."""
    b1, g1, be1 = vec[0:1, :], vec[1:2, :], vec[2:3, :]
    b2, g2, be2 = vec[3:4, :], vec[4:5, :], vec[5:6, :]
    out_w = w3_ref.shape[1]
    b3 = vec[6:7, :out_w]
    h = jnp.maximum(_ln(h1 + b1, g1, be1), 0.0)
    h = jnp.dot(h.astype(jnp.bfloat16), w2_ref[...],
                preferred_element_type=jnp.float32) + b2
    h = jnp.maximum(_ln(h, g2, be2), 0.0)
    o = jnp.dot(h.astype(jnp.bfloat16), w3_ref[...],
                preferred_element_type=jnp.float32) + b3
    return jnp.tanh(o) if final_tanh else o


# ---------------------------------------------------------------------------
# Fused GNN kernel: input net -> 6x (gather -> message net -> segment-mean -> update net) -> output net
# ---------------------------------------------------------------------------
def _gnn_fused_kernel(
        # scalar prefetch (SMEM)
        src_ref, dst_ref,
        # batch-tiled activations (VMEM blocks)
        ni_ref, ein_ref, invdeg_ref,
        # weights (VMEM, resident across grid steps)
        w1_in_ref, vec_in_ref, w2_in_ref, w3_in_ref,
        w1m_s_ref, w1m_e_ref, vec_m_ref, w2m_ref, w3m_ref,
        w1u_a_ref, w1u_s_ref, vec_u_ref, w2u_ref, w3u_ref,
        w1o_ref, vec_o_ref, w2o_ref, w3o_ref,
        # output block
        out_ref,
        # VMEM scratch
        state_ref, ebuf_ref, mbuf_ref, agg_ref, mconst_ref):
    n_nodes, bb, _ = ni_ref.shape
    n_edges = ein_ref.shape[0]
    rows_n = n_nodes * bb
    rows_e = n_edges * bb

    # ---- input network: nodeData -> initial node state ----
    x_ni = ni_ref[...].reshape(rows_n, ni_ref.shape[2])          # bf16
    h1 = jnp.dot(x_ni, w1_in_ref[...], preferred_element_type=jnp.float32)
    state_ref[...] = _net_tail(h1, vec_in_ref[...], w2_in_ref, w3_in_ref, False)

    # ---- per-block constants, hoisted out of the 6 message-passing iterations ----
    x_ein = ein_ref[...].reshape(rows_e, ein_ref.shape[2])       # bf16, [edge_feat, src node input]
    mconst_ref[...] = jnp.dot(x_ein, w1m_e_ref[...], preferred_element_type=jnp.float32)
    inv_deg = invdeg_ref[...].reshape(rows_n, 1)                 # f32, 1/in_degree per row
    vec_m = vec_m_ref[...]
    vec_u = vec_u_ref[...]

    def mp_iteration(_, carry):
        # gather source-node states per edge: Bb contiguous rows per edge.
        def gather(e, c):
            s = pl.multiple_of(src_ref[e] * bb, 8)
            d = pl.multiple_of(e * bb, 8)
            ebuf_ref[pl.ds(d, bb), :] = state_ref[pl.ds(s, bb), :]
            return c
        lax.fori_loop(0, n_edges, gather, 0)

        # message network; layer 1 split as (gathered state) + (hoisted edge/input part).
        h1m = jnp.dot(ebuf_ref[...].astype(jnp.bfloat16), w1m_s_ref[...],
                      preferred_element_type=jnp.float32) + mconst_ref[...]
        mbuf_ref[...] = _net_tail(h1m, vec_m, w2m_ref, w3m_ref, True)

        # mean aggregation: exact f32 segment-sum over edges, then scale by 1/in-degree.
        agg_ref[...] = jnp.zeros((rows_n, STATE_SIZE), jnp.float32)

        def scatter(e, c):
            s = pl.multiple_of(e * bb, 8)
            d = pl.multiple_of(dst_ref[e] * bb, 8)
            cur = agg_ref[pl.ds(d, bb), :]
            agg_ref[pl.ds(d, bb), :] = cur + mbuf_ref[pl.ds(s, bb), :]
            return c
        lax.fori_loop(0, n_edges, scatter, 0)
        m_hat = agg_ref[...] * inv_deg

        # update network; layer 1 split as (m_hat part) + (current-state part).
        h1u = (jnp.dot(m_hat.astype(jnp.bfloat16), w1u_a_ref[...],
                       preferred_element_type=jnp.float32)
               + jnp.dot(state_ref[...].astype(jnp.bfloat16), w1u_s_ref[...],
                         preferred_element_type=jnp.float32))
        state_ref[...] = _net_tail(h1u, vec_u, w2u_ref, w3u_ref, False)
        return carry

    lax.fori_loop(0, NUM_MP_ITERS, mp_iteration, 0)

    # ---- output network ----
    h1o = jnp.dot(state_ref[...].astype(jnp.bfloat16), w1o_ref[...],
                  preferred_element_type=jnp.float32)
    o = _net_tail(h1o, vec_o_ref[...], w2o_ref, w3o_ref, True)   # (rows_n, OUT_PAD)
    out_ref[...] = o[:, 0:1].reshape(n_nodes, bb, 1)


# ---------------------------------------------------------------------------
# Parameter init (deterministic, PyTorch-Linear-style uniform bounds); w1 split per input part.
# ---------------------------------------------------------------------------
def init_network(key, in_dims, out_dim, out_pad=None):
    out_pad = out_dim if out_pad is None else out_pad
    fan_in = sum(in_dims)
    bnd1 = 1.0 / float(fan_in) ** 0.5
    bnd2 = 1.0 / float(HIDDEN) ** 0.5
    ks = jax.random.split(key, 6)
    kp = jax.random.split(ks[0], len(in_dims))
    w1 = tuple(
        jax.random.uniform(k, (d, HIDDEN), jnp.float32, -bnd1, bnd1).astype(jnp.bfloat16)
        for k, d in zip(kp, in_dims))
    b1 = jax.random.uniform(ks[1], (HIDDEN,), jnp.float32, -bnd1, bnd1)
    w2 = jax.random.uniform(ks[2], (HIDDEN, HIDDEN), jnp.float32, -bnd2, bnd2).astype(jnp.bfloat16)
    b2 = jax.random.uniform(ks[3], (HIDDEN,), jnp.float32, -bnd2, bnd2)
    w3 = jax.random.uniform(ks[4], (HIDDEN, out_dim), jnp.float32, -bnd2, bnd2)
    w3 = jnp.pad(w3, ((0, 0), (0, out_pad - out_dim))).astype(jnp.bfloat16)
    b3 = jax.random.uniform(ks[5], (out_dim,), jnp.float32, -bnd2, bnd2)
    b3 = jnp.pad(b3, (0, HIDDEN - out_dim))
    ones = jnp.ones((HIDDEN,), jnp.float32)
    zeros = jnp.zeros((HIDDEN,), jnp.float32)
    # packed per-network constants: rows = [b1, g1, be1, b2, g2, be2, b3(padded), 0]
    vec = jnp.stack([b1, ones, zeros, b2, ones, zeros, b3, zeros], axis=0)
    return dict(w1=w1, vec=vec, w2=w2, w3=w3)


# ---------------------------------------------------------------------------
# GNN forward (mirrors GraphNeuralNetwork.forward)
# ---------------------------------------------------------------------------
def gnn_forward(state, node_feat, edge_feat, src, dst, params, *, target_rows=2048):
    batch = state.shape[0]
    num_state_var = state.shape[1] // 2
    num_nodes = (num_state_var - 5) // 2
    num_edges = src.shape[0]

    # ---- update_states_in_graph: build nodeData (N, B, 20) ----
    global_info = jnp.concatenate(
        [state[:, 0:5], state[:, num_state_var:num_state_var + 5]], axis=-1)      # (B, 10)
    feat_part = jnp.broadcast_to(node_feat[:, None, :], (num_nodes, batch, 6))
    glob_part = jnp.broadcast_to(global_info[None, :, :], (num_nodes, batch, 10))
    s16 = state[:, 5:5 + num_nodes].T[:, :, None]
    s17 = state[:, 5 + num_nodes:5 + 2 * num_nodes].T[:, :, None]
    s18 = state[:, num_state_var + 5:num_state_var + 5 + num_nodes].T[:, :, None]
    s19 = state[:, num_state_var + 5 + num_nodes:num_state_var + 5 + 2 * num_nodes].T[:, :, None]
    node_input = jnp.concatenate([feat_part, glob_part, s16, s17, s18, s19], axis=-1)

    # ---- per-edge constant message input: [edge_feature, src node input] (E, B, 21) ----
    edge_col = jnp.broadcast_to(edge_feat[:, None, None], (num_edges, batch, 1))
    edge_in = jnp.concatenate([edge_col, node_input[src]], axis=-1)

    # ---- mean-aggregation weights: 1 / in-degree (0 for isolated nodes, DGL mean semantics) ----
    deg = jnp.zeros((num_nodes,), jnp.float32).at[dst].add(1.0)
    inv_deg = jnp.where(deg > 0.0, 1.0 / deg, 0.0)
    invdeg_rows = jnp.broadcast_to(inv_deg[:, None, None], (num_nodes, batch, 1))

    # ---- batch tiling (single small pad of the batch axis; padded columns never mix) ----
    bb, b_pad = _pick_batch_tile(batch, num_nodes, num_edges, target_rows)
    if b_pad != batch:
        padw = ((0, 0), (0, b_pad - batch), (0, 0))
        node_input = jnp.pad(node_input, padw)
        edge_in = jnp.pad(edge_in, padw)
        invdeg_rows = jnp.pad(invdeg_rows, padw)

    ni = node_input.astype(jnp.bfloat16)
    ein = edge_in.astype(jnp.bfloat16)
    invdeg_rows = invdeg_rows.astype(jnp.float32)

    pin, pm, pu, po = params["input"], params["message"], params["update"], params["output"]
    weights = (pin["w1"][0], pin["vec"], pin["w2"], pin["w3"],
               pm["w1"][0], pm["w1"][1], pm["vec"], pm["w2"], pm["w3"],
               pu["w1"][0], pu["w1"][1], pu["vec"], pu["w2"], pu["w3"],
               po["w1"][0], po["vec"], po["w2"], po["w3"])

    def batch_spec(lead, width):
        return pl.BlockSpec((lead, bb, width), lambda i, *_: (0, i, 0))

    def const_spec(shape):
        # grid-resident operand (fetched once; index_map constant across the batch grid).
        return pl.BlockSpec(shape, lambda i, *_: tuple(0 for _ in shape))

    in_specs = [batch_spec(num_nodes, INPUT_SIZE),
                batch_spec(num_edges, EDGE_IN_SIZE),
                batch_spec(num_nodes, 1)]
    in_specs += [const_spec(w.shape) for w in weights]

    rows_n = num_nodes * bb
    rows_e = num_edges * bb
    scratch = [pltpu.VMEM((rows_n, STATE_SIZE), jnp.float32),   # node state (persists across iters)
               pltpu.VMEM((rows_e, STATE_SIZE), jnp.float32),   # gathered src states
               pltpu.VMEM((rows_e, STATE_SIZE), jnp.float32),   # messages
               pltpu.VMEM((rows_n, STATE_SIZE), jnp.float32),   # segment-sum accumulator
               pltpu.VMEM((rows_e, HIDDEN), jnp.float32)]       # hoisted edge-input @ w1 term

    out = pl.pallas_call(
        _gnn_fused_kernel,
        out_shape=jax.ShapeDtypeStruct((num_nodes, b_pad, 1), jnp.float32),
        grid_spec=pltpu.PrefetchScalarGridSpec(
            num_scalar_prefetch=2,
            grid=(b_pad // bb,),
            in_specs=in_specs,
            out_specs=pl.BlockSpec((num_nodes, bb, 1), lambda i, *_: (0, i, 0)),
            scratch_shapes=scratch),
        compiler_params=pltpu.CompilerParams(
            dimension_semantics=("parallel",),
            vmem_limit_bytes=48 * 1024 * 1024),
    )(src.astype(jnp.int32), dst.astype(jnp.int32), ni, ein, invdeg_rows, *weights)

    # (N, B, 1) -> (B, N), matching output.transpose(0,1).squeeze(-1)
    return out[:, :batch, 0].T


# ---------------------------------------------------------------------------
if __name__ == "__main__":
    key = jax.random.PRNGKey(0)
    ks = jax.random.split(key, 7)

    batch = 8
    num_nodes = 4
    num_state_var = 2 * num_nodes + 5            # 13
    num_edges = 2 * num_nodes                    # bidirectional ring

    state = jax.random.normal(ks[0], (batch, 2 * num_state_var), jnp.float32)
    node_feat = jax.random.normal(ks[1], (num_nodes, 6), jnp.float32)   # graph.ndata['feature']
    edge_feat = jax.random.normal(ks[2], (num_edges,), jnp.float32)     # graph.edata['feature']

    src = jnp.array(list(range(num_nodes)) +
                    [(i + 1) % num_nodes for i in range(num_nodes)], jnp.int32)
    dst = jnp.array([(i + 1) % num_nodes for i in range(num_nodes)] +
                    list(range(num_nodes)), jnp.int32)

    params = {
        # split dims follow the torch.cat order inside the original forward
        "input": init_network(ks[3], [INPUT_SIZE], STATE_SIZE),                       # 20 -> 64
        "message": init_network(ks[4], [STATE_SIZE, EDGE_IN_SIZE], STATE_SIZE),       # 64+21 -> 64, Tanh
        "update": init_network(ks[5], [STATE_SIZE, STATE_SIZE], STATE_SIZE),          # 64+64 -> 64
        "output": init_network(ks[6], [STATE_SIZE], 1, out_pad=OUT_PAD),              # 64 -> 1, Tanh
    }

    fwd = jax.jit(gnn_forward)
    out = fwd(state, node_feat, edge_feat, src, dst, params)
    jax.block_until_ready(out)
    assert out.shape == (batch, num_nodes), out.shape
    assert bool(jnp.all(jnp.isfinite(out)))
    print("KERNEL_OK")
</pallas_src>

<mosaic_0001>
module attributes {stable_mosaic.version = 11 : i64} {
  func.func @_gnn_fused_kernel(%arg0: i32, %arg1: memref<8xi32, #tpu.memory_space<smem>>, %arg2: memref<8xi32, #tpu.memory_space<smem>>, %arg3: memref<4x8x20xbf16, #tpu.memory_space<vmem>>, %arg4: memref<8x8x21xbf16, #tpu.memory_space<vmem>>, %arg5: memref<4x8x1xf32, #tpu.memory_space<vmem>>, %arg6: memref<20x256xbf16, #tpu.memory_space<vmem>>, %arg7: memref<8x256xf32, #tpu.memory_space<vmem>>, %arg8: memref<256x256xbf16, #tpu.memory_space<vmem>>, %arg9: memref<256x64xbf16, #tpu.memory_space<vmem>>, %arg10: memref<64x256xbf16, #tpu.memory_space<vmem>>, %arg11: memref<21x256xbf16, #tpu.memory_space<vmem>>, %arg12: memref<8x256xf32, #tpu.memory_space<vmem>>, %arg13: memref<256x256xbf16, #tpu.memory_space<vmem>>, %arg14: memref<256x64xbf16, #tpu.memory_space<vmem>>, %arg15: memref<64x256xbf16, #tpu.memory_space<vmem>>, %arg16: memref<64x256xbf16, #tpu.memory_space<vmem>>, %arg17: memref<8x256xf32, #tpu.memory_space<vmem>>, %arg18: memref<256x256xbf16, #tpu.memory_space<vmem>>, %arg19: memref<256x64xbf16, #tpu.memory_space<vmem>>, %arg20: memref<64x256xbf16, #tpu.memory_space<vmem>>, %arg21: memref<8x256xf32, #tpu.memory_space<vmem>>, %arg22: memref<256x256xbf16, #tpu.memory_space<vmem>>, %arg23: memref<256x128xbf16, #tpu.memory_space<vmem>>, %arg24: memref<4x8x1xf32, #tpu.memory_space<vmem>>, %arg25: memref<32x64xf32, #tpu.memory_space<vmem>>, %arg26: memref<64x64xf32, #tpu.memory_space<vmem>>, %arg27: memref<64x64xf32, #tpu.memory_space<vmem>>, %arg28: memref<32x64xf32, #tpu.memory_space<vmem>>, %arg29: memref<64x256xf32, #tpu.memory_space<vmem>>) attributes {dimension_semantics = [#tpu.dimension_semantics<parallel>], iteration_bounds = array<i64: 1>, scalar_prefetch = 2 : i64, scratch_operands = 5 : i64, tpu.core_type = #tpu.core_type<tc>, window_params = [{transform_indices = @transform_0, window_bounds = array<i64: 4, 8, 20>}, {transform_indices = @transform_1, window_bounds = array<i64: 8, 8, 21>}, {transform_indices = @transform_2, window_bounds = array<i64: 4, 8, 1>}, {pipeline_mode = #tpu.pipeline_mode<synchronous>, transform_indices = @transform_3, window_bounds = array<i64: 20, 256>}, {pipeline_mode = #tpu.pipeline_mode<synchronous>, transform_indices = @transform_4, window_bounds = array<i64: 8, 256>}, {pipeline_mode = #tpu.pipeline_mode<synchronous>, transform_indices = @transform_5, window_bounds = array<i64: 256, 256>}, {pipeline_mode = #tpu.pipeline_mode<synchronous>, transform_indices = @transform_6, window_bounds = array<i64: 256, 64>}, {pipeline_mode = #tpu.pipeline_mode<synchronous>, transform_indices = @transform_7, window_bounds = array<i64: 64, 256>}, {pipeline_mode = #tpu.pipeline_mode<synchronous>, transform_indices = @transform_8, window_bounds = array<i64: 21, 256>}, {pipeline_mode = #tpu.pipeline_mode<synchronous>, transform_indices = @transform_9, window_bounds = array<i64: 8, 256>}, {pipeline_mode = #tpu.pipeline_mode<synchronous>, transform_indices = @transform_10, window_bounds = array<i64: 256, 256>}, {pipeline_mode = #tpu.pipeline_mode<synchronous>, transform_indices = @transform_11, window_bounds = array<i64: 256, 64>}, {pipeline_mode = #tpu.pipeline_mode<synchronous>, transform_indices = @transform_12, window_bounds = array<i64: 64, 256>}, {pipeline_mode = #tpu.pipeline_mode<synchronous>, transform_indices = @transform_13, window_bounds = array<i64: 64, 256>}, {pipeline_mode = #tpu.pipeline_mode<synchronous>, transform_indices = @transform_14, window_bounds = array<i64: 8, 256>}, {pipeline_mode = #tpu.pipeline_mode<synchronous>, transform_indices = @transform_15, window_bounds = array<i64: 256, 256>}, {pipeline_mode = #tpu.pipeline_mode<synchronous>, transform_indices = @transform_16, window_bounds = array<i64: 256, 64>}, {pipeline_mode = #tpu.pipeline_mode<synchronous>, transform_indices = @transform_17, window_bounds = array<i64: 64, 256>}, {pipeline_mode = #tpu.pipeline_mode<synchronous>, transform_indices = @transform_18, window_bounds = array<i64: 8, 256>}, {pipeline_mode = #tpu.pipeline_mode<synchronous>, transform_indices = @transform_19, window_bounds = array<i64: 256, 256>}, {pipeline_mode = #tpu.pipeline_mode<synchronous>, transform_indices = @transform_20, window_bounds = array<i64: 256, 128>}, {transform_indices = @transform_21, window_bounds = array<i64: 4, 8, 1>}]} {
    %c0 = arith.constant 0 : index
    %c0_0 = arith.constant 0 : index
    %c0_1 = arith.constant 0 : index
    %0 = vector.load %arg3[%c0, %c0_0, %c0_1] : memref<4x8x20xbf16, #tpu.memory_space<vmem>>, vector<4x8x20xbf16>
    %1 = vector.shape_cast %0 : vector<4x8x20xbf16> to vector<32x20xbf16>
    %c0_2 = arith.constant 0 : index
    %c0_3 = arith.constant 0 : index
    %2 = vector.load %arg6[%c0_2, %c0_3] : memref<20x256xbf16, #tpu.memory_space<vmem>>, vector<20x256xbf16>
    %cst = arith.constant dense<0.000000e+00> : vector<32x256xf32>
    %3 = tpu.matmul %1, %2, %cst {dimension_numbers = #tpu.dot_dimension_numbers<[1], [0], [0], [1], [0, 0, 1, 1], [], []>} : vector<32x20xbf16>, vector<20x256xbf16>, vector<32x256xf32> -> vector<32x256xf32>
    %c0_4 = arith.constant 0 : index
    %c0_5 = arith.constant 0 : index
    %4 = vector.load %arg7[%c0_4, %c0_5] : memref<8x256xf32, #tpu.memory_space<vmem>>, vector<8x256xf32>
    %5 = vector.extract_strided_slice %4 {offsets = [0, 0], sizes = [1, 256], strides = [1, 1]} : vector<8x256xf32> to vector<1x256xf32>
    %6 = vector.extract_strided_slice %4 {offsets = [1, 0], sizes = [1, 256], strides = [1, 1]} : vector<8x256xf32> to vector<1x256xf32>
    %7 = vector.extract_strided_slice %4 {offsets = [2, 0], sizes = [1, 256], strides = [1, 1]} : vector<8x256xf32> to vector<1x256xf32>
    %8 = vector.extract_strided_slice %4 {offsets = [3, 0], sizes = [1, 256], strides = [1, 1]} : vector<8x256xf32> to vector<1x256xf32>
    %9 = vector.extract_strided_slice %4 {offsets = [4, 0], sizes = [1, 256], strides = [1, 1]} : vector<8x256xf32> to vector<1x256xf32>
    %10 = vector.extract_strided_slice %4 {offsets = [5, 0], sizes = [1, 256], strides = [1, 1]} : vector<8x256xf32> to vector<1x256xf32>
    %11 = vector.extract_strided_slice %4 {offsets = [6, 0], sizes = [1, 64], strides = [1, 1]} : vector<8x256xf32> to vector<1x64xf32>
    %12 = vector.broadcast %5 : vector<1x256xf32> to vector<32x256xf32>
    %13 = arith.addf %3, %12 : vector<32x256xf32>
    %cst_6 = arith.constant dense<0.000000e+00> : vector<32xf32>
    %14 = vector.multi_reduction <add>, %13, %cst_6 [1] : vector<32x256xf32> to vector<32xf32>
    %15 = vector.shape_cast %14 : vector<32xf32> to vector<32x1xf32>
    %cst_7 = arith.constant 2.560000e+02 : f32
    %16 = vector.broadcast %cst_7 : f32 to vector<32x1xf32>
    %17 = arith.divf %15, %16 : vector<32x1xf32>
    %18 = arith.mulf %13, %13 : vector<32x256xf32>
    %cst_8 = arith.constant dense<0.000000e+00> : vector<32xf32>
    %19 = vector.multi_reduction <add>, %18, %cst_8 [1] : vector<32x256xf32> to vector<32xf32>
    %20 = vector.shape_cast %19 : vector<32xf32> to vector<32x1xf32>
    %cst_9 = arith.constant 2.560000e+02 : f32
    %21 = vector.broadcast %cst_9 : f32 to vector<32x1xf32>
    %22 = arith.divf %20, %21 : vector<32x1xf32>
    %23 = arith.mulf %17, %17 : vector<32x1xf32>
    %24 = arith.subf %22, %23 : vector<32x1xf32>
    %cst_10 = arith.constant 0.000000e+00 : f32
    %25 = vector.broadcast %cst_10 : f32 to vector<32x1xf32>
    %26 = arith.maximumf %24, %25 : vector<32x1xf32>
    %27 = vector.broadcast %17 : vector<32x1xf32> to vector<32x256xf32>
    %28 = arith.subf %13, %27 : vector<32x256xf32>
    %cst_11 = arith.constant 9.99999974E-6 : f32
    %29 = vector.broadcast %cst_11 : f32 to vector<32x1xf32>
    %30 = arith.addf %26, %29 : vector<32x1xf32>
    %31 = math.rsqrt %30 : vector<32x1xf32>
    %32 = vector.broadcast %31 : vector<32x1xf32> to vector<32x256xf32>
    %33 = arith.mulf %28, %32 : vector<32x256xf32>
    %34 = vector.broadcast %6 : vector<1x256xf32> to vector<32x256xf32>
    %35 = arith.mulf %33, %34 : vector<32x256xf32>
    %36 = vector.broadcast %7 : vector<1x256xf32> to vector<32x256xf32>
    %37 = arith.addf %35, %36 : vector<32x256xf32>
    %cst_12 = arith.constant 0.000000e+00 : f32
    %38 = vector.broadcast %cst_12 : f32 to vector<32x256xf32>
    %39 = arith.maximumf %37, %38 : vector<32x256xf32>
    %40 = arith.truncf %39 : vector<32x256xf32> to vector<32x256xbf16>
    %c0_13 = arith.constant 0 : index
    %c0_14 = arith.constant 0 : index
    %41 = vector.load %arg8[%c0_13, %c0_14] : memref<256x256xbf16, #tpu.memory_space<vmem>>, vector<256x256xbf16>
    %cst_15 = arith.constant dense<0.000000e+00> : vector<32x256xf32>
    %42 = tpu.matmul %40, %41, %cst_15 {dimension_numbers = #tpu.dot_dimension_numbers<[1], [0], [0], [1], [0, 0, 1, 1], [], []>} : vector<32x256xbf16>, vector<256x256xbf16>, vector<32x256xf32> -> vector<32x256xf32>
    %43 = vector.broadcast %8 : vector<1x256xf32> to vector<32x256xf32>
    %44 = arith.addf %42, %43 : vector<32x256xf32>
    %cst_16 = arith.constant dense<0.000000e+00> : vector<32xf32>
    %45 = vector.multi_reduction <add>, %44, %cst_16 [1] : vector<32x256xf32> to vector<32xf32>
    %46 = vector.shape_cast %45 : vector<32xf32> to vector<32x1xf32>
    %cst_17 = arith.constant 2.560000e+02 : f32
    %47 = vector.broadcast %cst_17 : f32 to vector<32x1xf32>
    %48 = arith.divf %46, %47 : vector<32x1xf32>
    %49 = arith.mulf %44, %44 : vector<32x256xf32>
    %cst_18 = arith.constant dense<0.000000e+00> : vector<32xf32>
    %50 = vector.multi_reduction <add>, %49, %cst_18 [1] : vector<32x256xf32> to vector<32xf32>
    %51 = vector.shape_cast %50 : vector<32xf32> to vector<32x1xf32>
    %cst_19 = arith.constant 2.560000e+02 : f32
    %52 = vector.broadcast %cst_19 : f32 to vector<32x1xf32>
    %53 = arith.divf %51, %52 : vector<32x1xf32>
    %54 = arith.mulf %48, %48 : vector<32x1xf32>
    %55 = arith.subf %53, %54 : vector<32x1xf32>
    %cst_20 = arith.constant 0.000000e+00 : f32
    %56 = vector.broadcast %cst_20 : f32 to vector<32x1xf32>
    %57 = arith.maximumf %55, %56 : vector<32x1xf32>
    %58 = vector.broadcast %48 : vector<32x1xf32> to vector<32x256xf32>
    %59 = arith.subf %44, %58 : vector<32x256xf32>
    %cst_21 = arith.constant 9.99999974E-6 : f32
    %60 = vector.broadcast %cst_21 : f32 to vector<32x1xf32>
    %61 = arith.addf %57, %60 : vector<32x1xf32>
    %62 = math.rsqrt %61 : vector<32x1xf32>
    %63 = vector.broadcast %62 : vector<32x1xf32> to vector<32x256xf32>
    %64 = arith.mulf %59, %63 : vector<32x256xf32>
    %65 = vector.broadcast %9 : vector<1x256xf32> to vector<32x256xf32>
    %66 = arith.mulf %64, %65 : vector<32x256xf32>
    %67 = vector.broadcast %10 : vector<1x256xf32> to vector<32x256xf32>
    %68 = arith.addf %66, %67 : vector<32x256xf32>
    %cst_22 = arith.constant 0.000000e+00 : f32
    %69 = vector.broadcast %cst_22 : f32 to vector<32x256xf32>
    %70 = arith.maximumf %68, %69 : vector<32x256xf32>
    %71 = arith.truncf %70 : vector<32x256xf32> to vector<32x256xbf16>
    %c0_23 = arith.constant 0 : index
    %c0_24 = arith.constant 0 : index
    %72 = vector.load %arg9[%c0_23, %c0_24] : memref<256x64xbf16, #tpu.memory_space<vmem>>, vector<256x64xbf16>
    %cst_25 = arith.constant dense<0.000000e+00> : vector<32x64xf32>
    %73 = tpu.matmul %71, %72, %cst_25 {dimension_numbers = #tpu.dot_dimension_numbers<[1], [0], [0], [1], [0, 0, 1, 1], [], []>} : vector<32x256xbf16>, vector<256x64xbf16>, vector<32x64xf32> -> vector<32x64xf32>
    %74 = vector.broadcast %11 : vector<1x64xf32> to vector<32x64xf32>
    %75 = arith.addf %73, %74 : vector<32x64xf32>
    %c0_26 = arith.constant 0 : index
    %c0_27 = arith.constant 0 : index
    %76 = vector.load %arg25[%c0_26, %c0_27] : memref<32x64xf32, #tpu.memory_space<vmem>>, vector<32x64xf32>
    tpu.vector_store %arg25[%c0_26, %c0_27], %75 {strides = array<i32>} : memref<32x64xf32, #tpu.memory_space<vmem>>, vector<32x64xf32>,
    %c0_28 = arith.constant 0 : index
    %c0_29 = arith.constant 0 : index
    %c0_30 = arith.constant 0 : index
    %77 = vector.load %arg4[%c0_28, %c0_29, %c0_30] : memref<8x8x21xbf16, #tpu.memory_space<vmem>>, vector<8x8x21xbf16>
    %78 = vector.shape_cast %77 : vector<8x8x21xbf16> to vector<64x21xbf16>
    %c0_31 = arith.constant 0 : index
    %c0_32 = arith.constant 0 : index
    %79 = vector.load %arg11[%c0_31, %c0_32] : memref<21x256xbf16, #tpu.memory_space<vmem>>, vector<21x256xbf16>
    %cst_33 = arith.constant dense<0.000000e+00> : vector<64x256xf32>
    %80 = tpu.matmul %78, %79, %cst_33 {dimension_numbers = #tpu.dot_dimension_numbers<[1], [0], [0], [1], [0, 0, 1, 1], [], []>} : vector<64x21xbf16>, vector<21x256xbf16>, vector<64x256xf32> -> vector<64x256xf32>
    %c0_34 = arith.constant 0 : index
    %c0_35 = arith.constant 0 : index
    %81 = vector.load %arg29[%c0_34, %c0_35] : memref<64x256xf32, #tpu.memory_space<vmem>>, vector<64x256xf32>
    tpu.vector_store %arg29[%c0_34, %c0_35], %80 {strides = array<i32>} : memref<64x256xf32, #tpu.memory_space<vmem>>, vector<64x256xf32>,
    %c0_36 = arith.constant 0 : index
    %c0_37 = arith.constant 0 : index
    %c0_38 = arith.constant 0 : index
    %82 = vector.load %arg5[%c0_36, %c0_37, %c0_38] : memref<4x8x1xf32, #tpu.memory_space<vmem>>, vector<4x8x1xf32>
    %83 = vector.shape_cast %82 : vector<4x8x1xf32> to vector<32x1xf32>
    %c0_39 = arith.constant 0 : index
    %c0_40 = arith.constant 0 : index
    %84 = vector.load %arg12[%c0_39, %c0_40] : memref<8x256xf32, #tpu.memory_space<vmem>>, vector<8x256xf32>
    %c0_41 = arith.constant 0 : index
    %c0_42 = arith.constant 0 : index
    %85 = vector.load %arg17[%c0_41, %c0_42] : memref<8x256xf32, #tpu.memory_space<vmem>>, vector<8x256xf32>
    %c0_i32 = arith.constant 0 : i32
    %c6_i32 = arith.constant 6 : i32
    %86 = arith.addi %c0_i32, %c6_i32 : i32
    %c1_i32 = arith.constant 1 : i32
    scf.for %arg30 = %c0_i32 to %86 step %c1_i32  : i32 {
      %c0_i32_73 = arith.constant 0 : i32
      %c8_i32 = arith.constant 8 : i32
      %167 = arith.addi %c0_i32_73, %c8_i32 : i32
      %c1_i32_74 = arith.constant 1 : i32
      scf.for %arg31 = %c0_i32_73 to %167 step %c1_i32_74  : i32 {
        %333 = arith.index_cast %arg31 : i32 to index
        %334 = memref.load %arg1[%333] : memref<8xi32, #tpu.memory_space<smem>>
        %c8_i32_144 = arith.constant 8 : i32
        %335 = arith.muli %334, %c8_i32_144 : i32
        %336 = tpu.assume_multiple %335, 8 : i32
        %c8_i32_145 = arith.constant 8 : i32
        %337 = arith.muli %arg31, %c8_i32_145 : i32
        %338 = tpu.assume_multiple %337, 8 : i32
        %339 = arith.index_cast %336 : i32 to index
        %c0_146 = arith.constant 0 : index
        %340 = vector.load %arg25[%339, %c0_146] : memref<32x64xf32, #tpu.memory_space<vmem>>, vector<8x64xf32>
        %341 = arith.index_cast %338 : i32 to index
        %c0_147 = arith.constant 0 : index
        %342 = vector.load %arg26[%341, %c0_147] : memref<64x64xf32, #tpu.memory_space<vmem>>, vector<8x64xf32>
        tpu.vector_store %arg26[%341, %c0_147], %340 {strides = array<i32>} : memref<64x64xf32, #tpu.memory_space<vmem>>, vector<8x64xf32>,
      }
      %c8_i32_75 = arith.constant 8 : i32
      %c0_76 = arith.constant 0 : index
      %c0_77 = arith.constant 0 : index
      %168 = vector.load %arg26[%c0_76, %c0_77] : memref<64x64xf32, #tpu.memory_space<vmem>>, vector<64x64xf32>
      %169 = arith.truncf %168 : vector<64x64xf32> to vector<64x64xbf16>
      %c0_78 = arith.constant 0 : index
      %c0_79 = arith.constant 0 : index
      %170 = vector.load %arg10[%c0_78, %c0_79] : memref<64x256xbf16, #tpu.memory_space<vmem>>, vector<64x256xbf16>
      %cst_80 = arith.constant dense<0.000000e+00> : vector<64x256xf32>
      %171 = tpu.matmul %169, %170, %cst_80 {dimension_numbers = #tpu.dot_dimension_numbers<[1], [0], [0], [1], [0, 0, 1, 1], [], []>} : vector<64x64xbf16>, vector<64x256xbf16>, vector<64x256xf32> -> vector<64x256xf32>
      %c0_81 = arith.constant 0 : index
      %c0_82 = arith.constant 0 : index
      %172 = vector.load %arg29[%c0_81, %c0_82] : memref<64x256xf32, #tpu.memory_space<vmem>>, vector<64x256xf32>
      %173 = arith.addf %171, %172 : vector<64x256xf32>
      %174 = vector.extract_strided_slice %84 {offsets = [0, 0], sizes = [1, 256], strides = [1, 1]} : vector<8x256xf32> to vector<1x256xf32>
      %175 = vector.extract_strided_slice %84 {offsets = [1, 0], sizes = [1, 256], strides = [1, 1]} : vector<8x256xf32> to vector<1x256xf32>
      %176 = vector.extract_strided_slice %84 {offsets = [2, 0], sizes = [1, 256], strides = [1, 1]} : vector<8x256xf32> to vector<1x256xf32>
      %177 = vector.extract_strided_slice %84 {offsets = [3, 0], sizes = [1, 256], strides = [1, 1]} : vector<8x256xf32> to vector<1x256xf32>
      %178 = vector.extract_strided_slice %84 {offsets = [4, 0], sizes = [1, 256], strides = [1, 1]} : vector<8x256xf32> to vector<1x256xf32>
      %179 = vector.extract_strided_slice %84 {offsets = [5, 0], sizes = [1, 256], strides = [1, 1]} : vector<8x256xf32> to vector<1x256xf32>
      %180 = vector.extract_strided_slice %84 {offsets = [6, 0], sizes = [1, 64], strides = [1, 1]} : vector<8x256xf32> to vector<1x64xf32>
      %181 = vector.broadcast %174 : vector<1x256xf32> to vector<64x256xf32>
      %182 = arith.addf %173, %181 : vector<64x256xf32>
      %cst_83 = arith.constant dense<0.000000e+00> : vector<64xf32>
      %183 = vector.multi_reduction <add>, %182, %cst_83 [1] : vector<64x256xf32> to vector<64xf32>
      %184 = vector.shape_cast %183 : vector<64xf32> to vector<64x1xf32>
      %cst_84 = arith.constant 2.560000e+02 : f32
      %185 = vector.broadcast %cst_84 : f32 to vector<64x1xf32>
      %186 = arith.divf %184, %185 : vector<64x1xf32>
      %187 = arith.mulf %182, %182 : vector<64x256xf32>
      %cst_85 = arith.constant dense<0.000000e+00> : vector<64xf32>
      %188 = vector.multi_reduction <add>, %187, %cst_85 [1] : vector<64x256xf32> to vector<64xf32>
      %189 = vector.shape_cast %188 : vector<64xf32> to vector<64x1xf32>
      %cst_86 = arith.constant 2.560000e+02 : f32
      %190 = vector.broadcast %cst_86 : f32 to vector<64x1xf32>
      %191 = arith.divf %189, %190 : vector<64x1xf32>
      %192 = arith.mulf %186, %186 : vector<64x1xf32>
      %193 = arith.subf %191, %192 : vector<64x1xf32>
      %cst_87 = arith.constant 0.000000e+00 : f32
      %194 = vector.broadcast %cst_87 : f32 to vector<64x1xf32>
      %195 = arith.maximumf %193, %194 : vector<64x1xf32>
      %196 = vector.broadcast %186 : vector<64x1xf32> to vector<64x256xf32>
      %197 = arith.subf %182, %196 : vector<64x256xf32>
      %cst_88 = arith.constant 9.99999974E-6 : f32
      %198 = vector.broadcast %cst_88 : f32 to vector<64x1xf32>
      %199 = arith.addf %195, %198 : vector<64x1xf32>
      %200 = math.rsqrt %199 : vector<64x1xf32>
      %201 = vector.broadcast %200 : vector<64x1xf32> to vector<64x256xf32>
      %202 = arith.mulf %197, %201 : vector<64x256xf32>
      %203 = vector.broadcast %175 : vector<1x256xf32> to vector<64x256xf32>
      %204 = arith.mulf %202, %203 : vector<64x256xf32>
      %205 = vector.broadcast %176 : vector<1x256xf32> to vector<64x256xf32>
      %206 = arith.addf %204, %205 : vector<64x256xf32>
      %cst_89 = arith.constant 0.000000e+00 : f32
      %207 = vector.broadcast %cst_89 : f32 to vector<64x256xf32>
      %208 = arith.maximumf %206, %207 : vector<64x256xf32>
      %209 = arith.truncf %208 : vector<64x256xf32> to vector<64x256xbf16>
      %c0_90 = arith.constant 0 : index
      %c0_91 = arith.constant 0 : index
      %210 = vector.load %arg13[%c0_90, %c0_91] : memref<256x256xbf16, #tpu.memory_space<vmem>>, vector<256x256xbf16>
      %cst_92 = arith.constant dense<0.000000e+00> : vector<64x256xf32>
      %211 = tpu.matmul %209, %210, %cst_92 {dimension_numbers = #tpu.dot_dimension_numbers<[1], [0], [0], [1], [0, 0, 1, 1], [], []>} : vector<64x256xbf16>, vector<256x256xbf16>, vector<64x256xf32> -> vector<64x256xf32>
      %212 = vector.broadcast %177 : vector<1x256xf32> to vector<64x256xf32>
      %213 = arith.addf %211, %212 : vector<64x256xf32>
      %cst_93 = arith.constant dense<0.000000e+00> : vector<64xf32>
      %214 = vector.multi_reduction <add>, %213, %cst_93 [1] : vector<64x256xf32> to vector<64xf32>
      %215 = vector.shape_cast %214 : vector<64xf32> to vector<64x1xf32>
      %cst_94 = arith.constant 2.560000e+02 : f32
      %216 = vector.broadcast %cst_94 : f32 to vector<64x1xf32>
      %217 = arith.divf %215, %216 : vector<64x1xf32>
      %218 = arith.mulf %213, %213 : vector<64x256xf32>
      %cst_95 = arith.constant dense<0.000000e+00> : vector<64xf32>
      %219 = vector.multi_reduction <add>, %218, %cst_95 [1] : vector<64x256xf32> to vector<64xf32>
      %220 = vector.shape_cast %219 : vector<64xf32> to vector<64x1xf32>
      %cst_96 = arith.constant 2.560000e+02 : f32
      %221 = vector.broadcast %cst_96 : f32 to vector<64x1xf32>
      %222 = arith.divf %220, %221 : vector<64x1xf32>
      %223 = arith.mulf %217, %217 : vector<64x1xf32>
      %224 = arith.subf %222, %223 : vector<64x1xf32>
      %cst_97 = arith.constant 0.000000e+00 : f32
      %225 = vector.broadcast %cst_97 : f32 to vector<64x1xf32>
      %226 = arith.maximumf %224, %225 : vector<64x1xf32>
      %227 = vector.broadcast %217 : vector<64x1xf32> to vector<64x256xf32>
      %228 = arith.subf %213, %227 : vector<64x256xf32>
      %cst_98 = arith.constant 9.99999974E-6 : f32
      %229 = vector.broadcast %cst_98 : f32 to vector<64x1xf32>
      %230 = arith.addf %226, %229 : vector<64x1xf32>
      %231 = math.rsqrt %230 : vector<64x1xf32>
      %232 = vector.broadcast %231 : vector<64x1xf32> to vector<64x256xf32>
      %233 = arith.mulf %228, %232 : vector<64x256xf32>
      %234 = vector.broadcast %178 : vector<1x256xf32> to vector<64x256xf32>
      %235 = arith.mulf %233, %234 : vector<64x256xf32>
      %236 = vector.broadcast %179 : vector<1x256xf32> to vector<64x256xf32>
      %237 = arith.addf %235, %236 : vector<64x256xf32>
      %cst_99 = arith.constant 0.000000e+00 : f32
      %238 = vector.broadcast %cst_99 : f32 to vector<64x256xf32>
      %239 = arith.maximumf %237, %238 : vector<64x256xf32>
      %240 = arith.truncf %239 : vector<64x256xf32> to vector<64x256xbf16>
      %c0_100 = arith.constant 0 : index
      %c0_101 = arith.constant 0 : index
      %241 = vector.load %arg14[%c0_100, %c0_101] : memref<256x64xbf16, #tpu.memory_space<vmem>>, vector<256x64xbf16>
      %cst_102 = arith.constant dense<0.000000e+00> : vector<64x64xf32>
      %242 = tpu.matmul %240, %241, %cst_102 {dimension_numbers = #tpu.dot_dimension_numbers<[1], [0], [0], [1], [0, 0, 1, 1], [], []>} : vector<64x256xbf16>, vector<256x64xbf16>, vector<64x64xf32> -> vector<64x64xf32>
      %243 = vector.broadcast %180 : vector<1x64xf32> to vector<64x64xf32>
      %244 = arith.addf %242, %243 : vector<64x64xf32>
      %245 = math.tanh %244 : vector<64x64xf32>
      %c0_103 = arith.constant 0 : index
      %c0_104 = arith.constant 0 : index
      %246 = vector.load %arg27[%c0_103, %c0_104] : memref<64x64xf32, #tpu.memory_space<vmem>>, vector<64x64xf32>
      tpu.vector_store %arg27[%c0_103, %c0_104], %245 {strides = array<i32>} : memref<64x64xf32, #tpu.memory_space<vmem>>, vector<64x64xf32>,
      %cst_105 = arith.constant 0.000000e+00 : f32
      %247 = vector.broadcast %cst_105 : f32 to vector<32x64xf32>
      %c0_106 = arith.constant 0 : index
      %c0_107 = arith.constant 0 : index
      %248 = vector.load %arg28[%c0_106, %c0_107] : memref<32x64xf32, #tpu.memory_space<vmem>>, vector<32x64xf32>
      tpu.vector_store %arg28[%c0_106, %c0_107], %247 {strides = array<i32>} : memref<32x64xf32, #tpu.memory_space<vmem>>, vector<32x64xf32>,
      %c0_i32_108 = arith.constant 0 : i32
      %c8_i32_109 = arith.constant 8 : i32
      %249 = arith.addi %c0_i32_108, %c8_i32_109 : i32
      %c1_i32_110 = arith.constant 1 : i32
      scf.for %arg31 = %c0_i32_108 to %249 step %c1_i32_110  : i32 {
        %c8_i32_144 = arith.constant 8 : i32
        %333 = arith.muli %arg31, %c8_i32_144 : i32
        %334 = tpu.assume_multiple %333, 8 : i32
        %335 = arith.index_cast %arg31 : i32 to index
        %336 = memref.load %arg2[%335] : memref<8xi32, #tpu.memory_space<smem>>
        %c8_i32_145 = arith.constant 8 : i32
        %337 = arith.muli %336, %c8_i32_145 : i32
        %338 = tpu.assume_multiple %337, 8 : i32
        %339 = arith.index_cast %338 : i32 to index
        %c0_146 = arith.constant 0 : index
        %340 = vector.load %arg28[%339, %c0_146] : memref<32x64xf32, #tpu.memory_space<vmem>>, vector<8x64xf32>
        %341 = arith.index_cast %334 : i32 to index
        %c0_147 = arith.constant 0 : index
        %342 = vector.load %arg27[%341, %c0_147] : memref<64x64xf32, #tpu.memory_space<vmem>>, vector<8x64xf32>
        %343 = arith.addf %340, %342 : vector<8x64xf32>
        %344 = arith.index_cast %338 : i32 to index
        %c0_148 = arith.constant 0 : index
        %345 = vector.load %arg28[%344, %c0_148] : memref<32x64xf32, #tpu.memory_space<vmem>>, vector<8x64xf32>
        tpu.vector_store %arg28[%344, %c0_148], %343 {strides = array<i32>} : memref<32x64xf32, #tpu.memory_space<vmem>>, vector<8x64xf32>,
      }
      %c8_i32_111 = arith.constant 8 : i32
      %c0_112 = arith.constant 0 : index
      %c0_113 = arith.constant 0 : index
      %250 = vector.load %arg28[%c0_112, %c0_113] : memref<32x64xf32, #tpu.memory_space<vmem>>, vector<32x64xf32>
      %251 = vector.broadcast %83 : vector<32x1xf32> to vector<32x64xf32>
      %252 = arith.mulf %250, %251 : vector<32x64xf32>
      %253 = arith.truncf %252 : vector<32x64xf32> to vector<32x64xbf16>
      %c0_114 = arith.constant 0 : index
      %c0_115 = arith.constant 0 : index
      %254 = vector.load %arg15[%c0_114, %c0_115] : memref<64x256xbf16, #tpu.memory_space<vmem>>, vector<64x256xbf16>
      %cst_116 = arith.constant dense<0.000000e+00> : vector<32x256xf32>
      %255 = tpu.matmul %253, %254, %cst_116 {dimension_numbers = #tpu.dot_dimension_numbers<[1], [0], [0], [1], [0, 0, 1, 1], [], []>} : vector<32x64xbf16>, vector<64x256xbf16>, vector<32x256xf32> -> vector<32x256xf32>
      %c0_117 = arith.constant 0 : index
      %c0_118 = arith.constant 0 : index
      %256 = vector.load %arg25[%c0_117, %c0_118] : memref<32x64xf32, #tpu.memory_space<vmem>>, vector<32x64xf32>
      %257 = arith.truncf %256 : vector<32x64xf32> to vector<32x64xbf16>
      %c0_119 = arith.constant 0 : index
      %c0_120 = arith.constant 0 : index
      %258 = vector.load %arg16[%c0_119, %c0_120] : memref<64x256xbf16, #tpu.memory_space<vmem>>, vector<64x256xbf16>
      %cst_121 = arith.constant dense<0.000000e+00> : vector<32x256xf32>
      %259 = tpu.matmul %257, %258, %cst_121 {dimension_numbers = #tpu.dot_dimension_numbers<[1], [0], [0], [1], [0, 0, 1, 1], [], []>} : vector<32x64xbf16>, vector<64x256xbf16>, vector<32x256xf32> -> vector<32x256xf32>
      %260 = arith.addf %255, %259 : vector<32x256xf32>
      %261 = vector.extract_strided_slice %85 {offsets = [0, 0], sizes = [1, 256], strides = [1, 1]} : vector<8x256xf32> to vector<1x256xf32>
      %262 = vector.extract_strided_slice %85 {offsets = [1, 0], sizes = [1, 256], strides = [1, 1]} : vector<8x256xf32> to vector<1x256xf32>
      %263 = vector.extract_strided_slice %85 {offsets = [2, 0], sizes = [1, 256], strides = [1, 1]} : vector<8x256xf32> to vector<1x256xf32>
      %264 = vector.extract_strided_slice %85 {offsets = [3, 0], sizes = [1, 256], strides = [1, 1]} : vector<8x256xf32> to vector<1x256xf32>
      %265 = vector.extract_strided_slice %85 {offsets = [4, 0], sizes = [1, 256], strides = [1, 1]} : vector<8x256xf32> to vector<1x256xf32>
      %266 = vector.extract_strided_slice %85 {offsets = [5, 0], sizes = [1, 256], strides = [1, 1]} : vector<8x256xf32> to vector<1x256xf32>
      %267 = vector.extract_strided_slice %85 {offsets = [6, 0], sizes = [1, 64], strides = [1, 1]} : vector<8x256xf32> to vector<1x64xf32>
      %268 = vector.broadcast %261 : vector<1x256xf32> to vector<32x256xf32>
      %269 = arith.addf %260, %268 : vector<32x256xf32>
      %cst_122 = arith.constant dense<0.000000e+00> : vector<32xf32>
      %270 = vector.multi_reduction <add>, %269, %cst_122 [1] : vector<32x256xf32> to vector<32xf32>
      %271 = vector.shape_cast %270 : vector<32xf32> to vector<32x1xf32>
      %cst_123 = arith.constant 2.560000e+02 : f32
      %272 = vector.broadcast %cst_123 : f32 to vector<32x1xf32>
      %273 = arith.divf %271, %272 : vector<32x1xf32>
      %274 = arith.mulf %269, %269 : vector<32x256xf32>
      %cst_124 = arith.constant dense<0.000000e+00> : vector<32xf32>
      %275 = vector.multi_reduction <add>, %274, %cst_124 [1] : vector<32x256xf32> to vector<32xf32>
      %276 = vector.shape_cast %275 : vector<32xf32> to vector<32x1xf32>
      %cst_125 = arith.constant 2.560000e+02 : f32
      %277 = vector.broadcast %cst_125 : f32 to vector<32x1xf32>
      %278 = arith.divf %276, %277 : vector<32x1xf32>
      %279 = arith.mulf %273, %273 : vector<32x1xf32>
      %280 = arith.subf %278, %279 : vector<32x1xf32>
      %cst_126 = arith.constant 0.000000e+00 : f32
      %281 = vector.broadcast %cst_126 : f32 to vector<32x1xf32>
      %282 = arith.maximumf %280, %281 : vector<32x1xf32>
      %283 = vector.broadcast %273 : vector<32x1xf32> to vector<32x256xf32>
      %284 = arith.subf %269, %283 : vector<32x256xf32>
      %cst_127 = arith.constant 9.99999974E-6 : f32
      %285 = vector.broadcast %cst_127 : f32 to vector<32x1xf32>
      %286 = arith.addf %282, %285 : vector<32x1xf32>
      %287 = math.rsqrt %286 : vector<32x1xf32>
      %288 = vector.broadcast %287 : vector<32x1xf32> to vector<32x256xf32>
      %289 = arith.mulf %284, %288 : vector<32x256xf32>
      %290 = vector.broadcast %262 : vector<1x256xf32> to vector<32x256xf32>
      %291 = arith.mulf %289, %290 : vector<32x256xf32>
      %292 = vector.broadcast %263 : vector<1x256xf32> to vector<32x256xf32>
      %293 = arith.addf %291, %292 : vector<32x256xf32>
      %cst_128 = arith.constant 0.000000e+00 : f32
      %294 = vector.broadcast %cst_128 : f32 to vector<32x256xf32>
      %295 = arith.maximumf %293, %294 : vector<32x256xf32>
      %296 = arith.truncf %295 : vector<32x256xf32> to vector<32x256xbf16>
      %c0_129 = arith.constant 0 : index
      %c0_130 = arith.constant 0 : index
      %297 = vector.load %arg18[%c0_129, %c0_130] : memref<256x256xbf16, #tpu.memory_space<vmem>>, vector<256x256xbf16>
      %cst_131 = arith.constant dense<0.000000e+00> : vector<32x256xf32>
      %298 = tpu.matmul %296, %297, %cst_131 {dimension_numbers = #tpu.dot_dimension_numbers<[1], [0], [0], [1], [0, 0, 1, 1], [], []>} : vector<32x256xbf16>, vector<256x256xbf16>, vector<32x256xf32> -> vector<32x256xf32>
      %299 = vector.broadcast %264 : vector<1x256xf32> to vector<32x256xf32>
      %300 = arith.addf %298, %299 : vector<32x256xf32>
      %cst_132 = arith.constant dense<0.000000e+00> : vector<32xf32>
      %301 = vector.multi_reduction <add>, %300, %cst_132 [1] : vector<32x256xf32> to vector<32xf32>
      %302 = vector.shape_cast %301 : vector<32xf32> to vector<32x1xf32>
      %cst_133 = arith.constant 2.560000e+02 : f32
      %303 = vector.broadcast %cst_133 : f32 to vector<32x1xf32>
      %304 = arith.divf %302, %303 : vector<32x1xf32>
      %305 = arith.mulf %300, %300 : vector<32x256xf32>
      %cst_134 = arith.constant dense<0.000000e+00> : vector<32xf32>
      %306 = vector.multi_reduction <add>, %305, %cst_134 [1] : vector<32x256xf32> to vector<32xf32>
      %307 = vector.shape_cast %306 : vector<32xf32> to vector<32x1xf32>
      %cst_135 = arith.constant 2.560000e+02 : f32
      %308 = vector.broadcast %cst_135 : f32 to vector<32x1xf32>
      %309 = arith.divf %307, %308 : vector<32x1xf32>
      %310 = arith.mulf %304, %304 : vector<32x1xf32>
      %311 = arith.subf %309, %310 : vector<32x1xf32>
      %cst_136 = arith.constant 0.000000e+00 : f32
      %312 = vector.broadcast %cst_136 : f32 to vector<32x1xf32>
      %313 = arith.maximumf %311, %312 : vector<32x1xf32>
      %314 = vector.broadcast %304 : vector<32x1xf32> to vector<32x256xf32>
      %315 = arith.subf %300, %314 : vector<32x256xf32>
      %cst_137 = arith.constant 9.99999974E-6 : f32
      %316 = vector.broadcast %cst_137 : f32 to vector<32x1xf32>
      %317 = arith.addf %313, %316 : vector<32x1xf32>
      %318 = math.rsqrt %317 : vector<32x1xf32>
      %319 = vector.broadcast %318 : vector<32x1xf32> to vector<32x256xf32>
      %320 = arith.mulf %315, %319 : vector<32x256xf32>
      %321 = vector.broadcast %265 : vector<1x256xf32> to vector<32x256xf32>
      %322 = arith.mulf %320, %321 : vector<32x256xf32>
      %323 = vector.broadcast %266 : vector<1x256xf32> to vector<32x256xf32>
      %324 = arith.addf %322, %323 : vector<32x256xf32>
      %cst_138 = arith.constant 0.000000e+00 : f32
      %325 = vector.broadcast %cst_138 : f32 to vector<32x256xf32>
      %326 = arith.maximumf %324, %325 : vector<32x256xf32>
      %327 = arith.truncf %326 : vector<32x256xf32> to vector<32x256xbf16>
      %c0_139 = arith.constant 0 : index
      %c0_140 = arith.constant 0 : index
      %328 = vector.load %arg19[%c0_139, %c0_140] : memref<256x64xbf16, #tpu.memory_space<vmem>>, vector<256x64xbf16>
      %cst_141 = arith.constant dense<0.000000e+00> : vector<32x64xf32>
      %329 = tpu.matmul %327, %328, %cst_141 {dimension_numbers = #tpu.dot_dimension_numbers<[1], [0], [0], [1], [0, 0, 1, 1], [], []>} : vector<32x256xbf16>, vector<256x64xbf16>, vector<32x64xf32> -> vector<32x64xf32>
      %330 = vector.broadcast %267 : vector<1x64xf32> to vector<32x64xf32>
      %331 = arith.addf %329, %330 : vector<32x64xf32>
      %c0_142 = arith.constant 0 : index
      %c0_143 = arith.constant 0 : index
      %332 = vector.load %arg25[%c0_142, %c0_143] : memref<32x64xf32, #tpu.memory_space<vmem>>, vector<32x64xf32>
      tpu.vector_store %arg25[%c0_142, %c0_143], %331 {strides = array<i32>} : memref<32x64xf32, #tpu.memory_space<vmem>>, vector<32x64xf32>,
    }
    %c0_43 = arith.constant 0 : index
    %c0_44 = arith.constant 0 : index
    %87 = vector.load %arg25[%c0_43, %c0_44] : memref<32x64xf32, #tpu.memory_space<vmem>>, vector<32x64xf32>
    %88 = arith.truncf %87 : vector<32x64xf32> to vector<32x64xbf16>
    %c0_45 = arith.constant 0 : index
    %c0_46 = arith.constant 0 : index
    %89 = vector.load %arg20[%c0_45, %c0_46] : memref<64x256xbf16, #tpu.memory_space<vmem>>, vector<64x256xbf16>
    %cst_47 = arith.constant dense<0.000000e+00> : vector<32x256xf32>
    %90 = tpu.matmul %88, %89, %cst_47 {dimension_numbers = #tpu.dot_dimension_numbers<[1], [0], [0], [1], [0, 0, 1, 1], [], []>} : vector<32x64xbf16>, vector<64x256xbf16>, vector<32x256xf32> -> vector<32x256xf32>
    %c0_48 = arith.constant 0 : index
    %c0_49 = arith.constant 0 : index
    %91 = vector.load %arg21[%c0_48, %c0_49] : memref<8x256xf32, #tpu.memory_space<vmem>>, vector<8x256xf32>
    %92 = vector.extract_strided_slice %91 {offsets = [0, 0], sizes = [1, 256], strides = [1, 1]} : vector<8x256xf32> to vector<1x256xf32>
    %93 = vector.extract_strided_slice %91 {offsets = [1, 0], sizes = [1, 256], strides = [1, 1]} : vector<8x256xf32> to vector<1x256xf32>
    %94 = vector.extract_strided_slice %91 {offsets = [2, 0], sizes = [1, 256], strides = [1, 1]} : vector<8x256xf32> to vector<1x256xf32>
    %95 = vector.extract_strided_slice %91 {offsets = [3, 0], sizes = [1, 256], strides = [1, 1]} : vector<8x256xf32> to vector<1x256xf32>
    %96 = vector.extract_strided_slice %91 {offsets = [4, 0], sizes = [1, 256], strides = [1, 1]} : vector<8x256xf32> to vector<1x256xf32>
    %97 = vector.extract_strided_slice %91 {offsets = [5, 0], sizes = [1, 256], strides = [1, 1]} : vector<8x256xf32> to vector<1x256xf32>
    %98 = vector.extract_strided_slice %91 {offsets = [6, 0], sizes = [1, 128], strides = [1, 1]} : vector<8x256xf32> to vector<1x128xf32>
    %99 = vector.broadcast %92 : vector<1x256xf32> to vector<32x256xf32>
    %100 = arith.addf %90, %99 : vector<32x256xf32>
    %cst_50 = arith.constant dense<0.000000e+00> : vector<32xf32>
    %101 = vector.multi_reduction <add>, %100, %cst_50 [1] : vector<32x256xf32> to vector<32xf32>
    %102 = vector.shape_cast %101 : vector<32xf32> to vector<32x1xf32>
    %cst_51 = arith.constant 2.560000e+02 : f32
    %103 = vector.broadcast %cst_51 : f32 to vector<32x1xf32>
    %104 = arith.divf %102, %103 : vector<32x1xf32>
    %105 = arith.mulf %100, %100 : vector<32x256xf32>
    %cst_52 = arith.constant dense<0.000000e+00> : vector<32xf32>
    %106 = vector.multi_reduction <add>, %105, %cst_52 [1] : vector<32x256xf32> to vector<32xf32>
    %107 = vector.shape_cast %106 : vector<32xf32> to vector<32x1xf32>
    %cst_53 = arith.constant 2.560000e+02 : f32
    %108 = vector.broadcast %cst_53 : f32 to vector<32x1xf32>
    %109 = arith.divf %107, %108 : vector<32x1xf32>
    %110 = arith.mulf %104, %104 : vector<32x1xf32>
    %111 = arith.subf %109, %110 : vector<32x1xf32>
    %cst_54 = arith.constant 0.000000e+00 : f32
    %112 = vector.broadcast %cst_54 : f32 to vector<32x1xf32>
    %113 = arith.maximumf %111, %112 : vector<32x1xf32>
    %114 = vector.broadcast %104 : vector<32x1xf32> to vector<32x256xf32>
    %115 = arith.subf %100, %114 : vector<32x256xf32>
    %cst_55 = arith.constant 9.99999974E-6 : f32
    %116 = vector.broadcast %cst_55 : f32 to vector<32x1xf32>
    %117 = arith.addf %113, %116 : vector<32x1xf32>
    %118 = math.rsqrt %117 : vector<32x1xf32>
    %119 = vector.broadcast %118 : vector<32x1xf32> to vector<32x256xf32>
    %120 = arith.mulf %115, %119 : vector<32x256xf32>
    %121 = vector.broadcast %93 : vector<1x256xf32> to vector<32x256xf32>
    %122 = arith.mulf %120, %121 : vector<32x256xf32>
    %123 = vector.broadcast %94 : vector<1x256xf32> to vector<32x256xf32>
    %124 = arith.addf %122, %123 : vector<32x256xf32>
    %cst_56 = arith.constant 0.000000e+00 : f32
    %125 = vector.broadcast %cst_56 : f32 to vector<32x256xf32>
    %126 = arith.maximumf %124, %125 : vector<32x256xf32>
    %127 = arith.truncf %126 : vector<32x256xf32> to vector<32x256xbf16>
    %c0_57 = arith.constant 0 : index
    %c0_58 = arith.constant 0 : index
    %128 = vector.load %arg22[%c0_57, %c0_58] : memref<256x256xbf16, #tpu.memory_space<vmem>>, vector<256x256xbf16>
    %cst_59 = arith.constant dense<0.000000e+00> : vector<32x256xf32>
    %129 = tpu.matmul %127, %128, %cst_59 {dimension_numbers = #tpu.dot_dimension_numbers<[1], [0], [0], [1], [0, 0, 1, 1], [], []>} : vector<32x256xbf16>, vector<256x256xbf16>, vector<32x256xf32> -> vector<32x256xf32>
    %130 = vector.broadcast %95 : vector<1x256xf32> to vector<32x256xf32>
    %131 = arith.addf %129, %130 : vector<32x256xf32>
    %cst_60 = arith.constant dense<0.000000e+00> : vector<32xf32>
    %132 = vector.multi_reduction <add>, %131, %cst_60 [1] : vector<32x256xf32> to vector<32xf32>
    %133 = vector.shape_cast %132 : vector<32xf32> to vector<32x1xf32>
    %cst_61 = arith.constant 2.560000e+02 : f32
    %134 = vector.broadcast %cst_61 : f32 to vector<32x1xf32>
    %135 = arith.divf %133, %134 : vector<32x1xf32>
    %136 = arith.mulf %131, %131 : vector<32x256xf32>
    %cst_62 = arith.constant dense<0.000000e+00> : vector<32xf32>
    %137 = vector.multi_reduction <add>, %136, %cst_62 [1] : vector<32x256xf32> to vector<32xf32>
    %138 = vector.shape_cast %137 : vector<32xf32> to vector<32x1xf32>
    %cst_63 = arith.constant 2.560000e+02 : f32
    %139 = vector.broadcast %cst_63 : f32 to vector<32x1xf32>
    %140 = arith.divf %138, %139 : vector<32x1xf32>
    %141 = arith.mulf %135, %135 : vector<32x1xf32>
    %142 = arith.subf %140, %141 : vector<32x1xf32>
    %cst_64 = arith.constant 0.000000e+00 : f32
    %143 = vector.broadcast %cst_64 : f32 to vector<32x1xf32>
    %144 = arith.maximumf %142, %143 : vector<32x1xf32>
    %145 = vector.broadcast %135 : vector<32x1xf32> to vector<32x256xf32>
    %146 = arith.subf %131, %145 : vector<32x256xf32>
    %cst_65 = arith.constant 9.99999974E-6 : f32
    %147 = vector.broadcast %cst_65 : f32 to vector<32x1xf32>
    %148 = arith.addf %144, %147 : vector<32x1xf32>
    %149 = math.rsqrt %148 : vector<32x1xf32>
    %150 = vector.broadcast %149 : vector<32x1xf32> to vector<32x256xf32>
    %151 = arith.mulf %146, %150 : vector<32x256xf32>
    %152 = vector.broadcast %96 : vector<1x256xf32> to vector<32x256xf32>
    %153 = arith.mulf %151, %152 : vector<32x256xf32>
    %154 = vector.broadcast %97 : vector<1x256xf32> to vector<32x256xf32>
    %155 = arith.addf %153, %154 : vector<32x256xf32>
    %cst_66 = arith.constant 0.000000e+00 : f32
    %156 = vector.broadcast %cst_66 : f32 to vector<32x256xf32>
    %157 = arith.maximumf %155, %156 : vector<32x256xf32>
    %158 = arith.truncf %157 : vector<32x256xf32> to vector<32x256xbf16>
    %c0_67 = arith.constant 0 : index
    %c0_68 = arith.constant 0 : index
    %159 = vector.load %arg23[%c0_67, %c0_68] : memref<256x128xbf16, #tpu.memory_space<vmem>>, vector<256x128xbf16>
    %cst_69 = arith.constant dense<0.000000e+00> : vector<32x128xf32>
    %160 = tpu.matmul %158, %159, %cst_69 {dimension_numbers = #tpu.dot_dimension_numbers<[1], [0], [0], [1], [0, 0, 1, 1], [], []>} : vector<32x256xbf16>, vector<256x128xbf16>, vector<32x128xf32> -> vector<32x128xf32>
    %161 = vector.broadcast %98 : vector<1x128xf32> to vector<32x128xf32>
    %162 = arith.addf %160, %161 : vector<32x128xf32>
    %163 = math.tanh %162 : vector<32x128xf32>
    %164 = vector.extract_strided_slice %163 {offsets = [0, 0], sizes = [32, 1], strides = [1, 1]} : vector<32x128xf32> to vector<32x1xf32>
    %165 = vector.shape_cast %164 : vector<32x1xf32> to vector<4x8x1xf32>
    %c0_70 = arith.constant 0 : index
    %c0_71 = arith.constant 0 : index
    %c0_72 = arith.constant 0 : index
    %166 = vector.load %arg24[%c0_70, %c0_71, %c0_72] : memref<4x8x1xf32, #tpu.memory_space<vmem>>, vector<4x8x1xf32>
    tpu.vector_store %arg24[%c0_70, %c0_71, %c0_72], %165 {strides = array<i32>} : memref<4x8x1xf32, #tpu.memory_space<vmem>>, vector<4x8x1xf32>,
    return
  }
  func.func @transform_0(%arg0: i32, %arg1: memref<8xi32, #tpu.memory_space<smem>>, %arg2: memref<8xi32, #tpu.memory_space<smem>>) -> (i32, i32, i32) {
    %c0_i32 = arith.constant 0 : i32
    %c0_i32_0 = arith.constant 0 : i32
    %c0_i32_1 = arith.constant 0 : i32
    return %c0_i32, %arg0, %c0_i32_0 : i32, i32, i32
  }
  func.func @transform_1(%arg0: i32, %arg1: memref<8xi32, #tpu.memory_space<smem>>, %arg2: memref<8xi32, #tpu.memory_space<smem>>) -> (i32, i32, i32) {
    %c0_i32 = arith.constant 0 : i32
    %c0_i32_0 = arith.constant 0 : i32
    %c0_i32_1 = arith.constant 0 : i32
    return %c0_i32, %arg0, %c0_i32_0 : i32, i32, i32
  }
  func.func @transform_2(%arg0: i32, %arg1: memref<8xi32, #tpu.memory_space<smem>>, %arg2: memref<8xi32, #tpu.memory_space<smem>>) -> (i32, i32, i32) {
    %c0_i32 = arith.constant 0 : i32
    %c0_i32_0 = arith.constant 0 : i32
    %c0_i32_1 = arith.constant 0 : i32
    return %c0_i32, %arg0, %c0_i32_0 : i32, i32, i32
  }
  func.func @transform_3(%arg0: i32, %arg1: memref<8xi32, #tpu.memory_space<smem>>, %arg2: memref<8xi32, #tpu.memory_space<smem>>) -> (i32, i32) {
    %c0_i32 = arith.constant 0 : i32
    %c0_i32_0 = arith.constant 0 : i32
    %c0_i32_1 = arith.constant 0 : i32
    return %c0_i32, %c0_i32_0 : i32, i32
  }
  func.func @transform_4(%arg0: i32, %arg1: memref<8xi32, #tpu.memory_space<smem>>, %arg2: memref<8xi32, #tpu.memory_space<smem>>) -> (i32, i32) {
    %c0_i32 = arith.constant 0 : i32
    %c0_i32_0 = arith.constant 0 : i32
    %c0_i32_1 = arith.constant 0 : i32
    return %c0_i32, %c0_i32_0 : i32, i32
  }
  func.func @transform_5(%arg0: i32, %arg1: memref<8xi32, #tpu.memory_space<smem>>, %arg2: memref<8xi32, #tpu.memory_space<smem>>) -> (i32, i32) {
    %c0_i32 = arith.constant 0 : i32
    %c0_i32_0 = arith.constant 0 : i32
    %c0_i32_1 = arith.constant 0 : i32
    return %c0_i32, %c0_i32_0 : i32, i32
  }
  func.func @transform_6(%arg0: i32, %arg1: memref<8xi32, #tpu.memory_space<smem>>, %arg2: memref<8xi32, #tpu.memory_space<smem>>) -> (i32, i32) {
    %c0_i32 = arith.constant 0 : i32
    %c0_i32_0 = arith.constant 0 : i32
    %c0_i32_1 = arith.constant 0 : i32
    return %c0_i32, %c0_i32_0 : i32, i32
  }
  func.func @transform_7(%arg0: i32, %arg1: memref<8xi32, #tpu.memory_space<smem>>, %arg2: memref<8xi32, #tpu.memory_space<smem>>) -> (i32, i32) {
    %c0_i32 = arith.constant 0 : i32
    %c0_i32_0 = arith.constant 0 : i32
    %c0_i32_1 = arith.constant 0 : i32
    return %c0_i32, %c0_i32_0 : i32, i32
  }
  func.func @transform_8(%arg0: i32, %arg1: memref<8xi32, #tpu.memory_space<smem>>, %arg2: memref<8xi32, #tpu.memory_space<smem>>) -> (i32, i32) {
    %c0_i32 = arith.constant 0 : i32
    %c0_i32_0 = arith.constant 0 : i32
    %c0_i32_1 = arith.constant 0 : i32
    return %c0_i32, %c0_i32_0 : i32, i32
  }
  func.func @transform_9(%arg0: i32, %arg1: memref<8xi32, #tpu.memory_space<smem>>, %arg2: memref<8xi32, #tpu.memory_space<smem>>) -> (i32, i32) {
    %c0_i32 = arith.constant 0 : i32
    %c0_i32_0 = arith.constant 0 : i32
    %c0_i32_1 = arith.constant 0 : i32
    return %c0_i32, %c0_i32_0 : i32, i32
  }
  func.func @transform_10(%arg0: i32, %arg1: memref<8xi32, #tpu.memory_space<smem>>, %arg2: memref<8xi32, #tpu.memory_space<smem>>) -> (i32, i32) {
    %c0_i32 = arith.constant 0 : i32
    %c0_i32_0 = arith.constant 0 : i32
    %c0_i32_1 = arith.constant 0 : i32
    return %c0_i32, %c0_i32_0 : i32, i32
  }
  func.func @transform_11(%arg0: i32, %arg1: memref<8xi32, #tpu.memory_space<smem>>, %arg2: memref<8xi32, #tpu.memory_space<smem>>) -> (i32, i32) {
    %c0_i32 = arith.constant 0 : i32
    %c0_i32_0 = arith.constant 0 : i32
    %c0_i32_1 = arith.constant 0 : i32
    return %c0_i32, %c0_i32_0 : i32, i32
  }
  func.func @transform_12(%arg0: i32, %arg1: memref<8xi32, #tpu.memory_space<smem>>, %arg2: memref<8xi32, #tpu.memory_space<smem>>) -> (i32, i32) {
    %c0_i32 = arith.constant 0 : i32
    %c0_i32_0 = arith.constant 0 : i32
    %c0_i32_1 = arith.constant 0 : i32
    return %c0_i32, %c0_i32_0 : i32, i32
  }
  func.func @transform_13(%arg0: i32, %arg1: memref<8xi32, #tpu.memory_space<smem>>, %arg2: memref<8xi32, #tpu.memory_space<smem>>) -> (i32, i32) {
    %c0_i32 = arith.constant 0 : i32
    %c0_i32_0 = arith.constant 0 : i32
    %c0_i32_1 = arith.constant 0 : i32
    return %c0_i32, %c0_i32_0 : i32, i32
  }
  func.func @transform_14(%arg0: i32, %arg1: memref<8xi32, #tpu.memory_space<smem>>, %arg2: memref<8xi32, #tpu.memory_space<smem>>) -> (i32, i32) {
    %c0_i32 = arith.constant 0 : i32
    %c0_i32_0 = arith.constant 0 : i32
    %c0_i32_1 = arith.constant 0 : i32
    return %c0_i32, %c0_i32_0 : i32, i32
  }
  func.func @transform_15(%arg0: i32, %arg1: memref<8xi32, #tpu.memory_space<smem>>, %arg2: memref<8xi32, #tpu.memory_space<smem>>) -> (i32, i32) {
    %c0_i32 = arith.constant 0 : i32
    %c0_i32_0 = arith.constant 0 : i32
    %c0_i32_1 = arith.constant 0 : i32
    return %c0_i32, %c0_i32_0 : i32, i32
  }
  func.func @transform_16(%arg0: i32, %arg1: memref<8xi32, #tpu.memory_space<smem>>, %arg2: memref<8xi32, #tpu.memory_space<smem>>) -> (i32, i32) {
    %c0_i32 = arith.constant 0 : i32
    %c0_i32_0 = arith.constant 0 : i32
    %c0_i32_1 = arith.constant 0 : i32
    return %c0_i32, %c0_i32_0 : i32, i32
  }
  func.func @transform_17(%arg0: i32, %arg1: memref<8xi32, #tpu.memory_space<smem>>, %arg2: memref<8xi32, #tpu.memory_space<smem>>) -> (i32, i32) {
    %c0_i32 = arith.constant 0 : i32
    %c0_i32_0 = arith.constant 0 : i32
    %c0_i32_1 = arith.constant 0 : i32
    return %c0_i32, %c0_i32_0 : i32, i32
  }
  func.func @transform_18(%arg0: i32, %arg1: memref<8xi32, #tpu.memory_space<smem>>, %arg2: memref<8xi32, #tpu.memory_space<smem>>) -> (i32, i32) {
    %c0_i32 = arith.constant 0 : i32
    %c0_i32_0 = arith.constant 0 : i32
    %c0_i32_1 = arith.constant 0 : i32
    return %c0_i32, %c0_i32_0 : i32, i32
  }
  func.func @transform_19(%arg0: i32, %arg1: memref<8xi32, #tpu.memory_space<smem>>, %arg2: memref<8xi32, #tpu.memory_space<smem>>) -> (i32, i32) {
    %c0_i32 = arith.constant 0 : i32
    %c0_i32_0 = arith.constant 0 : i32
    %c0_i32_1 = arith.constant 0 : i32
    return %c0_i32, %c0_i32_0 : i32, i32
  }
  func.func @transform_20(%arg0: i32, %arg1: memref<8xi32, #tpu.memory_space<smem>>, %arg2: memref<8xi32, #tpu.memory_space<smem>>) -> (i32, i32) {
    %c0_i32 = arith.constant 0 : i32
    %c0_i32_0 = arith.constant 0 : i32
    %c0_i32_1 = arith.constant 0 : i32
    return %c0_i32, %c0_i32_0 : i32, i32
  }
  func.func @transform_21(%arg0: i32, %arg1: memref<8xi32, #tpu.memory_space<smem>>, %arg2: memref<8xi32, #tpu.memory_space<smem>>) -> (i32, i32, i32) {
    %c0_i32 = arith.constant 0 : i32
    %c0_i32_0 = arith.constant 0 : i32
    %c0_i32_1 = arith.constant 0 : i32
    return %c0_i32, %arg0, %c0_i32_0 : i32, i32, i32
  }
}

</mosaic_0001>

<llo_original>
// kernel: gnn_forward.1
$region0: #{gnn_forward.1}
  #allocation0 [shape = 'u32[]', space=smem, size = 0x4, offset = 0x4, fixed_abs, tag = 'smem constant byte address 0x4 - core index']
  #allocation1 [shape = 'u32[144,128]{1,0:T(1,128)}', space=vmem, size = 0x12000, scoped, tag = 'internal scratch']
  #allocation2 [shape = 'f32[32,64]{1,0:T(8,128)}', space=vmem, size = 0x4000, scoped, tag = 'scratch operand']
  #allocation3 [shape = 'f32[64,64]{1,0:T(8,128)}', space=vmem, size = 0x8000, scoped, tag = 'scratch operand']
  #allocation4 [shape = 'f32[64,64]{1,0:T(8,128)}', space=vmem, size = 0x8000, scoped, tag = 'scratch operand']
  #allocation5 [shape = 'f32[32,64]{1,0:T(8,128)}', space=vmem, size = 0x4000, scoped, tag = 'scratch operand']
  #allocation6 [shape = 'f32[64,256]{1,0:T(8,128)}', space=vmem, size = 0x10000, scoped, tag = 'scratch operand']
  #allocation7 [shape = 's32[1]{0}', space=sflag, size = 0x4, scoped, tag = 'scoped memory for gnn_forward.1']
  #allocation8 [shape = 'u8[512]{0}', space=smem, size = 0x200, scoped, tag = 'prefetched SMEM operand 0']
  #allocation9 [shape = 'u8[512]{0}', space=smem, size = 0x200, scoped, tag = 'prefetched SMEM operand 1']
  %s0 = inlined_call_operand.vmem [shape: s32[8], index: 0, kind: input, shape index: {}]
  %s1 = inlined_call_operand.vmem [shape: s32[8], index: 1, kind: input, shape index: {}]
  %s2 = inlined_call_operand.vmem [shape: bf16[4,8,20], index: 2, kind: input, shape index: {}]
  %s3 = inlined_call_operand.vmem [shape: bf16[8,8,21], index: 3, kind: input, shape index: {}]
  %s4 = inlined_call_operand.vmem [shape: f32[4,8,1], index: 4, kind: input, shape index: {}]
  %s5 = inlined_call_operand.hbm [shape: bf16[20,256], index: 5, kind: input, shape index: {}]
  %s6 = inlined_call_operand.hbm [shape: f32[8,256], index: 6, kind: input, shape index: {}]
  %s7 = inlined_call_operand.vmem [shape: bf16[256,256], index: 7, kind: input, shape index: {}]
  %s8 = inlined_call_operand.vmem [shape: bf16[256,64], index: 8, kind: input, shape index: {}]
  %s9 = inlined_call_operand.hbm [shape: bf16[64,256], index: 9, kind: input, shape index: {}]
  %s10 = inlined_call_operand.hbm [shape: bf16[21,256], index: 10, kind: input, shape index: {}]
  %s11 = inlined_call_operand.hbm [shape: f32[8,256], index: 11, kind: input, shape index: {}]
  %s12 = inlined_call_operand.vmem [shape: bf16[256,256], index: 12, kind: input, shape index: {}]
  %s13 = inlined_call_operand.vmem [shape: bf16[256,64], index: 13, kind: input, shape index: {}]
  %s14 = inlined_call_operand.hbm [shape: bf16[64,256], index: 14, kind: input, shape index: {}]
  %s15 = inlined_call_operand.hbm [shape: bf16[64,256], index: 15, kind: input, shape index: {}]
  %s16 = inlined_call_operand.vmem [shape: f32[8,256], index: 16, kind: input, shape index: {}]
  %s17 = inlined_call_operand.vmem [shape: bf16[256,256], index: 17, kind: input, shape index: {}]
  %s18 = inlined_call_operand.vmem [shape: bf16[256,64], index: 18, kind: input, shape index: {}]
  %s19 = inlined_call_operand.hbm [shape: bf16[64,256], index: 19, kind: input, shape index: {}]
  %s20 = inlined_call_operand.hbm [shape: f32[8,256], index: 20, kind: input, shape index: {}]
  %s21 = inlined_call_operand.vmem [shape: bf16[256,256], index: 21, kind: input, shape index: {}]
  %s22 = inlined_call_operand.vmem [shape: bf16[256,128], index: 22, kind: input, shape index: {}]
  %s23 = inlined_call_operand.vmem [shape: f32[4,8,1], index: 23, kind: output, shape index: {}]
  %s24 = sld [smem:[#allocation0]]
  $region151: #{gnn_forward.1} parent=0
    _
  %s26 = ssub.s32 1, %s24
  %s27 = scalar_select 0, %s26, %s24
  %s28 = sshll.u32 %s0, 4
  %s29 = int_to_ptr.vmem [resolvable:$true] %s28
  %31 = dma.vmem_to_smem %s29, 16, [#allocation8], [#allocation7]
  %s32 = sshll.u32 %s1, 4
  %s33 = int_to_ptr.vmem [resolvable:$true] %s32
  %35 = dma.vmem_to_smem %s33, 16, [#allocation9], [#allocation7]
  %36 = dma.done [#allocation7], 32
  %37 = sfence
  $region1: #{gnn_forward.1} parent=0
    #allocation10 [shape = 'u8[12288]{0}', space=vmem, size = 0x3000, scoped, tag = 'input window, operand 5, single buffered']
    #allocation11 [shape = 's32[1]{0}', space=sflag, size = 0x4, scoped, tag = 'scoped memory for gnn_forward.1']
    #allocation12 [shape = 'u8[8192]{0}', space=vmem, size = 0x2000, scoped, tag = 'input window, operand 6, single buffered']
    #allocation13 [shape = 's32[1]{0}', space=sflag, size = 0x4, scoped, tag = 'scoped memory for gnn_forward.1']
    #allocation14 [shape = 'u8[32768]{0}', space=vmem, size = 0x8000, scoped, tag = 'input window, operand 9, single buffered']
    #allocation15 [shape = 'u8[12288]{0}', space=vmem, size = 0x3000, scoped, tag = 'input window, operand 10, single buffered']
    #allocation16 [shape = 's32[1]{0}', space=sflag, size = 0x4, scoped, tag = 'scoped memory for gnn_forward.1']
    #allocation17 [shape = 'u8[8192]{0}', space=vmem, size = 0x2000, scoped, tag = 'input window, operand 11, single buffered']
    #allocation18 [shape = 'u8[32768]{0}', space=vmem, size = 0x8000, scoped, tag = 'input window, operand 14, single buffered']
    #allocation19 [shape = 's32[1]{0}', space=sflag, size = 0x4, scoped, tag = 'scoped memory for gnn_forward.1']
    #allocation20 [shape = 'u8[32768]{0}', space=vmem, size = 0x8000, scoped, tag = 'input window, operand 15, single buffered']
    #allocation21 [shape = 'u8[32768]{0}', space=vmem, size = 0x8000, scoped, tag = 'input window, operand 19, single buffered']
    #allocation22 [shape = 's32[1]{0}', space=sflag, size = 0x4, scoped, tag = 'scoped memory for gnn_forward.1']
    #allocation23 [shape = 'u8[8192]{0}', space=vmem, size = 0x2000, scoped, tag = 'input window, operand 20, single buffered']
    %38 = vsyncpa [#allocation11], 0
    %39 = vsyncpa [#allocation13], 0
    %40 = vsyncpa [#allocation16], 0
    %41 = vsyncpa [#allocation19], 0
    %42 = vsyncpa [#allocation22], 0
    // Predicated region
    $region2: #{gnn_forward.1} parent=1 // pred_check
      _
    $region3: #{gnn_forward.1} parent=1 // pred_check_branch
      %44 = sbr.rel (0) target = $region5
    $region4: #{gnn_forward.1} parent=1 // pred_region
      _
    $region5: #{gnn_forward.1} parent=1 // pred_fallthru
      _
    // Predicated region
    $region6: #{gnn_forward.1} parent=1 // pred_check
      _
    $region7: #{gnn_forward.1} parent=1 // pred_check_branch
      %46 = sbr.rel (0) target = $region9
    $region8: #{gnn_forward.1} parent=1 // pred_region
      _
    $region9: #{gnn_forward.1} parent=1 // pred_fallthru
      _
    // Predicated region
    $region10: #{gnn_forward.1} parent=1 // pred_check
      _
    $region11: #{gnn_forward.1} parent=1 // pred_check_branch
      %48 = sbr.rel (0) target = $region13
    $region12: #{gnn_forward.1} parent=1 // pred_region
      _
    $region13: #{gnn_forward.1} parent=1 // pred_fallthru
      _
    // Predicated region
    $region14: #{gnn_forward.1} parent=1 // pred_check
      _
    $region15: #{gnn_forward.1} parent=1 // pred_check_branch
      %50 = sbr.rel (0) target = $region17
    $region16: #{gnn_forward.1} parent=1 // pred_region
      %s52 = ssub.s32 384, 384
      %53 = vsyncadd [#allocation11], %s52
      %s54 = sshll.u32 [#allocation10], 4
      %s55 = int_to_ptr.vmem [resolvable:$true] %s54
      %60 = dma.hbm_to_vmem [thread:$0]  %s5, 384, %s55, [#allocation11], 128, 128, 8
    $region17: #{gnn_forward.1} parent=1 // pred_fallthru
      _
    // Predicated region
    $region18: #{gnn_forward.1} parent=1 // pred_check
      _
    $region19: #{gnn_forward.1} parent=1 // pred_check_branch
      %62 = sbr.rel (0) target = $region21
    $region20: #{gnn_forward.1} parent=1 // pred_region
      %s64 = ssub.s32 256, 256
      %65 = vsyncadd [#allocation13], %s64
      %s67 = sshll.u32 [#allocation12], 4
      %s68 = int_to_ptr.vmem [resolvable:$true] %s67
      %70 = dma.hbm_to_vmem [thread:$0]  %s6, 256, %s68, [#allocation13]
    $region21: #{gnn_forward.1} parent=1 // pred_fallthru
      _
    // Predicated region
    $region22: #{gnn_forward.1} parent=1 // pred_check
      _
    $region23: #{gnn_forward.1} parent=1 // pred_check_branch
      %72 = sbr.rel (0) target = $region25
    $region24: #{gnn_forward.1} parent=1 // pred_region
      _
    $region25: #{gnn_forward.1} parent=1 // pred_fallthru
      _
    // Predicated region
    $region26: #{gnn_forward.1} parent=1 // pred_check
      _
    $region27: #{gnn_forward.1} parent=1 // pred_check_branch
      %74 = sbr.rel (0) target = $region29
    $region28: #{gnn_forward.1} parent=1 // pred_region
      _
    $region29: #{gnn_forward.1} parent=1 // pred_fallthru
      _
    // Predicated region
    $region30: #{gnn_forward.1} parent=1 // pred_check
      _
    $region31: #{gnn_forward.1} parent=1 // pred_check_branch
      %76 = sbr.rel (0) target = $region33
    $region32: #{gnn_forward.1} parent=1 // pred_region
      %s78 = ssub.s32 1024, 1024
      %79 = vsyncadd [#allocation13], %s78
      %s80 = sshll.u32 [#allocation14], 4
      %s81 = int_to_ptr.vmem [resolvable:$true] %s80
      %86 = dma.hbm_to_vmem [thread:$0]  %s9, 1024, %s81, [#allocation13], 128, 128, 8
    $region33: #{gnn_forward.1} parent=1 // pred_fallthru
      _
    // Predicated region
    $region34: #{gnn_forward.1} parent=1 // pred_check
      _
    $region35: #{gnn_forward.1} parent=1 // pred_check_branch
      %88 = sbr.rel (0) target = $region37
    $region36: #{gnn_forward.1} parent=1 // pred_region
      %s90 = ssub.s32 384, 384
      %91 = vsyncadd [#allocation16], %s90
      %s92 = sshll.u32 [#allocation15], 4
      %s93 = int_to_ptr.vmem [resolvable:$true] %s92
      %98 = dma.hbm_to_vmem [thread:$0]  %s10, 384, %s93, [#allocation16], 128, 128, 8
    $region37: #{gnn_forward.1} parent=1 // pred_fallthru
      _
    // Predicated region
    $region38: #{gnn_forward.1} parent=1 // pred_check
      _
    $region39: #{gnn_forward.1} parent=1 // pred_check_branch
      %100 = sbr.rel (0) target = $region41
    $region40: #{gnn_forward.1} parent=1 // pred_region
      %s102 = ssub.s32 256, 256
      %103 = vsyncadd [#allocation16], %s102
      %s105 = sshll.u32 [#allocation17], 4
      %s106 = int_to_ptr.vmem [resolvable:$true] %s105
      %108 = dma.hbm_to_vmem [thread:$0]  %s11, 256, %s106, [#allocation16]
    $region41: #{gnn_forward.1} parent=1 // pred_fallthru
      _
    // Predicated region
    $region42: #{gnn_forward.1} parent=1 // pred_check
      _
    $region43: #{gnn_forward.1} parent=1 // pred_check_branch
      %110 = sbr.rel (0) target = $region45
    $region44: #{gnn_forward.1} parent=1 // pred_region
      _
    $region45: #{gnn_forward.1} parent=1 // pred_fallthru
      _
    // Predicated region
    $region46: #{gnn_forward.1} parent=1 // pred_check
      _
    $region47: #{gnn_forward.1} parent=1 // pred_check_branch
      %112 = sbr.rel (0) target = $region49
    $region48: #{gnn_forward.1} parent=1 // pred_region
      _
    $region49: #{gnn_forward.1} parent=1 // pred_fallthru
      _
    // Predicated region
    $region50: #{gnn_forward.1} parent=1 // pred_check
      _
    $region51: #{gnn_forward.1} parent=1 // pred_check_branch
      %114 = sbr.rel (0) target = $region53
    $region52: #{gnn_forward.1} parent=1 // pred_region
      %s116 = ssub.s32 1024, 1024
      %117 = vsyncadd [#allocation19], %s116
      %s118 = sshll.u32 [#allocation18], 4
      %s119 = int_to_ptr.vmem [resolvable:$true] %s118
      %124 = dma.hbm_to_vmem [thread:$0]  %s14, 1024, %s119, [#allocation19], 128, 128, 8
    $region53: #{gnn_forward.1} parent=1 // pred_fallthru
      _
    // Predicated region
    $region54: #{gnn_forward.1} parent=1 // pred_check
      _
    $region55: #{gnn_forward.1} parent=1 // pred_check_branch
      %126 = sbr.rel (0) target = $region57
    $region56: #{gnn_forward.1} parent=1 // pred_region
      %s128 = ssub.s32 1024, 1024
      %129 = vsyncadd [#allocation19], %s128
      %s130 = sshll.u32 [#allocation20], 4
      %s131 = int_to_ptr.vmem [resolvable:$true] %s130
      %136 = dma.hbm_to_vmem [thread:$0]  %s15, 1024, %s131, [#allocation19], 128, 128, 8
    $region57: #{gnn_forward.1} parent=1 // pred_fallthru
      _
    // Predicated region
    $region58: #{gnn_forward.1} parent=1 // pred_check
      _
    $region59: #{gnn_forward.1} parent=1 // pred_check_branch
      %138 = sbr.rel (0) target = $region61
    $region60: #{gnn_forward.1} parent=1 // pred_region
      _
    $region61: #{gnn_forward.1} parent=1 // pred_fallthru
      _
    // Predicated region
    $region62: #{gnn_forward.1} parent=1 // pred_check
      _
    $region63: #{gnn_forward.1} parent=1 // pred_check_branch
      %140 = sbr.rel (0) target = $region65
    $region64: #{gnn_forward.1} parent=1 // pred_region
      _
    $region65: #{gnn_forward.1} parent=1 // pred_fallthru
      _
    // Predicated region
    $region66: #{gnn_forward.1} parent=1 // pred_check
      _
    $region67: #{gnn_forward.1} parent=1 // pred_check_branch
      %142 = sbr.rel (0) target = $region69
    $region68: #{gnn_forward.1} parent=1 // pred_region
      _
    $region69: #{gnn_forward.1} parent=1 // pred_fallthru
      _
    // Predicated region
    $region70: #{gnn_forward.1} parent=1 // pred_check
      _
    $region71: #{gnn_forward.1} parent=1 // pred_check_branch
      %144 = sbr.rel (0) target = $region73
    $region72: #{gnn_forward.1} parent=1 // pred_region
      %s146 = ssub.s32 1024, 1024
      %147 = vsyncadd [#allocation22], %s146
      %s148 = sshll.u32 [#allocation21], 4
      %s149 = int_to_ptr.vmem [resolvable:$true] %s148
      %154 = dma.hbm_to_vmem [thread:$0]  %s19, 1024, %s149, [#allocation22], 128, 128, 8
    $region73: #{gnn_forward.1} parent=1 // pred_fallthru
      _
    // Predicated region
    $region74: #{gnn_forward.1} parent=1 // pred_check
      _
    $region75: #{gnn_forward.1} parent=1 // pred_check_branch
      %156 = sbr.rel (0) target = $region77
    $region76: #{gnn_forward.1} parent=1 // pred_region
      %s158 = ssub.s32 256, 256
      %159 = vsyncadd [#allocation22], %s158
      %s161 = sshll.u32 [#allocation23], 4
      %s162 = int_to_ptr.vmem [resolvable:$true] %s161
      %164 = dma.hbm_to_vmem [thread:$0]  %s20, 256, %s162, [#allocation22]
    $region77: #{gnn_forward.1} parent=1 // pred_fallthru
      _
    // Predicated region
    $region78: #{gnn_forward.1} parent=1 // pred_check
      _
    $region79: #{gnn_forward.1} parent=1 // pred_check_branch
      %166 = sbr.rel (0) target = $region81
    $region80: #{gnn_forward.1} parent=1 // pred_region
      _
    $region81: #{gnn_forward.1} parent=1 // pred_fallthru
      _
    // Predicated region
    $region82: #{gnn_forward.1} parent=1 // pred_check
      _
    $region83: #{gnn_forward.1} parent=1 // pred_check_branch
      %168 = sbr.rel (0) target = $region85
    $region84: #{gnn_forward.1} parent=1 // pred_region
      _
    $region85: #{gnn_forward.1} parent=1 // pred_fallthru
      _
    // Predicated region
    $region86: #{gnn_forward.1} parent=1 // pred_check
      _
    $region87: #{gnn_forward.1} parent=1 // pred_check_branch
      %170 = sbr.rel (0) target = $region89
    $region88: #{gnn_forward.1} parent=1 // pred_region
      %171 = dma.done [#allocation11], 384
    $region89: #{gnn_forward.1} parent=1 // pred_fallthru
      _
    // Predicated region
    $region90: #{gnn_forward.1} parent=1 // pred_check
      _
    $region91: #{gnn_forward.1} parent=1 // pred_check_branch
      %173 = sbr.rel (0) target = $region93
    $region92: #{gnn_forward.1} parent=1 // pred_region
      %174 = dma.done [#allocation13], 256
    $region93: #{gnn_forward.1} parent=1 // pred_fallthru
      _
    // Predicated region
    $region94: #{gnn_forward.1} parent=1 // pred_check
      _
    $region95: #{gnn_forward.1} parent=1 // pred_check_branch
      %176 = sbr.rel (0) target = $region97
    $region96: #{gnn_forward.1} parent=1 // pred_region
      %177 = dma.done [#allocation13], 1024
    $region97: #{gnn_forward.1} parent=1 // pred_fallthru
      _
    // Predicated region
    $region98: #{gnn_forward.1} parent=1 // pred_check
      _
    $region99: #{gnn_forward.1} parent=1 // pred_check_branch
      %179 = sbr.rel (0) target = $region101
    $region100: #{gnn_forward.1} parent=1 // pred_region
      %180 = dma.done [#allocation16], 384
    $region101: #{gnn_forward.1} parent=1 // pred_fallthru
      _
    // Predicated region
    $region102: #{gnn_forward.1} parent=1 // pred_check
      _
    $region103: #{gnn_forward.1} parent=1 // pred_check_branch
      %182 = sbr.rel (0) target = $region105
    $region104: #{gnn_forward.1} parent=1 // pred_region
      %183 = dma.done [#allocation16], 256
    $region105: #{gnn_forward.1} parent=1 // pred_fallthru
      _
    // Predicated region
    $region106: #{gnn_forward.1} parent=1 // pred_check
      _
    $region107: #{gnn_forward.1} parent=1 // pred_check_branch
      %185 = sbr.rel (0) target = $region109
    $region108: #{gnn_forward.1} parent=1 // pred_region
      %186 = dma.done [#allocation19], 1024
    $region109: #{gnn_forward.1} parent=1 // pred_fallthru
      _
    // Predicated region
    $region110: #{gnn_forward.1} parent=1 // pred_check
      _
    $region111: #{gnn_forward.1} parent=1 // pred_check_branch
      %188 = sbr.rel (0) target = $region113
    $region112: #{gnn_forward.1} parent=1 // pred_region
      %189 = dma.done [#allocation19], 1024
    $region113: #{gnn_forward.1} parent=1 // pred_fallthru
      _
    // Predicated region
    $region114: #{gnn_forward.1} parent=1 // pred_check
      _
    $region115: #{gnn_forward.1} parent=1 // pred_check_branch
      %191 = sbr.rel (0) target = $region117
    $region116: #{gnn_forward.1} parent=1 // pred_region
      %192 = dma.done [#allocation22], 1024
    $region117: #{gnn_forward.1} parent=1 // pred_fallthru
      _
    // Predicated region
    $region118: #{gnn_forward.1} parent=1 // pred_check
      _
    $region119: #{gnn_forward.1} parent=1 // pred_check_branch
      %194 = sbr.rel (0) target = $region121
    $region120: #{gnn_forward.1} parent=1 // pred_region
      %195 = dma.done [#allocation22], 256
    $region121: #{gnn_forward.1} parent=1 // pred_fallthru
      _
    %v197 = vld [vmem:[%s2] sm:$0xf]
    %v198 = vld [vmem:[%s2 + $0x4] sm:$0xf]
    %v199 = vld [vmem:[%s2 + $0x8] sm:$0xf]
    %v200 = vld [vmem:[%s2 + $0xc] sm:$0xf]
    %v201 = vld [vmem:[#allocation10] sm:$0xff]
    %v202 = vld [vmem:[#allocation10 + $0x8] sm:$0xff]
    %v203 = vld [vmem:[#allocation10 + $0x10] sm:$0x33]
    %v204 = vld [vmem:[#allocation12] sm:$0xff]
    %v205 = vld [vmem:[#allocation12 + $0x8] sm:$0xff]
    %v206 = vlaneseq
    %v207 = vshrl.u32 %v206, 7
    %v208 = vsub.s32 0, %v207
    %v209 = vrot.slane %v204, %v208
    %v210 = vlaneseq
    %v211 = vshrl.u32 %v210, 7
    %v212 = vsub.s32 0, %v211
    %v213 = vrot.slane %v205, %v212
    %v218 = vunpack.c.l.b16 %v197
    %v219 = vunpack.c.l.b16 %v198
    %v220 = vunpack.c.l.b16 %v199
    %v221 = vunpack.c.l.b16 %v200
    %v222 = vpack.c.b16 %v219, %v218
    %v223 = vpack.c.b16 %v221, %v220
    %v227 = vunpack.c.l.b16 %v201
    %v228 = vunpack.c.h.b16 %v201
    %v229 = vunpack.c.l.b16 %v202
    %v230 = vunpack.c.h.b16 %v202
    %v231 = vunpack.c.l.b16 %v203
    %v232 = vunpack.c.h.b16 %v203
    %v233 = vpack.c.b16 %v229, %v227
    %v234 = vpack.c.b16 %v230, %v228
    %v235 = vpack.c.b16 %v231, %v231
    %v236 = vpack.c.b16 %v232, %v232
    %vm239 = vcmask 162816
    %v241 = vsel %vm239, %v222, 0
    %v244 = vsel %vm239, %v223, 0
    %vm246 = vcmask 1041408
    %v248 = vsel %vm246, %v235, 0
    %v251 = vsel %vm246, %v236, 0
    %253 = vmatprep.subr.bf16.mxu0 %v234
    %254 = vmatpush1.bf16.msra.mxu0 %v233
    %255 = vmatprep.subr.bf16.mxu0 %v251
    %256 = vmatpush1.bf16.msra.mxu0 %v248
    %257 = vmatprep.subr.bf16.mxu0 0
    %258 = vmatpush1.bf16.msra.mxu0 0
    %259 = vmatprep.subr.bf16.mxu0 0
    %260 = vmatpush1.bf16.msra.mxu0 0
    %261 = vmatprep.subr.bf16.mxu0 0
    %262 = vmatpush1.bf16.msra.mxu0 0
    %263 = vmatprep.subr.bf16.mxu0 0
    %264 = vmatpush1.bf16.msra.mxu0 0
    %265 = vmatprep.subr.bf16.mxu0 0
    %266 = vmatpush1.bf16.msra.mxu0 0
    %267 = vmatprep.subr.bf16.mxu0 0
    %268 = vmatpush1.bf16.msra.mxu0 0
    %269 = vmatprep.subr.bf16.mxu0 0
    %270 = vmatpush1.bf16.msra.mxu0 0
    %271 = vmatprep.subr.bf16.mxu0 0
    %272 = vmatpush1.bf16.msra.mxu0 0
    %273 = vmatprep.subr.bf16.mxu0 0
    %274 = vmatpush1.bf16.msra.mxu0 0
    %275 = vmatprep.subr.bf16.mxu0 0
    %276 = vmatpush1.bf16.msra.mxu0 0
    %277 = vmatprep.subr.bf16.mxu0 0
    %278 = vmatpush1.bf16.msra.mxu0 0
    %279 = vmatprep.subr.bf16.mxu0 0
    %280 = vmatpush1.bf16.msra.mxu0 0
    %281 = vmatprep.subr.bf16.mxu0 0
    %282 = vmatpush1.bf16.msra.mxu0 0
    %283 = vmatprep.subr.bf16.mxu0 0
    %284 = vmatpush1.bf16.msra.mxu0 0
    %285 = vmatprep.mubr.bf16.mxu0 0
    %286 = vmatmul.mubr.bf16.gmra.mrb[0].mxu0 %v241
    %v287 = vpop.f32.mrb[0].mxu0
    %v288 = vadd.f32 %v209, %v287
    %v289 = vpop.f32.mrb[0].mxu0
    %v290 = vadd.f32 %v213, %v289
    %v291 = vpop.f32.mrb[0].mxu0
    %v292 = vadd.f32 %v209, %v291
    %v293 = vpop.f32.mrb[0].mxu0
    %v294 = vadd.f32 %v213, %v293
    %295 = vmatprep.mubr.bf16.mxu0 0
    %296 = vmatmul.mubr.bf16.gmra.mrb[0].mxu0 %v244
    %v297 = vpop.f32.mrb[0].mxu0
    %v298 = vadd.f32 %v209, %v297
    %v299 = vpop.f32.mrb[0].mxu0
    %v300 = vadd.f32 %v213, %v299
    %v301 = vpop.f32.mrb[0].mxu0
    %v302 = vadd.f32 %v209, %v301
    %v303 = vpop.f32.mrb[0].mxu0
    %v304 = vadd.f32 %v213, %v303
    %305 = vdwg.mxu0
    %v306 = vadd.f32 %v288, %v290
    %307 = vadd.xlane.f32.xlu0 %v306
    %v308 = vpop.xlane.xlu0 %307
    %v309 = vadd.f32 %v292, %v294
    %310 = vadd.xlane.f32.xlu0 %v309
    %v311 = vpop.xlane.xlu0 %310
    %v312 = vadd.f32 %v298, %v300
    %313 = vadd.xlane.f32.xlu0 %v312
    %v314 = vpop.xlane.xlu0 %313
    %v315 = vadd.f32 %v302, %v304
    %316 = vadd.xlane.f32.xlu0 %v315
    %v317 = vpop.xlane.xlu0 %316
    %v318 = vrcp.pop 256.0
    %v319 = vmul.f32 %v308, %v318
    %v320 = vmul.f32 %v311, %v318
    %v321 = vmul.f32 %v314, %v318
    %v322 = vmul.f32 %v317, %v318
    %v323 = vmul.f32 %v288, %v288
    %v324 = vmul.f32 %v290, %v290
    %v325 = vmul.f32 %v292, %v292
    %v326 = vmul.f32 %v294, %v294
    %v327 = vmul.f32 %v298, %v298
    %v328 = vmul.f32 %v300, %v300
    %v329 = vmul.f32 %v302, %v302
    %v330 = vmul.f32 %v304, %v304
    %v331 = vadd.f32 %v323, %v324
    %332 = vadd.xlane.f32.xlu0 %v331
    %v333 = vpop.xlane.xlu0 %332
    %v334 = vadd.f32 %v325, %v326
    %335 = vadd.xlane.f32.xlu0 %v334
    %v336 = vpop.xlane.xlu0 %335
    %v337 = vadd.f32 %v327, %v328
    %338 = vadd.xlane.f32.xlu0 %v337
    %v339 = vpop.xlane.xlu0 %338
    %v340 = vadd.f32 %v329, %v330
    %341 = vadd.xlane.f32.xlu0 %v340
    %v342 = vpop.xlane.xlu0 %341
    %v343 = vmul.f32 %v333, %v318
    %v344 = vmul.f32 %v336, %v318
    %v345 = vmul.f32 %v339, %v318
    %v346 = vmul.f32 %v342, %v318
    %v347 = vmul.f32 %v319, %v319
    %v348 = vmul.f32 %v320, %v320
    %v349 = vmul.f32 %v321, %v321
    %v350 = vmul.f32 %v322, %v322
    %v351 = vsub.f32 %v343, %v347
    %v352 = vsub.f32 %v344, %v348
    %v353 = vsub.f32 %v345, %v349
    %v354 = vsub.f32 %v346, %v350
    %v355 = vmax.f32 %v351, 0.0
    %v356 = vmax.f32 %v352, 0.0
    %v357 = vmax.f32 %v353, 0.0
    %v358 = vmax.f32 %v354, 0.0
    %v359 = vsub.f32 %v288, %v319
    %v360 = vsub.f32 %v290, %v319
    %v361 = vsub.f32 %v292, %v320
    %v362 = vsub.f32 %v294, %v320
    %v363 = vsub.f32 %v298, %v321
    %v364 = vsub.f32 %v300, %v321
    %v365 = vsub.f32 %v302, %v322
    %v366 = vsub.f32 %v304, %v322
    %v367 = vadd.f32 %v355, 1e-05
    %v368 = vadd.f32 %v356, 1e-05
    %v369 = vadd.f32 %v357, 1e-05
    %v370 = vadd.f32 %v358, 1e-05
    %v371 = vrsqrt.pop %v367
    %v372 = vrsqrt.pop %v368
    %v373 = vrsqrt.pop %v369
    %v374 = vrsqrt.pop %v370
    %v375 = vmul.f32 %v359, %v371
    %v376 = vmul.f32 %v360, %v371
    %v377 = vmul.f32 %v361, %v372
    %v378 = vmul.f32 %v362, %v372
    %v379 = vmul.f32 %v363, %v373
    %v380 = vmul.f32 %v364, %v373
    %v381 = vmul.f32 %v365, %v374
    %v382 = vmul.f32 %v366, %v374
    %v383 = vlaneseq
    %v384 = vshrl.u32 %v383, 7
    %v385 = vsub.s32 1, %v384
    %v386 = vrot.slane %v204, %v385
    %v387 = vlaneseq
    %v388 = vshrl.u32 %v387, 7
    %v389 = vsub.s32 1, %v388
    %v390 = vrot.slane %v205, %v389
    %v391 = vmul.f32 %v375, %v386
    %v392 = vmul.f32 %v376, %v390
    %v393 = vmul.f32 %v377, %v386
    %v394 = vmul.f32 %v378, %v390
    %v395 = vmul.f32 %v379, %v386
    %v396 = vmul.f32 %v380, %v390
    %v397 = vmul.f32 %v381, %v386
    %v398 = vmul.f32 %v382, %v390
    %v399 = vlaneseq
    %v400 = vshrl.u32 %v399, 7
    %v401 = vsub.s32 2, %v400
    %v402 = vrot.slane %v204, %v401
    %v403 = vlaneseq
    %v404 = vshrl.u32 %v403, 7
    %v405 = vsub.s32 2, %v404
    %v406 = vrot.slane %v205, %v405
    %v407 = vadd.f32 %v391, %v402
    %v408 = vadd.f32 %v392, %v406
    %v409 = vadd.f32 %v393, %v402
    %v410 = vadd.f32 %v394, %v406
    %v411 = vadd.f32 %v395, %v402
    %v412 = vadd.f32 %v396, %v406
    %v413 = vadd.f32 %v397, %v402
    %v414 = vadd.f32 %v398, %v406
    %v415 = vmax.f32 %v407, 0.0
    %v416 = vmax.f32 %v408, 0.0
    %v417 = vmax.f32 %v409, 0.0
    %v418 = vmax.f32 %v410, 0.0
    %v419 = vmax.f32 %v411, 0.0
    %v420 = vmax.f32 %v412, 0.0
    %v421 = vmax.f32 %v413, 0.0
    %v422 = vmax.f32 %v414, 0.0
    %v423 = vpack.c.bf16 %v417, %v415
    %v424 = vpack.c.bf16 %v418, %v416
    %v425 = vpack.c.bf16 %v421, %v419
    %v426 = vpack.c.bf16 %v422, %v420
    %v427 = vld [vmem:[%s7] sm:$0xff]
    %v428 = vld [vmem:[%s7 + $0x8] sm:$0xff]
    %v429 = vld [vmem:[%s7 + $0x10] sm:$0xff]
    %v430 = vld [vmem:[%s7 + $0x18] sm:$0xff]
    %v431 = vld [vmem:[%s7 + $0x20] sm:$0xff]
    %v432 = vld [vmem:[%s7 + $0x28] sm:$0xff]
    %v433 = vld [vmem:[%s7 + $0x30] sm:$0xff]
    %v434 = vld [vmem:[%s7 + $0x38] sm:$0xff]
    %v435 = vld [vmem:[%s7 + $0x40] sm:$0xff]
    %v436 = vld [vmem:[%s7 + $0x48] sm:$0xff]
    %v437 = vld [vmem:[%s7 + $0x50] sm:$0xff]
    %v438 = vld [vmem:[%s7 + $0x58] sm:$0xff]
    %v439 = vld [vmem:[%s7 + $0x60] sm:$0xff]
    %v440 = vld [vmem:[%s7 + $0x68] sm:$0xff]
    %v441 = vld [vmem:[%s7 + $0x70] sm:$0xff]
    %v442 = vld [vmem:[%s7 + $0x78] sm:$0xff]
    %v443 = vld [vmem:[%s7 + $0x80] sm:$0xff]
    %v444 = vld [vmem:[%s7 + $0x88] sm:$0xff]
    %v445 = vld [vmem:[%s7 + $0x90] sm:$0xff]
    %v446 = vld [vmem:[%s7 + $0x98] sm:$0xff]
    %v447 = vld [vmem:[%s7 + $0xa0] sm:$0xff]
    %v448 = vld [vmem:[%s7 + $0xa8] sm:$0xff]
    %v449 = vld [vmem:[%s7 + $0xb0] sm:$0xff]
    %v450 = vld [vmem:[%s7 + $0xb8] sm:$0xff]
    %v451 = vld [vmem:[%s7 + $0xc0] sm:$0xff]
    %v452 = vld [vmem:[%s7 + $0xc8] sm:$0xff]
    %v453 = vld [vmem:[%s7 + $0xd0] sm:$0xff]
    %v454 = vld [vmem:[%s7 + $0xd8] sm:$0xff]
    %v455 = vld [vmem:[%s7 + $0xe0] sm:$0xff]
    %v456 = vld [vmem:[%s7 + $0xe8] sm:$0xff]
    %v457 = vld [vmem:[%s7 + $0xf0] sm:$0xff]
    %v458 = vld [vmem:[%s7 + $0xf8] sm:$0xff]
    %v459 = vlaneseq
    %v460 = vshrl.u32 %v459, 7
    %v461 = vsub.s32 3, %v460
    %v462 = vrot.slane %v204, %v461
    %v463 = vlaneseq
    %v464 = vshrl.u32 %v463, 7
    %v465 = vsub.s32 3, %v464
    %v466 = vrot.slane %v205, %v465
    %v499 = vunpack.c.l.b16 %v427
    %v500 = vunpack.c.h.b16 %v427
    %v501 = vunpack.c.l.b16 %v428
    %v502 = vunpack.c.h.b16 %v428
    %v503 = vunpack.c.l.b16 %v429
    %v504 = vunpack.c.h.b16 %v429
    %v505 = vunpack.c.l.b16 %v430
    %v506 = vunpack.c.h.b16 %v430
    %v507 = vunpack.c.l.b16 %v431
    %v508 = vunpack.c.h.b16 %v431
    %v509 = vunpack.c.l.b16 %v432
    %v510 = vunpack.c.h.b16 %v432
    %v511 = vunpack.c.l.b16 %v433
    %v512 = vunpack.c.h.b16 %v433
    %v513 = vunpack.c.l.b16 %v434
    %v514 = vunpack.c.h.b16 %v434
    %v515 = vunpack.c.l.b16 %v435
    %v516 = vunpack.c.h.b16 %v435
    %v517 = vunpack.c.l.b16 %v436
    %v518 = vunpack.c.h.b16 %v436
    %v519 = vunpack.c.l.b16 %v437
    %v520 = vunpack.c.h.b16 %v437
    %v521 = vunpack.c.l.b16 %v438
    %v522 = vunpack.c.h.b16 %v438
    %v523 = vunpack.c.l.b16 %v439
    %v524 = vunpack.c.h.b16 %v439
    %v525 = vunpack.c.l.b16 %v440
    %v526 = vunpack.c.h.b16 %v440
    %v527 = vunpack.c.l.b16 %v441
    %v528 = vunpack.c.h.b16 %v441
    %v529 = vunpack.c.l.b16 %v442
    %v530 = vunpack.c.h.b16 %v442
    %v531 = vunpack.c.l.b16 %v443
    %v532 = vunpack.c.h.b16 %v443
    %v533 = vunpack.c.l.b16 %v444
    %v534 = vunpack.c.h.b16 %v444
    %v535 = vunpack.c.l.b16 %v445
    %v536 = vunpack.c.h.b16 %v445
    %v537 = vunpack.c.l.b16 %v446
    %v538 = vunpack.c.h.b16 %v446
    %v539 = vunpack.c.l.b16 %v447
    %v540 = vunpack.c.h.b16 %v447
    %v541 = vunpack.c.l.b16 %v448
    %v542 = vunpack.c.h.b16 %v448
    %v543 = vunpack.c.l.b16 %v449
    %v544 = vunpack.c.h.b16 %v449
    %v545 = vunpack.c.l.b16 %v450
    %v546 = vunpack.c.h.b16 %v450
    %v547 = vunpack.c.l.b16 %v451
    %v548 = vunpack.c.h.b16 %v451
    %v549 = vunpack.c.l.b16 %v452
    %v550 = vunpack.c.h.b16 %v452
    %v551 = vunpack.c.l.b16 %v453
    %v552 = vunpack.c.h.b16 %v453
    %v553 = vunpack.c.l.b16 %v454
    %v554 = vunpack.c.h.b16 %v454
    %v555 = vunpack.c.l.b16 %v455
    %v556 = vunpack.c.h.b16 %v455
    %v557 = vunpack.c.l.b16 %v456
    %v558 = vunpack.c.h.b16 %v456
    %v559 = vunpack.c.l.b16 %v457
    %v560 = vunpack.c.h.b16 %v457
    %v561 = vunpack.c.l.b16 %v458
    %v562 = vunpack.c.h.b16 %v458
    %v563 = vpack.c.b16 %v501, %v499
    %v564 = vpack.c.b16 %v502, %v500
    %v565 = vpack.c.b16 %v505, %v503
    %v566 = vpack.c.b16 %v506, %v504
    %v567 = vpack.c.b16 %v509, %v507
    %v568 = vpack.c.b16 %v510, %v508
    %v569 = vpack.c.b16 %v513, %v511
    %v570 = vpack.c.b16 %v514, %v512
    %v571 = vpack.c.b16 %v517, %v515
    %v572 = vpack.c.b16 %v518, %v516
    %v573 = vpack.c.b16 %v521, %v519
    %v574 = vpack.c.b16 %v522, %v520
    %v575 = vpack.c.b16 %v525, %v523
    %v576 = vpack.c.b16 %v526, %v524
    %v577 = vpack.c.b16 %v529, %v527
    %v578 = vpack.c.b16 %v530, %v528
    %v579 = vpack.c.b16 %v533, %v531
    %v580 = vpack.c.b16 %v534, %v532
    %v581 = vpack.c.b16 %v537, %v535
    %v582 = vpack.c.b16 %v538, %v536
    %v583 = vpack.c.b16 %v541, %v539
    %v584 = vpack.c.b16 %v542, %v540
    %v585 = vpack.c.b16 %v545, %v543
    %v586 = vpack.c.b16 %v546, %v544
    %v587 = vpack.c.b16 %v549, %v547
    %v588 = vpack.c.b16 %v550, %v548
    %v589 = vpack.c.b16 %v553, %v551
    %v590 = vpack.c.b16 %v554, %v552
    %v591 = vpack.c.b16 %v557, %v555
    %v592 = vpack.c.b16 %v558, %v556
    %v593 = vpack.c.b16 %v561, %v559
    %v594 = vpack.c.b16 %v562, %v560
    %627 = vmatprep.subr.bf16.mxu0 %v564
    %628 = vmatpush1.bf16.msra.mxu0 %v563
    %629 = vmatprep.subr.bf16.mxu0 %v566
    %630 = vmatpush1.bf16.msra.mxu0 %v565
    %631 = vmatprep.subr.bf16.mxu0 %v568
    %632 = vmatpush1.bf16.msra.mxu0 %v567
    %633 = vmatprep.subr.bf16.mxu0 %v570
    %634 = vmatpush1.bf16.msra.mxu0 %v569
    %635 = vmatprep.subr.bf16.mxu0 %v572
    %636 = vmatpush1.bf16.msra.mxu0 %v571
    %637 = vmatprep.subr.bf16.mxu0 %v574
    %638 = vmatpush1.bf16.msra.mxu0 %v573
    %639 = vmatprep.subr.bf16.mxu0 %v576
    %640 = vmatpush1.bf16.msra.mxu0 %v575
    %641 = vmatprep.subr.bf16.mxu0 %v578
    %642 = vmatpush1.bf16.msra.mxu0 %v577
    %643 = vmatprep.subr.bf16.mxu0 %v580
    %644 = vmatpush1.bf16.msra.mxu0 %v579
    %645 = vmatprep.subr.bf16.mxu0 %v582
    %646 = vmatpush1.bf16.msra.mxu0 %v581
    %647 = vmatprep.subr.bf16.mxu0 %v584
    %648 = vmatpush1.bf16.msra.mxu0 %v583
    %649 = vmatprep.subr.bf16.mxu0 %v586
    %650 = vmatpush1.bf16.msra.mxu0 %v585
    %651 = vmatprep.subr.bf16.mxu0 %v588
    %652 = vmatpush1.bf16.msra.mxu0 %v587
    %653 = vmatprep.subr.bf16.mxu0 %v590
    %654 = vmatpush1.bf16.msra.mxu0 %v589
    %655 = vmatprep.subr.bf16.mxu0 %v592
    %656 = vmatpush1.bf16.msra.mxu0 %v591
    %657 = vmatprep.subr.bf16.mxu0 %v594
    %658 = vmatpush1.bf16.msra.mxu0 %v593
    %659 = vmatprep.mubr.bf16.mxu0 %v424
    %660 = vmatmul.mubr.bf16.gmra.mrb[0].mxu0 %v423
    %v661 = vpop.f32.mrb[0].mxu0
    %v662 = vadd.f32 %v462, %v661
    %v663 = vpop.f32.mrb[0].mxu0
    %v664 = vadd.f32 %v466, %v663
    %v665 = vpop.f32.mrb[0].mxu0
    %v666 = vadd.f32 %v462, %v665
    %v667 = vpop.f32.mrb[0].mxu0
    %v668 = vadd.f32 %v466, %v667
    %669 = vmatprep.mubr.bf16.mxu0 %v426
    %670 = vmatmul.mubr.bf16.gmra.mrb[0].mxu0 %v425
    %v671 = vpop.f32.mrb[0].mxu0
    %v672 = vadd.f32 %v462, %v671
    %v673 = vpop.f32.mrb[0].mxu0
    %v674 = vadd.f32 %v466, %v673
    %v675 = vpop.f32.mrb[0].mxu0
    %v676 = vadd.f32 %v462, %v675
    %v677 = vpop.f32.mrb[0].mxu0
    %v678 = vadd.f32 %v466, %v677
    %679 = vdwg.mxu0
    %v680 = vadd.f32 %v662, %v664
    %681 = vadd.xlane.f32.xlu0 %v680
    %v682 = vpop.xlane.xlu0 %681
    %v683 = vadd.f32 %v666, %v668
    %684 = vadd.xlane.f32.xlu0 %v683
    %v685 = vpop.xlane.xlu0 %684
    %v686 = vadd.f32 %v672, %v674
    %687 = vadd.xlane.f32.xlu0 %v686
    %v688 = vpop.xlane.xlu0 %687
    %v689 = vadd.f32 %v676, %v678
    %690 = vadd.xlane.f32.xlu0 %v689
    %v691 = vpop.xlane.xlu0 %690
    %v692 = vmul.f32 %v682, %v318
    %v693 = vmul.f32 %v685, %v318
    %v694 = vmul.f32 %v688, %v318
    %v695 = vmul.f32 %v691, %v318
    %v696 = vmul.f32 %v662, %v662
    %v697 = vmul.f32 %v664, %v664
    %v698 = vmul.f32 %v666, %v666
    %v699 = vmul.f32 %v668, %v668
    %v700 = vmul.f32 %v672, %v672
    %v701 = vmul.f32 %v674, %v674
    %v702 = vmul.f32 %v676, %v676
    %v703 = vmul.f32 %v678, %v678
    %v704 = vadd.f32 %v696, %v697
    %705 = vadd.xlane.f32.xlu0 %v704
    %v706 = vpop.xlane.xlu0 %705
    %v707 = vadd.f32 %v698, %v699
    %708 = vadd.xlane.f32.xlu0 %v707
    %v709 = vpop.xlane.xlu0 %708
    %v710 = vadd.f32 %v700, %v701
    %711 = vadd.xlane.f32.xlu0 %v710
    %v712 = vpop.xlane.xlu0 %711
    %v713 = vadd.f32 %v702, %v703
    %714 = vadd.xlane.f32.xlu0 %v713
    %v715 = vpop.xlane.xlu0 %714
    %v716 = vmul.f32 %v706, %v318
    %v717 = vmul.f32 %v709, %v318
    %v718 = vmul.f32 %v712, %v318
    %v719 = vmul.f32 %v715, %v318
    %v720 = vmul.f32 %v692, %v692
    %v721 = vmul.f32 %v693, %v693
    %v722 = vmul.f32 %v694, %v694
    %v723 = vmul.f32 %v695, %v695
    %v724 = vsub.f32 %v716, %v720
    %v725 = vsub.f32 %v717, %v721
    %v726 = vsub.f32 %v718, %v722
    %v727 = vsub.f32 %v719, %v723
    %v728 = vmax.f32 %v724, 0.0
    %v729 = vmax.f32 %v725, 0.0
    %v730 = vmax.f32 %v726, 0.0
    %v731 = vmax.f32 %v727, 0.0
    %v732 = vsub.f32 %v662, %v692
    %v733 = vsub.f32 %v664, %v692
    %v734 = vsub.f32 %v666, %v693
    %v735 = vsub.f32 %v668, %v693
    %v736 = vsub.f32 %v672, %v694
    %v737 = vsub.f32 %v674, %v694
    %v738 = vsub.f32 %v676, %v695
    %v739 = vsub.f32 %v678, %v695
    %v740 = vadd.f32 %v728, 1e-05
    %v741 = vadd.f32 %v729, 1e-05
    %v742 = vadd.f32 %v730, 1e-05
    %v743 = vadd.f32 %v731, 1e-05
    %v744 = vrsqrt.pop %v740
    %v745 = vrsqrt.pop %v741
    %v746 = vrsqrt.pop %v742
    %v747 = vrsqrt.pop %v743
    %v748 = vmul.f32 %v732, %v744
    %v749 = vmul.f32 %v733, %v744
    %v750 = vmul.f32 %v734, %v745
    %v751 = vmul.f32 %v735, %v745
    %v752 = vmul.f32 %v736, %v746
    %v753 = vmul.f32 %v737, %v746
    %v754 = vmul.f32 %v738, %v747
    %v755 = vmul.f32 %v739, %v747
    %v756 = vlaneseq
    %v757 = vshrl.u32 %v756, 7
    %v758 = vsub.s32 4, %v757
    %v759 = vrot.slane %v204, %v758
    %v760 = vlaneseq
    %v761 = vshrl.u32 %v760, 7
    %v762 = vsub.s32 4, %v761
    %v763 = vrot.slane %v205, %v762
    %v764 = vmul.f32 %v748, %v759
    %v765 = vmul.f32 %v749, %v763
    %v766 = vmul.f32 %v750, %v759
    %v767 = vmul.f32 %v751, %v763
    %v768 = vmul.f32 %v752, %v759
    %v769 = vmul.f32 %v753, %v763
    %v770 = vmul.f32 %v754, %v759
    %v771 = vmul.f32 %v755, %v763
    %v772 = vlaneseq
    %v773 = vshrl.u32 %v772, 7
    %v774 = vsub.s32 5, %v773
    %v775 = vrot.slane %v204, %v774
    %v776 = vlaneseq
    %v777 = vshrl.u32 %v776, 7
    %v778 = vsub.s32 5, %v777
    %v779 = vrot.slane %v205, %v778
    %v780 = vadd.f32 %v764, %v775
    %v781 = vadd.f32 %v765, %v779
    %v782 = vadd.f32 %v766, %v775
    %v783 = vadd.f32 %v767, %v779
    %v784 = vadd.f32 %v768, %v775
    %v785 = vadd.f32 %v769, %v779
    %v786 = vadd.f32 %v770, %v775
    %v787 = vadd.f32 %v771, %v779
    %v788 = vmax.f32 %v780, 0.0
    %v789 = vmax.f32 %v781, 0.0
    %v790 = vmax.f32 %v782, 0.0
    %v791 = vmax.f32 %v783, 0.0
    %v792 = vmax.f32 %v784, 0.0
    %v793 = vmax.f32 %v785, 0.0
    %v794 = vmax.f32 %v786, 0.0
    %v795 = vmax.f32 %v787, 0.0
    %v796 = vpack.c.bf16 %v790, %v788
    %v797 = vpack.c.bf16 %v791, %v789
    %v798 = vpack.c.bf16 %v794, %v792
    %v799 = vpack.c.bf16 %v795, %v793
    %v800 = vld [vmem:[%s8] sm:$0xf]
    %v801 = vld [vmem:[%s8 + $0x4] sm:$0xf]
    %v802 = vld [vmem:[%s8 + $0x8] sm:$0xf]
    %v803 = vld [vmem:[%s8 + $0xc] sm:$0xf]
    %v804 = vld [vmem:[%s8 + $0x10] sm:$0xf]
    %v805 = vld [vmem:[%s8 + $0x14] sm:$0xf]
    %v806 = vld [vmem:[%s8 + $0x18] sm:$0xf]
    %v807 = vld [vmem:[%s8 + $0x1c] sm:$0xf]
    %v808 = vld [vmem:[%s8 + $0x20] sm:$0xf]
    %v809 = vld [vmem:[%s8 + $0x24] sm:$0xf]
    %v810 = vld [vmem:[%s8 + $0x28] sm:$0xf]
    %v811 = vld [vmem:[%s8 + $0x2c] sm:$0xf]
    %v812 = vld [vmem:[%s8 + $0x30] sm:$0xf]
    %v813 = vld [vmem:[%s8 + $0x34] sm:$0xf]
    %v814 = vld [vmem:[%s8 + $0x38] sm:$0xf]
    %v815 = vld [vmem:[%s8 + $0x3c] sm:$0xf]
    %v816 = vld [vmem:[%s8 + $0x40] sm:$0xf]
    %v817 = vld [vmem:[%s8 + $0x44] sm:$0xf]
    %v818 = vld [vmem:[%s8 + $0x48] sm:$0xf]
    %v819 = vld [vmem:[%s8 + $0x4c] sm:$0xf]
    %v820 = vld [vmem:[%s8 + $0x50] sm:$0xf]
    %v821 = vld [vmem:[%s8 + $0x54] sm:$0xf]
    %v822 = vld [vmem:[%s8 + $0x58] sm:$0xf]
    %v823 = vld [vmem:[%s8 + $0x5c] sm:$0xf]
    %v824 = vld [vmem:[%s8 + $0x60] sm:$0xf]
    %v825 = vld [vmem:[%s8 + $0x64] sm:$0xf]
    %v826 = vld [vmem:[%s8 + $0x68] sm:$0xf]
    %v827 = vld [vmem:[%s8 + $0x6c] sm:$0xf]
    %v828 = vld [vmem:[%s8 + $0x70] sm:$0xf]
    %v829 = vld [vmem:[%s8 + $0x74] sm:$0xf]
    %v830 = vld [vmem:[%s8 + $0x78] sm:$0xf]
    %v831 = vld [vmem:[%s8 + $0x7c] sm:$0xf]
    %v832 = vlaneseq
    %v833 = vshrl.u32 %v832, 7
    %v834 = vsub.s32 6, %v833
    %v835 = vrot.slane %v204, %v834
    %v868 = vunpack.c.l.b16 %v800
    %v869 = vunpack.c.l.b16 %v801
    %v870 = vunpack.c.l.b16 %v802
    %v871 = vunpack.c.l.b16 %v803
    %v872 = vunpack.c.l.b16 %v804
    %v873 = vunpack.c.l.b16 %v805
    %v874 = vunpack.c.l.b16 %v806
    %v875 = vunpack.c.l.b16 %v807
    %v876 = vunpack.c.l.b16 %v808
    %v877 = vunpack.c.l.b16 %v809
    %v878 = vunpack.c.l.b16 %v810
    %v879 = vunpack.c.l.b16 %v811
    %v880 = vunpack.c.l.b16 %v812
    %v881 = vunpack.c.l.b16 %v813
    %v882 = vunpack.c.l.b16 %v814
    %v883 = vunpack.c.l.b16 %v815
    %v884 = vunpack.c.l.b16 %v816
    %v885 = vunpack.c.l.b16 %v817
    %v886 = vunpack.c.l.b16 %v818
    %v887 = vunpack.c.l.b16 %v819
    %v888 = vunpack.c.l.b16 %v820
    %v889 = vunpack.c.l.b16 %v821
    %v890 = vunpack.c.l.b16 %v822
    %v891 = vunpack.c.l.b16 %v823
    %v892 = vunpack.c.l.b16 %v824
    %v893 = vunpack.c.l.b16 %v825
    %v894 = vunpack.c.l.b16 %v826
    %v895 = vunpack.c.l.b16 %v827
    %v896 = vunpack.c.l.b16 %v828
    %v897 = vunpack.c.l.b16 %v829
    %v898 = vunpack.c.l.b16 %v830
    %v899 = vunpack.c.l.b16 %v831
    %v900 = vpack.c.b16 %v869, %v868
    %v901 = vpack.c.b16 %v871, %v870
    %v902 = vpack.c.b16 %v873, %v872
    %v903 = vpack.c.b16 %v875, %v874
    %v904 = vpack.c.b16 %v877, %v876
    %v905 = vpack.c.b16 %v879, %v878
    %v906 = vpack.c.b16 %v881, %v880
    %v907 = vpack.c.b16 %v883, %v882
    %v908 = vpack.c.b16 %v885, %v884
    %v909 = vpack.c.b16 %v887, %v886
    %v910 = vpack.c.b16 %v889, %v888
    %v911 = vpack.c.b16 %v891, %v890
    %v912 = vpack.c.b16 %v893, %v892
    %v913 = vpack.c.b16 %v895, %v894
    %v914 = vpack.c.b16 %v897, %v896
    %v915 = vpack.c.b16 %v899, %v898
    %932 = vmatprep.subr.bf16.mxu0 0
    %933 = vmatpush1.bf16.msra.mxu0 %v900
    %934 = vmatprep.subr.bf16.mxu0 0
    %935 = vmatpush1.bf16.msra.mxu0 %v901
    %936 = vmatprep.subr.bf16.mxu0 0
    %937 = vmatpush1.bf16.msra.mxu0 %v902
    %938 = vmatprep.subr.bf16.mxu0 0
    %939 = vmatpush1.bf16.msra.mxu0 %v903
    %940 = vmatprep.subr.bf16.mxu0 0
    %941 = vmatpush1.bf16.msra.mxu0 %v904
    %942 = vmatprep.subr.bf16.mxu0 0
    %943 = vmatpush1.bf16.msra.mxu0 %v905
    %944 = vmatprep.subr.bf16.mxu0 0
    %945 = vmatpush1.bf16.msra.mxu0 %v906
    %946 = vmatprep.subr.bf16.mxu0 0
    %947 = vmatpush1.bf16.msra.mxu0 %v907
    %948 = vmatprep.subr.bf16.mxu0 0
    %949 = vmatpush1.bf16.msra.mxu0 %v908
    %950 = vmatprep.subr.bf16.mxu0 0
    %951 = vmatpush1.bf16.msra.mxu0 %v909
    %952 = vmatprep.subr.bf16.mxu0 0
    %953 = vmatpush1.bf16.msra.mxu0 %v910
    %954 = vmatprep.subr.bf16.mxu0 0
    %955 = vmatpush1.bf16.msra.mxu0 %v911
    %956 = vmatprep.subr.bf16.mxu0 0
    %957 = vmatpush1.bf16.msra.mxu0 %v912
    %958 = vmatprep.subr.bf16.mxu0 0
    %959 = vmatpush1.bf16.msra.mxu0 %v913
    %960 = vmatprep.subr.bf16.mxu0 0
    %961 = vmatpush1.bf16.msra.mxu0 %v914
    %962 = vmatprep.subr.bf16.mxu0 0
    %963 = vmatpush1.bf16.msra.mxu0 %v915
    %964 = vmatprep.mubr.bf16.mxu0 %v797
    %965 = vmatmul.mubr.bf16.gmra.mrb[0].mxu0 %v796
    %v966 = vpop.f32.mrb[0].mxu0
    %v967 = vadd.f32 %v835, %v966
    %v968 = vpop.f32.mrb[0].mxu0
    %v969 = vpop.f32.mrb[0].mxu0
    %v970 = vadd.f32 %v835, %v969
    %v971 = vpop.f32.mrb[0].mxu0
    %972 = vmatprep.mubr.bf16.mxu0 %v799
    %973 = vmatmul.mubr.bf16.gmra.mrb[0].mxu0 %v798
    %v974 = vpop.f32.mrb[0].mxu0
    %v975 = vadd.f32 %v835, %v974
    %v976 = vpop.f32.mrb[0].mxu0
    %v977 = vpop.f32.mrb[0].mxu0
    %v978 = vadd.f32 %v835, %v977
    %v979 = vpop.f32.mrb[0].mxu0
    %980 = vdwg.mxu0
    %vm981 = vcmask 523264
    %982 = vst.msk [vmem:[#allocation2] sm:$0xff] %vm981, %v967
    %983 = vst.msk [vmem:[#allocation2 + $0x8] sm:$0xff] %vm981, %v970
    %984 = vst.msk [vmem:[#allocation2 + $0x10] sm:$0xff] %vm981, %v975
    %985 = vst.msk [vmem:[#allocation2 + $0x18] sm:$0xff] %vm981, %v978
    %v986 = vld [vmem:[%s3] sm:$0xf]
    %v987 = vld [vmem:[%s3 + $0x4] sm:$0xf]
    %v988 = vld [vmem:[%s3 + $0x8] sm:$0xf]
    %v989 = vld [vmem:[%s3 + $0xc] sm:$0xf]
    %v990 = vld [vmem:[%s3 + $0x10] sm:$0xf]
    %v991 = vld [vmem:[%s3 + $0x14] sm:$0xf]
    %v992 = vld [vmem:[%s3 + $0x18] sm:$0xf]
    %v993 = vld [vmem:[%s3 + $0x1c] sm:$0xf]
    %v994 = vld [vmem:[#allocation15] sm:$0xff]
    %v995 = vld [vmem:[#allocation15 + $0x8] sm:$0xff]
    %v996 = vld [vmem:[#allocation15 + $0x10] sm:$0x77]
    %v1005 = vunpack.c.l.b16 %v986
    %v1006 = vunpack.c.l.b16 %v987
    %v1007 = vunpack.c.l.b16 %v988
    %v1008 = vunpack.c.l.b16 %v989
    %v1009 = vunpack.c.l.b16 %v990
    %v1010 = vunpack.c.l.b16 %v991
    %v1011 = vunpack.c.l.b16 %v992
    %v1012 = vunpack.c.l.b16 %v993
    %v1013 = vpack.c.b16 %v1006, %v1005
    %v1014 = vpack.c.b16 %v1008, %v1007
    %v1015 = vpack.c.b16 %v1010, %v1009
    %v1016 = vpack.c.b16 %v1012, %v1011
    %v1020 = vunpack.c.l.b16 %v994
    %v1021 = vunpack.c.h.b16 %v994
    %v1022 = vunpack.c.l.b16 %v995
    %v1023 = vunpack.c.h.b16 %v995
    %v1024 = vunpack.c.l.b16 %v996
    %v1025 = vunpack.c.h.b16 %v996
    %v1026 = vpack.c.b16 %v1022, %v1020
    %v1027 = vpack.c.b16 %v1023, %v1021
    %v1028 = vpack.c.b16 %v1024, %v1024
    %v1029 = vpack.c.b16 %v1025, %v1025
    %vm1032 = vcmask 171008
    %v1034 = vsel %vm1032, %v1013, 0
    %v1037 = vsel %vm1032, %v1014, 0
    %v1040 = vsel %vm1032, %v1015, 0
    %v1043 = vsel %vm1032, %v1016, 0
    %vm1045 = vcmask 1042432
    %v1046 = vsel %vm246, 4294967295, 65535
    %v1047 = vsel %vm1045, %v1046, 0
    %v1049 = vand.u32 %v1028, %v1047
    %v1052 = vand.u32 %v1029, %v1047
    %1054 = vmatprep.subr.bf16.mxu0 %v1027
    %1055 = vmatpush1.bf16.msra.mxu0 %v1026
    %1056 = vmatprep.subr.bf16.mxu0 %v1052
    %1057 = vmatpush1.bf16.msra.mxu0 %v1049
    %1058 = vmatprep.subr.bf16.mxu0 0
    %1059 = vmatpush1.bf16.msra.mxu0 0
    %1060 = vmatprep.subr.bf16.mxu0 0
    %1061 = vmatpush1.bf16.msra.mxu0 0
    %1062 = vmatprep.subr.bf16.mxu0 0
    %1063 = vmatpush1.bf16.msra.mxu0 0
    %1064 = vmatprep.subr.bf16.mxu0 0
    %1065 = vmatpush1.bf16.msra.mxu0 0
    %1066 = vmatprep.subr.bf16.mxu0 0
    %1067 = vmatpush1.bf16.msra.mxu0 0
    %1068 = vmatprep.subr.bf16.mxu0 0
    %1069 = vmatpush1.bf16.msra.mxu0 0
    %1070 = vmatprep.subr.bf16.mxu0 0
    %1071 = vmatpush1.bf16.msra.mxu0 0
    %1072 = vmatprep.subr.bf16.mxu0 0
    %1073 = vmatpush1.bf16.msra.mxu0 0
    %1074 = vmatprep.subr.bf16.mxu0 0
    %1075 = vmatpush1.bf16.msra.mxu0 0
    %1076 = vmatprep.subr.bf16.mxu0 0
    %1077 = vmatpush1.bf16.msra.mxu0 0
    %1078 = vmatprep.subr.bf16.mxu0 0
    %1079 = vmatpush1.bf16.msra.mxu0 0
    %1080 = vmatprep.subr.bf16.mxu0 0
    %1081 = vmatpush1.bf16.msra.mxu0 0
    %1082 = vmatprep.subr.bf16.mxu0 0
    %1083 = vmatpush1.bf16.msra.mxu0 0
    %1084 = vmatprep.subr.bf16.mxu0 0
    %1085 = vmatpush1.bf16.msra.mxu0 0
    %1086 = vmatprep.mubr.bf16.mxu0 0
    %1087 = vmatmul.mubr.bf16.gmra.mrb[0].mxu0 %v1034
    %v1088 = vpop.f32.mrb[0].mxu0
    %v1089 = vadd.f32 0.0, %v1088
    %v1090 = vpop.f32.mrb[0].mxu0
    %v1091 = vadd.f32 0.0, %v1090
    %v1092 = vpop.f32.mrb[0].mxu0
    %v1093 = vadd.f32 0.0, %v1092
    %v1094 = vpop.f32.mrb[0].mxu0
    %v1095 = vadd.f32 0.0, %v1094
    %1096 = vmatprep.mubr.bf16.mxu0 0
    %1097 = vmatmul.mubr.bf16.gmra.mrb[0].mxu0 %v1037
    %v1098 = vpop.f32.mrb[0].mxu0
    %v1099 = vadd.f32 0.0, %v1098
    %v1100 = vpop.f32.mrb[0].mxu0
    %v1101 = vadd.f32 0.0, %v1100
    %v1102 = vpop.f32.mrb[0].mxu0
    %v1103 = vadd.f32 0.0, %v1102
    %v1104 = vpop.f32.mrb[0].mxu0
    %v1105 = vadd.f32 0.0, %v1104
    %1106 = vmatprep.mubr.bf16.mxu0 0
    %1107 = vmatmul.mubr.bf16.gmra.mrb[0].mxu0 %v1040
    %v1108 = vpop.f32.mrb[0].mxu0
    %v1109 = vadd.f32 0.0, %v1108
    %v1110 = vpop.f32.mrb[0].mxu0
    %v1111 = vadd.f32 0.0, %v1110
    %v1112 = vpop.f32.mrb[0].mxu0
    %v1113 = vadd.f32 0.0, %v1112
    %v1114 = vpop.f32.mrb[0].mxu0
    %v1115 = vadd.f32 0.0, %v1114
    %1116 = vmatprep.mubr.bf16.mxu0 0
    %1117 = vmatmul.mubr.bf16.gmra.mrb[0].mxu0 %v1043
    %v1118 = vpop.f32.mrb[0].mxu0
    %v1119 = vadd.f32 0.0, %v1118
    %v1120 = vpop.f32.mrb[0].mxu0
    %v1121 = vadd.f32 0.0, %v1120
    %v1122 = vpop.f32.mrb[0].mxu0
    %v1123 = vadd.f32 0.0, %v1122
    %v1124 = vpop.f32.mrb[0].mxu0
    %v1125 = vadd.f32 0.0, %v1124
    %1126 = vdwg.mxu0
    %1127 = vst [vmem:[#allocation6] sm:$0xff] %v1089
    %1128 = vst [vmem:[#allocation6 + $0x8] sm:$0xff] %v1091
    %1129 = vst [vmem:[#allocation6 + $0x10] sm:$0xff] %v1093
    %1130 = vst [vmem:[#allocation6 + $0x18] sm:$0xff] %v1095
    %1131 = vst [vmem:[#allocation6 + $0x20] sm:$0xff] %v1099
    %1132 = vst [vmem:[#allocation6 + $0x28] sm:$0xff] %v1101
    %1133 = vst [vmem:[#allocation6 + $0x30] sm:$0xff] %v1103
    %1134 = vst [vmem:[#allocation6 + $0x38] sm:$0xff] %v1105
    %1135 = vst [vmem:[#allocation6 + $0x40] sm:$0xff] %v1109
    %1136 = vst [vmem:[#allocation6 + $0x48] sm:$0xff] %v1111
    %1137 = vst [vmem:[#allocation6 + $0x50] sm:$0xff] %v1113
    %1138 = vst [vmem:[#allocation6 + $0x58] sm:$0xff] %v1115
    %1139 = vst [vmem:[#allocation6 + $0x60] sm:$0xff] %v1119
    %1140 = vst [vmem:[#allocation6 + $0x68] sm:$0xff] %v1121
    %1141 = vst [vmem:[#allocation6 + $0x70] sm:$0xff] %v1123
    %1142 = vst [vmem:[#allocation6 + $0x78] sm:$0xff] %v1125
    %v1143 = vld [vmem:[%s4] sm:$0xff]
    %v1144 = vld [vmem:[%s4 + $0x8] sm:$0xff]
    %v1145 = vld [vmem:[%s4 + $0x10] sm:$0xff]
    %v1146 = vld [vmem:[%s4 + $0x18] sm:$0xff]
    %v1147 = vld [vmem:[#allocation17] sm:$0xff]
    %v1148 = vld [vmem:[#allocation17 + $0x8] sm:$0xff]
    %v1149 = vld [vmem:[%s16] sm:$0xff]
    %v1150 = vld [vmem:[%s16 + $0x8] sm:$0xff]
    loop: start=0, step=1, limit=6
    $region122: #{gnn_forward.1} parent=1 // loop_pre_header
      _
    $region123: #{gnn_forward.1} parent=1 // loop_header
      %s1152 = sphi 0, %s1156
      %p1153 = scmp.ge.s32.totalorder %s1152, 6
    $region124: #{gnn_forward.1} parent=1 // loop_header_branch
      %1155 = sbr.rel (%p1153) target = $region128
    $region125: #{gnn_forward.1} parent=1 // loop_body
      loop: start=0, step=1, limit=8
      $region129: #{gnn_forward.1} parent=125 // loop_pre_header
        _
      $region130: #{gnn_forward.1} parent=125 // loop_header
        %s1158 = sphi 0, %s1162
        %p1159 = scmp.ge.s32.totalorder %s1158, 8
      $region131: #{gnn_forward.1} parent=125 // loop_header_branch
        %1161 = sbr.rel (%p1159) target = $region135
      $region132: #{gnn_forward.1} parent=125 // loop_body
        %s1163 = sld [smem:[#allocation8 + %s1158]]
        %s1164 = smul.u32 %s1163, 8
        %s1165 = smul.u32 %s1158, 8
        %s1166 = scalar_lea.vmem [#allocation2], %s1164
        %v1167 = vld [vmem:[%s1166] sm:$0xff]
        %s1168 = scalar_lea.vmem [#allocation3], %s1165
        %1169 = vst.msk [vmem:[%s1168] sm:$0xff] %vm981, %v1167
      $region133: #{gnn_forward.1} parent=125 // loop_footer
        %s1162 = sadd.s32 1, %s1158
      $region134: #{gnn_forward.1} parent=125 // loop_footer_branch
        %1157 = sbr.rel target = $region130
      $region135: #{gnn_forward.1} parent=125 // loop_exit
        _
      %v1170 = vld [vmem:[#allocation3] sm:$0xff]
      %v1171 = vld [vmem:[#allocation3 + $0x8] sm:$0xff]
      %v1172 = vld [vmem:[#allocation3 + $0x10] sm:$0xff]
      %v1173 = vld [vmem:[#allocation3 + $0x18] sm:$0xff]
      %v1174 = vld [vmem:[#allocation3 + $0x20] sm:$0xff]
      %v1175 = vld [vmem:[#allocation3 + $0x28] sm:$0xff]
      %v1176 = vld [vmem:[#allocation3 + $0x30] sm:$0xff]
      %v1177 = vld [vmem:[#allocation3 + $0x38] sm:$0xff]
      %v1178 = vpack.c.bf16 %v1171, %v1170
      %v1179 = vpack.c.bf16 %v1173, %v1172
      %v1180 = vpack.c.bf16 %v1175, %v1174
      %v1181 = vpack.c.bf16 %v1177, %v1176
      %v1182 = vld [vmem:[#allocation14] sm:$0xff]
      %v1183 = vld [vmem:[#allocation14 + $0x8] sm:$0xff]
      %v1184 = vld [vmem:[#allocation14 + $0x10] sm:$0xff]
      %v1185 = vld [vmem:[#allocation14 + $0x18] sm:$0xff]
      %v1186 = vld [vmem:[#allocation14 + $0x20] sm:$0xff]
      %v1187 = vld [vmem:[#allocation14 + $0x28] sm:$0xff]
      %v1188 = vld [vmem:[#allocation14 + $0x30] sm:$0xff]
      %v1189 = vld [vmem:[#allocation14 + $0x38] sm:$0xff]
      %v1190 = vld [vmem:[#allocation6] sm:$0xff]
      %v1191 = vld [vmem:[#allocation6 + $0x8] sm:$0xff]
      %v1192 = vld [vmem:[#allocation6 + $0x10] sm:$0xff]
      %v1193 = vld [vmem:[#allocation6 + $0x18] sm:$0xff]
      %v1194 = vld [vmem:[#allocation6 + $0x20] sm:$0xff]
      %v1195 = vld [vmem:[#allocation6 + $0x28] sm:$0xff]
      %v1196 = vld [vmem:[#allocation6 + $0x30] sm:$0xff]
      %v1197 = vld [vmem:[#allocation6 + $0x38] sm:$0xff]
      %v1198 = vld [vmem:[#allocation6 + $0x40] sm:$0xff]
      %v1199 = vld [vmem:[#allocation6 + $0x48] sm:$0xff]
      %v1200 = vld [vmem:[#allocation6 + $0x50] sm:$0xff]
      %v1201 = vld [vmem:[#allocation6 + $0x58] sm:$0xff]
      %v1202 = vld [vmem:[#allocation6 + $0x60] sm:$0xff]
      %v1203 = vld [vmem:[#allocation6 + $0x68] sm:$0xff]
      %v1204 = vld [vmem:[#allocation6 + $0x70] sm:$0xff]
      %v1205 = vld [vmem:[#allocation6 + $0x78] sm:$0xff]
      %v1214 = vunpack.c.l.b16 %v1182
      %v1215 = vunpack.c.h.b16 %v1182
      %v1216 = vunpack.c.l.b16 %v1183
      %v1217 = vunpack.c.h.b16 %v1183
      %v1218 = vunpack.c.l.b16 %v1184
      %v1219 = vunpack.c.h.b16 %v1184
      %v1220 = vunpack.c.l.b16 %v1185
      %v1221 = vunpack.c.h.b16 %v1185
      %v1222 = vunpack.c.l.b16 %v1186
      %v1223 = vunpack.c.h.b16 %v1186
      %v1224 = vunpack.c.l.b16 %v1187
      %v1225 = vunpack.c.h.b16 %v1187
      %v1226 = vunpack.c.l.b16 %v1188
      %v1227 = vunpack.c.h.b16 %v1188
      %v1228 = vunpack.c.l.b16 %v1189
      %v1229 = vunpack.c.h.b16 %v1189
      %v1230 = vpack.c.b16 %v1216, %v1214
      %v1231 = vpack.c.b16 %v1217, %v1215
      %v1232 = vpack.c.b16 %v1220, %v1218
      %v1233 = vpack.c.b16 %v1221, %v1219
      %v1234 = vpack.c.b16 %v1224, %v1222
      %v1235 = vpack.c.b16 %v1225, %v1223
      %v1236 = vpack.c.b16 %v1228, %v1226
      %v1237 = vpack.c.b16 %v1229, %v1227
      %v1247 = vsel %vm981, %v1178, 0
      %v1250 = vsel %vm981, %v1179, 0
      %v1253 = vsel %vm981, %v1180, 0
      %v1256 = vsel %vm981, %v1181, 0
      %1258 = vmatprep.subr.bf16.mxu0 %v1231
      %1259 = vmatpush1.bf16.msra.mxu0 %v1230
      %1260 = vmatprep.subr.bf16.mxu0 %v1233
      %1261 = vmatpush1.bf16.msra.mxu0 %v1232
      %1262 = vmatprep.subr.bf16.mxu0 %v1235
      %1263 = vmatpush1.bf16.msra.mxu0 %v1234
      %1264 = vmatprep.subr.bf16.mxu0 %v1237
      %1265 = vmatpush1.bf16.msra.mxu0 %v1236
      %1266 = vmatprep.subr.bf16.mxu0 0
      %1267 = vmatpush1.bf16.msra.mxu0 0
      %1268 = vmatprep.subr.bf16.mxu0 0
      %1269 = vmatpush1.bf16.msra.mxu0 0
      %1270 = vmatprep.subr.bf16.mxu0 0
      %1271 = vmatpush1.bf16.msra.mxu0 0
      %1272 = vmatprep.subr.bf16.mxu0 0
      %1273 = vmatpush1.bf16.msra.mxu0 0
      %1274 = vmatprep.subr.bf16.mxu0 0
      %1275 = vmatpush1.bf16.msra.mxu0 0
      %1276 = vmatprep.subr.bf16.mxu0 0
      %1277 = vmatpush1.bf16.msra.mxu0 0
      %1278 = vmatprep.subr.bf16.mxu0 0
      %1279 = vmatpush1.bf16.msra.mxu0 0
      %1280 = vmatprep.subr.bf16.mxu0 0
      %1281 = vmatpush1.bf16.msra.mxu0 0
      %1282 = vmatprep.subr.bf16.mxu0 0
      %1283 = vmatpush1.bf16.msra.mxu0 0
      %1284 = vmatprep.subr.bf16.mxu0 0
      %1285 = vmatpush1.bf16.msra.mxu0 0
      %1286 = vmatprep.subr.bf16.mxu0 0
      %1287 = vmatpush1.bf16.msra.mxu0 0
      %1288 = vmatprep.subr.bf16.mxu0 0
      %1289 = vmatpush1.bf16.msra.mxu0 0
      %1290 = vmatprep.mubr.bf16.mxu0 0
      %1291 = vmatmul.mubr.bf16.gmra.mrb[0].mxu0 %v1247
      %v1292 = vpop.f32.mrb[0].mxu0
      %v1293 = vadd.f32 %v1190, %v1292
      %v1294 = vpop.f32.mrb[0].mxu0
      %v1295 = vadd.f32 %v1191, %v1294
      %v1296 = vpop.f32.mrb[0].mxu0
      %v1297 = vadd.f32 %v1192, %v1296
      %v1298 = vpop.f32.mrb[0].mxu0
      %v1299 = vadd.f32 %v1193, %v1298
      %1300 = vmatprep.mubr.bf16.mxu0 0
      %1301 = vmatmul.mubr.bf16.gmra.mrb[0].mxu0 %v1250
      %v1302 = vpop.f32.mrb[0].mxu0
      %v1303 = vadd.f32 %v1194, %v1302
      %v1304 = vpop.f32.mrb[0].mxu0
      %v1305 = vadd.f32 %v1195, %v1304
      %v1306 = vpop.f32.mrb[0].mxu0
      %v1307 = vadd.f32 %v1196, %v1306
      %v1308 = vpop.f32.mrb[0].mxu0
      %v1309 = vadd.f32 %v1197, %v1308
      %1310 = vmatprep.mubr.bf16.mxu0 0
      %1311 = vmatmul.mubr.bf16.gmra.mrb[0].mxu0 %v1253
      %v1312 = vpop.f32.mrb[0].mxu0
      %v1313 = vadd.f32 %v1198, %v1312
      %v1314 = vpop.f32.mrb[0].mxu0
      %v1315 = vadd.f32 %v1199, %v1314
      %v1316 = vpop.f32.mrb[0].mxu0
      %v1317 = vadd.f32 %v1200, %v1316
      %v1318 = vpop.f32.mrb[0].mxu0
      %v1319 = vadd.f32 %v1201, %v1318
      %1320 = vmatprep.mubr.bf16.mxu0 0
      %1321 = vmatmul.mubr.bf16.gmra.mrb[0].mxu0 %v1256
      %v1322 = vpop.f32.mrb[0].mxu0
      %v1323 = vadd.f32 %v1202, %v1322
      %v1324 = vpop.f32.mrb[0].mxu0
      %v1325 = vadd.f32 %v1203, %v1324
      %v1326 = vpop.f32.mrb[0].mxu0
      %v1327 = vadd.f32 %v1204, %v1326
      %v1328 = vpop.f32.mrb[0].mxu0
      %v1329 = vadd.f32 %v1205, %v1328
      %1330 = vdwg.mxu0
      %v1331 = vlaneseq
      %v1332 = vshrl.u32 %v1331, 7
      %v1333 = vsub.s32 0, %v1332
      %v1334 = vrot.slane %v1147, %v1333
      %v1335 = vlaneseq
      %v1336 = vshrl.u32 %v1335, 7
      %v1337 = vsub.s32 0, %v1336
      %v1338 = vrot.slane %v1148, %v1337
      %v1339 = vadd.f32 %v1293, %v1334
      %v1340 = vadd.f32 %v1295, %v1338
      %v1341 = vadd.f32 %v1297, %v1334
      %v1342 = vadd.f32 %v1299, %v1338
      %v1343 = vadd.f32 %v1303, %v1334
      %v1344 = vadd.f32 %v1305, %v1338
      %v1345 = vadd.f32 %v1307, %v1334
      %v1346 = vadd.f32 %v1309, %v1338
      %v1347 = vadd.f32 %v1313, %v1334
      %v1348 = vadd.f32 %v1315, %v1338
      %v1349 = vadd.f32 %v1317, %v1334
      %v1350 = vadd.f32 %v1319, %v1338
      %v1351 = vadd.f32 %v1323, %v1334
      %v1352 = vadd.f32 %v1325, %v1338
      %v1353 = vadd.f32 %v1327, %v1334
      %v1354 = vadd.f32 %v1329, %v1338
      %v1355 = vadd.f32 %v1339, %v1340
      %1356 = vadd.xlane.f32.xlu0 %v1355
      %v1357 = vpop.xlane.xlu0 %1356
      %v1358 = vadd.f32 %v1341, %v1342
      %1359 = vadd.xlane.f32.xlu0 %v1358
      %v1360 = vpop.xlane.xlu0 %1359
      %v1361 = vadd.f32 %v1343, %v1344
      %1362 = vadd.xlane.f32.xlu0 %v1361
      %v1363 = vpop.xlane.xlu0 %1362
      %v1364 = vadd.f32 %v1345, %v1346
      %1365 = vadd.xlane.f32.xlu0 %v1364
      %v1366 = vpop.xlane.xlu0 %1365
      %v1367 = vadd.f32 %v1347, %v1348
      %1368 = vadd.xlane.f32.xlu0 %v1367
      %v1369 = vpop.xlane.xlu0 %1368
      %v1370 = vadd.f32 %v1349, %v1350
      %1371 = vadd.xlane.f32.xlu0 %v1370
      %v1372 = vpop.xlane.xlu0 %1371
      %v1373 = vadd.f32 %v1351, %v1352
      %1374 = vadd.xlane.f32.xlu0 %v1373
      %v1375 = vpop.xlane.xlu0 %1374
      %v1376 = vadd.f32 %v1353, %v1354
      %1377 = vadd.xlane.f32.xlu0 %v1376
      %v1378 = vpop.xlane.xlu0 %1377
      %v1379 = vmul.f32 %v1357, %v318
      %v1380 = vmul.f32 %v1360, %v318
      %v1381 = vmul.f32 %v1363, %v318
      %v1382 = vmul.f32 %v1366, %v318
      %v1383 = vmul.f32 %v1369, %v318
      %v1384 = vmul.f32 %v1372, %v318
      %v1385 = vmul.f32 %v1375, %v318
      %v1386 = vmul.f32 %v1378, %v318
      %v1387 = vmul.f32 %v1339, %v1339
      %v1388 = vmul.f32 %v1340, %v1340
      %v1389 = vmul.f32 %v1341, %v1341
      %v1390 = vmul.f32 %v1342, %v1342
      %v1391 = vmul.f32 %v1343, %v1343
      %v1392 = vmul.f32 %v1344, %v1344
      %v1393 = vmul.f32 %v1345, %v1345
      %v1394 = vmul.f32 %v1346, %v1346
      %v1395 = vmul.f32 %v1347, %v1347
      %v1396 = vmul.f32 %v1348, %v1348
      %v1397 = vmul.f32 %v1349, %v1349
      %v1398 = vmul.f32 %v1350, %v1350
      %v1399 = vmul.f32 %v1351, %v1351
      %v1400 = vmul.f32 %v1352, %v1352
      %v1401 = vmul.f32 %v1353, %v1353
      %v1402 = vmul.f32 %v1354, %v1354
      %v1403 = vadd.f32 %v1387, %v1388
      %1404 = vadd.xlane.f32.xlu0 %v1403
      %v1405 = vpop.xlane.xlu0 %1404
      %v1406 = vadd.f32 %v1389, %v1390
      %1407 = vadd.xlane.f32.xlu0 %v1406
      %v1408 = vpop.xlane.xlu0 %1407
      %v1409 = vadd.f32 %v1391, %v1392
      %1410 = vadd.xlane.f32.xlu0 %v1409
      %v1411 = vpop.xlane.xlu0 %1410
      %v1412 = vadd.f32 %v1393, %v1394
      %1413 = vadd.xlane.f32.xlu0 %v1412
      %v1414 = vpop.xlane.xlu0 %1413
      %v1415 = vadd.f32 %v1395, %v1396
      %1416 = vadd.xlane.f32.xlu0 %v1415
      %v1417 = vpop.xlane.xlu0 %1416
      %v1418 = vadd.f32 %v1397, %v1398
      %1419 = vadd.xlane.f32.xlu0 %v1418
      %v1420 = vpop.xlane.xlu0 %1419
      %v1421 = vadd.f32 %v1399, %v1400
      %1422 = vadd.xlane.f32.xlu0 %v1421
      %v1423 = vpop.xlane.xlu0 %1422
      %v1424 = vadd.f32 %v1401, %v1402
      %1425 = vadd.xlane.f32.xlu0 %v1424
      %v1426 = vpop.xlane.xlu0 %1425
      %v1427 = vmul.f32 %v1405, %v318
      %v1428 = vmul.f32 %v1408, %v318
      %v1429 = vmul.f32 %v1411, %v318
      %v1430 = vmul.f32 %v1414, %v318
      %v1431 = vmul.f32 %v1417, %v318
      %v1432 = vmul.f32 %v1420, %v318
      %v1433 = vmul.f32 %v1423, %v318
      %v1434 = vmul.f32 %v1426, %v318
      %v1435 = vmul.f32 %v1379, %v1379
      %v1436 = vmul.f32 %v1380, %v1380
      %v1437 = vmul.f32 %v1381, %v1381
      %v1438 = vmul.f32 %v1382, %v1382
      %v1439 = vmul.f32 %v1383, %v1383
      %v1440 = vmul.f32 %v1384, %v1384
      %v1441 = vmul.f32 %v1385, %v1385
      %v1442 = vmul.f32 %v1386, %v1386
      %v1443 = vsub.f32 %v1427, %v1435
      %v1444 = vsub.f32 %v1428, %v1436
      %v1445 = vsub.f32 %v1429, %v1437
      %v1446 = vsub.f32 %v1430, %v1438
      %v1447 = vsub.f32 %v1431, %v1439
      %v1448 = vsub.f32 %v1432, %v1440
      %v1449 = vsub.f32 %v1433, %v1441
      %v1450 = vsub.f32 %v1434, %v1442
      %v1451 = vmax.f32 %v1443, 0.0
      %v1452 = vmax.f32 %v1444, 0.0
      %v1453 = vmax.f32 %v1445, 0.0
      %v1454 = vmax.f32 %v1446, 0.0
      %v1455 = vmax.f32 %v1447, 0.0
      %v1456 = vmax.f32 %v1448, 0.0
      %v1457 = vmax.f32 %v1449, 0.0
      %v1458 = vmax.f32 %v1450, 0.0
      %v1459 = vsub.f32 %v1339, %v1379
      %v1460 = vsub.f32 %v1340, %v1379
      %v1461 = vsub.f32 %v1341, %v1380
      %v1462 = vsub.f32 %v1342, %v1380
      %v1463 = vsub.f32 %v1343, %v1381
      %v1464 = vsub.f32 %v1344, %v1381
      %v1465 = vsub.f32 %v1345, %v1382
      %v1466 = vsub.f32 %v1346, %v1382
      %v1467 = vsub.f32 %v1347, %v1383
      %v1468 = vsub.f32 %v1348, %v1383
      %v1469 = vsub.f32 %v1349, %v1384
      %v1470 = vsub.f32 %v1350, %v1384
      %v1471 = vsub.f32 %v1351, %v1385
      %v1472 = vsub.f32 %v1352, %v1385
      %v1473 = vsub.f32 %v1353, %v1386
      %v1474 = vsub.f32 %v1354, %v1386
      %v1475 = vadd.f32 %v1451, 1e-05
      %v1476 = vadd.f32 %v1452, 1e-05
      %v1477 = vadd.f32 %v1453, 1e-05
      %v1478 = vadd.f32 %v1454, 1e-05
      %v1479 = vadd.f32 %v1455, 1e-05
      %v1480 = vadd.f32 %v1456, 1e-05
      %v1481 = vadd.f32 %v1457, 1e-05
      %v1482 = vadd.f32 %v1458, 1e-05
      %v1483 = vrsqrt.pop %v1475
      %v1484 = vrsqrt.pop %v1476
      %v1485 = vrsqrt.pop %v1477
      %v1486 = vrsqrt.pop %v1478
      %v1487 = vrsqrt.pop %v1479
      %v1488 = vrsqrt.pop %v1480
      %v1489 = vrsqrt.pop %v1481
      %v1490 = vrsqrt.pop %v1482
      %v1491 = vmul.f32 %v1459, %v1483
      %v1492 = vmul.f32 %v1460, %v1483
      %v1493 = vmul.f32 %v1461, %v1484
      %v1494 = vmul.f32 %v1462, %v1484
      %v1495 = vmul.f32 %v1463, %v1485
      %v1496 = vmul.f32 %v1464, %v1485
      %v1497 = vmul.f32 %v1465, %v1486
      %v1498 = vmul.f32 %v1466, %v1486
      %v1499 = vmul.f32 %v1467, %v1487
      %v1500 = vmul.f32 %v1468, %v1487
      %v1501 = vmul.f32 %v1469, %v1488
      %v1502 = vmul.f32 %v1470, %v1488
      %v1503 = vmul.f32 %v1471, %v1489
      %v1504 = vmul.f32 %v1472, %v1489
      %v1505 = vmul.f32 %v1473, %v1490
      %v1506 = vmul.f32 %v1474, %v1490
      %v1507 = vlaneseq
      %v1508 = vshrl.u32 %v1507, 7
      %v1509 = vsub.s32 1, %v1508
      %v1510 = vrot.slane %v1147, %v1509
      %v1511 = vlaneseq
      %v1512 = vshrl.u32 %v1511, 7
      %v1513 = vsub.s32 1, %v1512
      %v1514 = vrot.slane %v1148, %v1513
      %v1515 = vmul.f32 %v1491, %v1510
      %v1516 = vmul.f32 %v1492, %v1514
      %v1517 = vmul.f32 %v1493, %v1510
      %v1518 = vmul.f32 %v1494, %v1514
      %v1519 = vmul.f32 %v1495, %v1510
      %v1520 = vmul.f32 %v1496, %v1514
      %v1521 = vmul.f32 %v1497, %v1510
      %v1522 = vmul.f32 %v1498, %v1514
      %v1523 = vmul.f32 %v1499, %v1510
      %v1524 = vmul.f32 %v1500, %v1514
      %v1525 = vmul.f32 %v1501, %v1510
      %v1526 = vmul.f32 %v1502, %v1514
      %v1527 = vmul.f32 %v1503, %v1510
      %v1528 = vmul.f32 %v1504, %v1514
      %v1529 = vmul.f32 %v1505, %v1510
      %v1530 = vmul.f32 %v1506, %v1514
      %v1531 = vlaneseq
      %v1532 = vshrl.u32 %v1531, 7
      %v1533 = vsub.s32 2, %v1532
      %v1534 = vrot.slane %v1147, %v1533
      %v1535 = vlaneseq
      %v1536 = vshrl.u32 %v1535, 7
      %v1537 = vsub.s32 2, %v1536
      %v1538 = vrot.slane %v1148, %v1537
      %v1539 = vadd.f32 %v1515, %v1534
      %v1540 = vadd.f32 %v1516, %v1538
      %v1541 = vadd.f32 %v1517, %v1534
      %v1542 = vadd.f32 %v1518, %v1538
      %v1543 = vadd.f32 %v1519, %v1534
      %v1544 = vadd.f32 %v1520, %v1538
      %v1545 = vadd.f32 %v1521, %v1534
      %v1546 = vadd.f32 %v1522, %v1538
      %v1547 = vadd.f32 %v1523, %v1534
      %v1548 = vadd.f32 %v1524, %v1538
      %v1549 = vadd.f32 %v1525, %v1534
      %v1550 = vadd.f32 %v1526, %v1538
      %v1551 = vadd.f32 %v1527, %v1534
      %v1552 = vadd.f32 %v1528, %v1538
      %v1553 = vadd.f32 %v1529, %v1534
      %v1554 = vadd.f32 %v1530, %v1538
      %v1555 = vmax.f32 %v1539, 0.0
      %v1556 = vmax.f32 %v1540, 0.0
      %v1557 = vmax.f32 %v1541, 0.0
      %v1558 = vmax.f32 %v1542, 0.0
      %v1559 = vmax.f32 %v1543, 0.0
      %v1560 = vmax.f32 %v1544, 0.0
      %v1561 = vmax.f32 %v1545, 0.0
      %v1562 = vmax.f32 %v1546, 0.0
      %v1563 = vmax.f32 %v1547, 0.0
      %v1564 = vmax.f32 %v1548, 0.0
      %v1565 = vmax.f32 %v1549, 0.0
      %v1566 = vmax.f32 %v1550, 0.0
      %v1567 = vmax.f32 %v1551, 0.0
      %v1568 = vmax.f32 %v1552, 0.0
      %v1569 = vmax.f32 %v1553, 0.0
      %v1570 = vmax.f32 %v1554, 0.0
      %v1571 = vpack.c.bf16 %v1557, %v1555
      %v1572 = vpack.c.bf16 %v1558, %v1556
      %v1573 = vpack.c.bf16 %v1561, %v1559
      %v1574 = vpack.c.bf16 %v1562, %v1560
      %v1575 = vpack.c.bf16 %v1565, %v1563
      %v1576 = vpack.c.bf16 %v1566, %v1564
      %v1577 = vpack.c.bf16 %v1569, %v1567
      %v1578 = vpack.c.bf16 %v1570, %v1568
      %v1579 = vld [vmem:[%s12] sm:$0xff]
      %v1580 = vld [vmem:[%s12 + $0x8] sm:$0xff]
      %v1581 = vld [vmem:[%s12 + $0x10] sm:$0xff]
      %v1582 = vld [vmem:[%s12 + $0x18] sm:$0xff]
      %v1583 = vld [vmem:[%s12 + $0x20] sm:$0xff]
      %v1584 = vld [vmem:[%s12 + $0x28] sm:$0xff]
      %v1585 = vld [vmem:[%s12 + $0x30] sm:$0xff]
      %v1586 = vld [vmem:[%s12 + $0x38] sm:$0xff]
      %v1587 = vld [vmem:[%s12 + $0x40] sm:$0xff]
      %v1588 = vld [vmem:[%s12 + $0x48] sm:$0xff]
      %v1589 = vld [vmem:[%s12 + $0x50] sm:$0xff]
      %v1590 = vld [vmem:[%s12 + $0x58] sm:$0xff]
      %v1591 = vld [vmem:[%s12 + $0x60] sm:$0xff]
      %v1592 = vld [vmem:[%s12 + $0x68] sm:$0xff]
      %v1593 = vld [vmem:[%s12 + $0x70] sm:$0xff]
      %v1594 = vld [vmem:[%s12 + $0x78] sm:$0xff]
      %v1595 = vld [vmem:[%s12 + $0x80] sm:$0xff]
      %v1596 = vld [vmem:[%s12 + $0x88] sm:$0xff]
      %v1597 = vld [vmem:[%s12 + $0x90] sm:$0xff]
      %v1598 = vld [vmem:[%s12 + $0x98] sm:$0xff]
      %v1599 = vld [vmem:[%s12 + $0xa0] sm:$0xff]
      %v1600 = vld [vmem:[%s12 + $0xa8] sm:$0xff]
      %v1601 = vld [vmem:[%s12 + $0xb0] sm:$0xff]
      %v1602 = vld [vmem:[%s12 + $0xb8] sm:$0xff]
      %v1603 = vld [vmem:[%s12 + $0xc0] sm:$0xff]
      %v1604 = vld [vmem:[%s12 + $0xc8] sm:$0xff]
      %v1605 = vld [vmem:[%s12 + $0xd0] sm:$0xff]
      %v1606 = vld [vmem:[%s12 + $0xd8] sm:$0xff]
      %v1607 = vld [vmem:[%s12 + $0xe0] sm:$0xff]
      %v1608 = vld [vmem:[%s12 + $0xe8] sm:$0xff]
      %v1609 = vld [vmem:[%s12 + $0xf0] sm:$0xff]
      %v1610 = vld [vmem:[%s12 + $0xf8] sm:$0xff]
      %v1611 = vlaneseq
      %v1612 = vshrl.u32 %v1611, 7
      %v1613 = vsub.s32 3, %v1612
      %v1614 = vrot.slane %v1147, %v1613
      %v1615 = vlaneseq
      %v1616 = vshrl.u32 %v1615, 7
      %v1617 = vsub.s32 3, %v1616
      %v1618 = vrot.slane %v1148, %v1617
      %v1651 = vunpack.c.l.b16 %v1579
      %v1652 = vunpack.c.h.b16 %v1579
      %v1653 = vunpack.c.l.b16 %v1580
      %v1654 = vunpack.c.h.b16 %v1580
      %v1655 = vunpack.c.l.b16 %v1581
      %v1656 = vunpack.c.h.b16 %v1581
      %v1657 = vunpack.c.l.b16 %v1582
      %v1658 = vunpack.c.h.b16 %v1582
      %v1659 = vunpack.c.l.b16 %v1583
      %v1660 = vunpack.c.h.b16 %v1583
      %v1661 = vunpack.c.l.b16 %v1584
      %v1662 = vunpack.c.h.b16 %v1584
      %v1663 = vunpack.c.l.b16 %v1585
      %v1664 = vunpack.c.h.b16 %v1585
      %v1665 = vunpack.c.l.b16 %v1586
      %v1666 = vunpack.c.h.b16 %v1586
      %v1667 = vunpack.c.l.b16 %v1587
      %v1668 = vunpack.c.h.b16 %v1587
      %v1669 = vunpack.c.l.b16 %v1588
      %v1670 = vunpack.c.h.b16 %v1588
      %v1671 = vunpack.c.l.b16 %v1589
      %v1672 = vunpack.c.h.b16 %v1589
      %v1673 = vunpack.c.l.b16 %v1590
      %v1674 = vunpack.c.h.b16 %v1590
      %v1675 = vunpack.c.l.b16 %v1591
      %v1676 = vunpack.c.h.b16 %v1591
      %v1677 = vunpack.c.l.b16 %v1592
      %v1678 = vunpack.c.h.b16 %v1592
      %v1679 = vunpack.c.l.b16 %v1593
      %v1680 = vunpack.c.h.b16 %v1593
      %v1681 = vunpack.c.l.b16 %v1594
      %v1682 = vunpack.c.h.b16 %v1594
      %v1683 = vunpack.c.l.b16 %v1595
      %v1684 = vunpack.c.h.b16 %v1595
      %v1685 = vunpack.c.l.b16 %v1596
      %v1686 = vunpack.c.h.b16 %v1596
      %v1687 = vunpack.c.l.b16 %v1597
      %v1688 = vunpack.c.h.b16 %v1597
      %v1689 = vunpack.c.l.b16 %v1598
      %v1690 = vunpack.c.h.b16 %v1598
      %v1691 = vunpack.c.l.b16 %v1599
      %v1692 = vunpack.c.h.b16 %v1599
      %v1693 = vunpack.c.l.b16 %v1600
      %v1694 = vunpack.c.h.b16 %v1600
      %v1695 = vunpack.c.l.b16 %v1601
      %v1696 = vunpack.c.h.b16 %v1601
      %v1697 = vunpack.c.l.b16 %v1602
      %v1698 = vunpack.c.h.b16 %v1602
      %v1699 = vunpack.c.l.b16 %v1603
      %v1700 = vunpack.c.h.b16 %v1603
      %v1701 = vunpack.c.l.b16 %v1604
      %v1702 = vunpack.c.h.b16 %v1604
      %v1703 = vunpack.c.l.b16 %v1605
      %v1704 = vunpack.c.h.b16 %v1605
      %v1705 = vunpack.c.l.b16 %v1606
      %v1706 = vunpack.c.h.b16 %v1606
      %v1707 = vunpack.c.l.b16 %v1607
      %v1708 = vunpack.c.h.b16 %v1607
      %v1709 = vunpack.c.l.b16 %v1608
      %v1710 = vunpack.c.h.b16 %v1608
      %v1711 = vunpack.c.l.b16 %v1609
      %v1712 = vunpack.c.h.b16 %v1609
      %v1713 = vunpack.c.l.b16 %v1610
      %v1714 = vunpack.c.h.b16 %v1610
      %v1715 = vpack.c.b16 %v1653, %v1651
      %v1716 = vpack.c.b16 %v1654, %v1652
      %v1717 = vpack.c.b16 %v1657, %v1655
      %v1718 = vpack.c.b16 %v1658, %v1656
      %v1719 = vpack.c.b16 %v1661, %v1659
      %v1720 = vpack.c.b16 %v1662, %v1660
      %v1721 = vpack.c.b16 %v1665, %v1663
      %v1722 = vpack.c.b16 %v1666, %v1664
      %v1723 = vpack.c.b16 %v1669, %v1667
      %v1724 = vpack.c.b16 %v1670, %v1668
      %v1725 = vpack.c.b16 %v1673, %v1671
      %v1726 = vpack.c.b16 %v1674, %v1672
      %v1727 = vpack.c.b16 %v1677, %v1675
      %v1728 = vpack.c.b16 %v1678, %v1676
      %v1729 = vpack.c.b16 %v1681, %v1679
      %v1730 = vpack.c.b16 %v1682, %v1680
      %v1731 = vpack.c.b16 %v1685, %v1683
      %v1732 = vpack.c.b16 %v1686, %v1684
      %v1733 = vpack.c.b16 %v1689, %v1687
      %v1734 = vpack.c.b16 %v1690, %v1688
      %v1735 = vpack.c.b16 %v1693, %v1691
      %v1736 = vpack.c.b16 %v1694, %v1692
      %v1737 = vpack.c.b16 %v1697, %v1695
      %v1738 = vpack.c.b16 %v1698, %v1696
      %v1739 = vpack.c.b16 %v1701, %v1699
      %v1740 = vpack.c.b16 %v1702, %v1700
      %v1741 = vpack.c.b16 %v1705, %v1703
      %v1742 = vpack.c.b16 %v1706, %v1704
      %v1743 = vpack.c.b16 %v1709, %v1707
      %v1744 = vpack.c.b16 %v1710, %v1708
      %v1745 = vpack.c.b16 %v1713, %v1711
      %v1746 = vpack.c.b16 %v1714, %v1712
      %1779 = vmatprep.subr.bf16.mxu0 %v1716
      %1780 = vmatpush1.bf16.msra.mxu0 %v1715
      %1781 = vmatprep.subr.bf16.mxu0 %v1718
      %1782 = vmatpush1.bf16.msra.mxu0 %v1717
      %1783 = vmatprep.subr.bf16.mxu0 %v1720
      %1784 = vmatpush1.bf16.msra.mxu0 %v1719
      %1785 = vmatprep.subr.bf16.mxu0 %v1722
      %1786 = vmatpush1.bf16.msra.mxu0 %v1721
      %1787 = vmatprep.subr.bf16.mxu0 %v1724
      %1788 = vmatpush1.bf16.msra.mxu0 %v1723
      %1789 = vmatprep.subr.bf16.mxu0 %v1726
      %1790 = vmatpush1.bf16.msra.mxu0 %v1725
      %1791 = vmatprep.subr.bf16.mxu0 %v1728
      %1792 = vmatpush1.bf16.msra.mxu0 %v1727
      %1793 = vmatprep.subr.bf16.mxu0 %v1730
      %1794 = vmatpush1.bf16.msra.mxu0 %v1729
      %1795 = vmatprep.subr.bf16.mxu0 %v1732
      %1796 = vmatpush1.bf16.msra.mxu0 %v1731
      %1797 = vmatprep.subr.bf16.mxu0 %v1734
      %1798 = vmatpush1.bf16.msra.mxu0 %v1733
      %1799 = vmatprep.subr.bf16.mxu0 %v1736
      %1800 = vmatpush1.bf16.msra.mxu0 %v1735
      %1801 = vmatprep.subr.bf16.mxu0 %v1738
      %1802 = vmatpush1.bf16.msra.mxu0 %v1737
      %1803 = vmatprep.subr.bf16.mxu0 %v1740
      %1804 = vmatpush1.bf16.msra.mxu0 %v1739
      %1805 = vmatprep.subr.bf16.mxu0 %v1742
      %1806 = vmatpush1.bf16.msra.mxu0 %v1741
      %1807 = vmatprep.subr.bf16.mxu0 %v1744
      %1808 = vmatpush1.bf16.msra.mxu0 %v1743
      %1809 = vmatprep.subr.bf16.mxu0 %v1746
      %1810 = vmatpush1.bf16.msra.mxu0 %v1745
      %1811 = vmatprep.mubr.bf16.mxu0 %v1572
      %1812 = vmatmul.mubr.bf16.gmra.mrb[0].mxu0 %v1571
      %v1813 = vpop.f32.mrb[0].mxu0
      %v1814 = vadd.f32 %v1614, %v1813
      %v1815 = vpop.f32.mrb[0].mxu0
      %v1816 = vadd.f32 %v1618, %v1815
      %v1817 = vpop.f32.mrb[0].mxu0
      %v1818 = vadd.f32 %v1614, %v1817
      %v1819 = vpop.f32.mrb[0].mxu0
      %v1820 = vadd.f32 %v1618, %v1819
      %1821 = vmatprep.mubr.bf16.mxu0 %v1574
      %1822 = vmatmul.mubr.bf16.gmra.mrb[0].mxu0 %v1573
      %v1823 = vpop.f32.mrb[0].mxu0
      %v1824 = vadd.f32 %v1614, %v1823
      %v1825 = vpop.f32.mrb[0].mxu0
      %v1826 = vadd.f32 %v1618, %v1825
      %v1827 = vpop.f32.mrb[0].mxu0
      %v1828 = vadd.f32 %v1614, %v1827
      %v1829 = vpop.f32.mrb[0].mxu0
      %v1830 = vadd.f32 %v1618, %v1829
      %1831 = vmatprep.mubr.bf16.mxu0 %v1576
      %1832 = vmatmul.mubr.bf16.gmra.mrb[0].mxu0 %v1575
      %v1833 = vpop.f32.mrb[0].mxu0
      %v1834 = vadd.f32 %v1614, %v1833
      %v1835 = vpop.f32.mrb[0].mxu0
      %v1836 = vadd.f32 %v1618, %v1835
      %v1837 = vpop.f32.mrb[0].mxu0
      %v1838 = vadd.f32 %v1614, %v1837
      %v1839 = vpop.f32.mrb[0].mxu0
      %v1840 = vadd.f32 %v1618, %v1839
      %1841 = vmatprep.mubr.bf16.mxu0 %v1578
      %1842 = vmatmul.mubr.bf16.gmra.mrb[0].mxu0 %v1577
      %v1843 = vpop.f32.mrb[0].mxu0
      %v1844 = vadd.f32 %v1614, %v1843
      %v1845 = vpop.f32.mrb[0].mxu0
      %v1846 = vadd.f32 %v1618, %v1845
      %v1847 = vpop.f32.mrb[0].mxu0
      %v1848 = vadd.f32 %v1614, %v1847
      %v1849 = vpop.f32.mrb[0].mxu0
      %v1850 = vadd.f32 %v1618, %v1849
      %1851 = vdwg.mxu0
      %v1852 = vadd.f32 %v1814, %v1816
      %1853 = vadd.xlane.f32.xlu0 %v1852
      %v1854 = vpop.xlane.xlu0 %1853
      %v1855 = vadd.f32 %v1818, %v1820
      %1856 = vadd.xlane.f32.xlu0 %v1855
      %v1857 = vpop.xlane.xlu0 %1856
      %v1858 = vadd.f32 %v1824, %v1826
      %1859 = vadd.xlane.f32.xlu0 %v1858
      %v1860 = vpop.xlane.xlu0 %1859
      %v1861 = vadd.f32 %v1828, %v1830
      %1862 = vadd.xlane.f32.xlu0 %v1861
      %v1863 = vpop.xlane.xlu0 %1862
      %v1864 = vadd.f32 %v1834, %v1836
      %1865 = vadd.xlane.f32.xlu0 %v1864
      %v1866 = vpop.xlane.xlu0 %1865
      %v1867 = vadd.f32 %v1838, %v1840
      %1868 = vadd.xlane.f32.xlu0 %v1867
      %v1869 = vpop.xlane.xlu0 %1868
      %v1870 = vadd.f32 %v1844, %v1846
      %1871 = vadd.xlane.f32.xlu0 %v1870
      %v1872 = vpop.xlane.xlu0 %1871
      %v1873 = vadd.f32 %v1848, %v1850
      %1874 = vadd.xlane.f32.xlu0 %v1873
      %v1875 = vpop.xlane.xlu0 %1874
      %v1876 = vmul.f32 %v1854, %v318
      %v1877 = vmul.f32 %v1857, %v318
      %v1878 = vmul.f32 %v1860, %v318
      %v1879 = vmul.f32 %v1863, %v318
      %v1880 = vmul.f32 %v1866, %v318
      %v1881 = vmul.f32 %v1869, %v318
      %v1882 = vmul.f32 %v1872, %v318
      %v1883 = vmul.f32 %v1875, %v318
      %v1884 = vmul.f32 %v1814, %v1814
      %v1885 = vmul.f32 %v1816, %v1816
      %v1886 = vmul.f32 %v1818, %v1818
      %v1887 = vmul.f32 %v1820, %v1820
      %v1888 = vmul.f32 %v1824, %v1824
      %v1889 = vmul.f32 %v1826, %v1826
      %v1890 = vmul.f32 %v1828, %v1828
      %v1891 = vmul.f32 %v1830, %v1830
      %v1892 = vmul.f32 %v1834, %v1834
      %v1893 = vmul.f32 %v1836, %v1836
      %v1894 = vmul.f32 %v1838, %v1838
      %v1895 = vmul.f32 %v1840, %v1840
      %v1896 = vmul.f32 %v1844, %v1844
      %v1897 = vmul.f32 %v1846, %v1846
      %v1898 = vmul.f32 %v1848, %v1848
      %v1899 = vmul.f32 %v1850, %v1850
      %v1900 = vadd.f32 %v1884, %v1885
      %1901 = vadd.xlane.f32.xlu0 %v1900
      %v1902 = vpop.xlane.xlu0 %1901
      %v1903 = vadd.f32 %v1886, %v1887
      %1904 = vadd.xlane.f32.xlu0 %v1903
      %v1905 = vpop.xlane.xlu0 %1904
      %v1906 = vadd.f32 %v1888, %v1889
      %1907 = vadd.xlane.f32.xlu0 %v1906
      %v1908 = vpop.xlane.xlu0 %1907
      %v1909 = vadd.f32 %v1890, %v1891
      %1910 = vadd.xlane.f32.xlu0 %v1909
      %v1911 = vpop.xlane.xlu0 %1910
      %v1912 = vadd.f32 %v1892, %v1893
      %1913 = vadd.xlane.f32.xlu0 %v1912
      %v1914 = vpop.xlane.xlu0 %1913
      %v1915 = vadd.f32 %v1894, %v1895
      %1916 = vadd.xlane.f32.xlu0 %v1915
      %v1917 = vpop.xlane.xlu0 %1916
      %v1918 = vadd.f32 %v1896, %v1897
      %1919 = vadd.xlane.f32.xlu0 %v1918
      %v1920 = vpop.xlane.xlu0 %1919
      %v1921 = vadd.f32 %v1898, %v1899
      %1922 = vadd.xlane.f32.xlu0 %v1921
      %v1923 = vpop.xlane.xlu0 %1922
      %v1924 = vmul.f32 %v1902, %v318
      %v1925 = vmul.f32 %v1905, %v318
      %v1926 = vmul.f32 %v1908, %v318
      %v1927 = vmul.f32 %v1911, %v318
      %v1928 = vmul.f32 %v1914, %v318
      %v1929 = vmul.f32 %v1917, %v318
      %v1930 = vmul.f32 %v1920, %v318
      %v1931 = vmul.f32 %v1923, %v318
      %v1932 = vmul.f32 %v1876, %v1876
      %v1933 = vmul.f32 %v1877, %v1877
      %v1934 = vmul.f32 %v1878, %v1878
      %v1935 = vmul.f32 %v1879, %v1879
      %v1936 = vmul.f32 %v1880, %v1880
      %v1937 = vmul.f32 %v1881, %v1881
      %v1938 = vmul.f32 %v1882, %v1882
      %v1939 = vmul.f32 %v1883, %v1883
      %v1940 = vsub.f32 %v1924, %v1932
      %v1941 = vsub.f32 %v1925, %v1933
      %v1942 = vsub.f32 %v1926, %v1934
      %v1943 = vsub.f32 %v1927, %v1935
      %v1944 = vsub.f32 %v1928, %v1936
      %v1945 = vsub.f32 %v1929, %v1937
      %v1946 = vsub.f32 %v1930, %v1938
      %v1947 = vsub.f32 %v1931, %v1939
      %v1948 = vmax.f32 %v1940, 0.0
      %v1949 = vmax.f32 %v1941, 0.0
      %v1950 = vmax.f32 %v1942, 0.0
      %v1951 = vmax.f32 %v1943, 0.0
      %v1952 = vmax.f32 %v1944, 0.0
      %v1953 = vmax.f32 %v1945, 0.0
      %v1954 = vmax.f32 %v1946, 0.0
      %v1955 = vmax.f32 %v1947, 0.0
      %v1956 = vsub.f32 %v1814, %v1876
      %v1957 = vsub.f32 %v1816, %v1876
      %v1958 = vsub.f32 %v1818, %v1877
      %v1959 = vsub.f32 %v1820, %v1877
      %v1960 = vsub.f32 %v1824, %v1878
      %v1961 = vsub.f32 %v1826, %v1878
      %v1962 = vsub.f32 %v1828, %v1879
      %v1963 = vsub.f32 %v1830, %v1879
      %v1964 = vsub.f32 %v1834, %v1880
      %v1965 = vsub.f32 %v1836, %v1880
      %v1966 = vsub.f32 %v1838, %v1881
      %v1967 = vsub.f32 %v1840, %v1881
      %v1968 = vsub.f32 %v1844, %v1882
      %v1969 = vsub.f32 %v1846, %v1882
      %v1970 = vsub.f32 %v1848, %v1883
      %v1971 = vsub.f32 %v1850, %v1883
      %v1972 = vadd.f32 %v1948, 1e-05
      %v1973 = vadd.f32 %v1949, 1e-05
      %v1974 = vadd.f32 %v1950, 1e-05
      %v1975 = vadd.f32 %v1951, 1e-05
      %v1976 = vadd.f32 %v1952, 1e-05
      %v1977 = vadd.f32 %v1953, 1e-05
      %v1978 = vadd.f32 %v1954, 1e-05
      %v1979 = vadd.f32 %v1955, 1e-05
      %v1980 = vrsqrt.pop %v1972
      %v1981 = vrsqrt.pop %v1973
      %v1982 = vrsqrt.pop %v1974
      %v1983 = vrsqrt.pop %v1975
      %v1984 = vrsqrt.pop %v1976
      %v1985 = vrsqrt.pop %v1977
      %v1986 = vrsqrt.pop %v1978
      %v1987 = vrsqrt.pop %v1979
      %v1988 = vmul.f32 %v1956, %v1980
      %v1989 = vmul.f32 %v1957, %v1980
      %v1990 = vmul.f32 %v1958, %v1981
      %v1991 = vmul.f32 %v1959, %v1981
      %v1992 = vmul.f32 %v1960, %v1982
      %v1993 = vmul.f32 %v1961, %v1982
      %v1994 = vmul.f32 %v1962, %v1983
      %v1995 = vmul.f32 %v1963, %v1983
      %v1996 = vmul.f32 %v1964, %v1984
      %v1997 = vmul.f32 %v1965, %v1984
      %v1998 = vmul.f32 %v1966, %v1985
      %v1999 = vmul.f32 %v1967, %v1985
      %v2000 = vmul.f32 %v1968, %v1986
      %v2001 = vmul.f32 %v1969, %v1986
      %v2002 = vmul.f32 %v1970, %v1987
      %v2003 = vmul.f32 %v1971, %v1987
      %v2004 = vlaneseq
      %v2005 = vshrl.u32 %v2004, 7
      %v2006 = vsub.s32 4, %v2005
      %v2007 = vrot.slane %v1147, %v2006
      %v2008 = vlaneseq
      %v2009 = vshrl.u32 %v2008, 7
      %v2010 = vsub.s32 4, %v2009
      %v2011 = vrot.slane %v1148, %v2010
      %v2012 = vmul.f32 %v1988, %v2007
      %v2013 = vmul.f32 %v1989, %v2011
      %v2014 = vmul.f32 %v1990, %v2007
      %v2015 = vmul.f32 %v1991, %v2011
      %v2016 = vmul.f32 %v1992, %v2007
      %v2017 = vmul.f32 %v1993, %v2011
      %v2018 = vmul.f32 %v1994, %v2007
      %v2019 = vmul.f32 %v1995, %v2011
      %v2020 = vmul.f32 %v1996, %v2007
      %v2021 = vmul.f32 %v1997, %v2011
      %v2022 = vmul.f32 %v1998, %v2007
      %v2023 = vmul.f32 %v1999, %v2011
      %v2024 = vmul.f32 %v2000, %v2007
      %v2025 = vmul.f32 %v2001, %v2011
      %v2026 = vmul.f32 %v2002, %v2007
      %v2027 = vmul.f32 %v2003, %v2011
      %v2028 = vlaneseq
      %v2029 = vshrl.u32 %v2028, 7
      %v2030 = vsub.s32 5, %v2029
      %v2031 = vrot.slane %v1147, %v2030
      %v2032 = vlaneseq
      %v2033 = vshrl.u32 %v2032, 7
      %v2034 = vsub.s32 5, %v2033
      %v2035 = vrot.slane %v1148, %v2034
      %v2036 = vadd.f32 %v2012, %v2031
      %v2037 = vadd.f32 %v2013, %v2035
      %v2038 = vadd.f32 %v2014, %v2031
      %v2039 = vadd.f32 %v2015, %v2035
      %v2040 = vadd.f32 %v2016, %v2031
      %v2041 = vadd.f32 %v2017, %v2035
      %v2042 = vadd.f32 %v2018, %v2031
      %v2043 = vadd.f32 %v2019, %v2035
      %v2044 = vadd.f32 %v2020, %v2031
      %v2045 = vadd.f32 %v2021, %v2035
      %v2046 = vadd.f32 %v2022, %v2031
      %v2047 = vadd.f32 %v2023, %v2035
      %v2048 = vadd.f32 %v2024, %v2031
      %v2049 = vadd.f32 %v2025, %v2035
      %v2050 = vadd.f32 %v2026, %v2031
      %v2051 = vadd.f32 %v2027, %v2035
      %v2052 = vmax.f32 %v2036, 0.0
      %v2053 = vmax.f32 %v2037, 0.0
      %v2054 = vmax.f32 %v2038, 0.0
      %v2055 = vmax.f32 %v2039, 0.0
      %v2056 = vmax.f32 %v2040, 0.0
      %v2057 = vmax.f32 %v2041, 0.0
      %v2058 = vmax.f32 %v2042, 0.0
      %v2059 = vmax.f32 %v2043, 0.0
      %v2060 = vmax.f32 %v2044, 0.0
      %v2061 = vmax.f32 %v2045, 0.0
      %v2062 = vmax.f32 %v2046, 0.0
      %v2063 = vmax.f32 %v2047, 0.0
      %v2064 = vmax.f32 %v2048, 0.0
      %v2065 = vmax.f32 %v2049, 0.0
      %v2066 = vmax.f32 %v2050, 0.0
      %v2067 = vmax.f32 %v2051, 0.0
      %v2068 = vpack.c.bf16 %v2054, %v2052
      %v2069 = vpack.c.bf16 %v2055, %v2053
      %v2070 = vpack.c.bf16 %v2058, %v2056
      %v2071 = vpack.c.bf16 %v2059, %v2057
      %v2072 = vpack.c.bf16 %v2062, %v2060
      %v2073 = vpack.c.bf16 %v2063, %v2061
      %v2074 = vpack.c.bf16 %v2066, %v2064
      %v2075 = vpack.c.bf16 %v2067, %v2065
      %v2076 = vld [vmem:[%s13] sm:$0xf]
      %v2077 = vld [vmem:[%s13 + $0x4] sm:$0xf]
      %v2078 = vld [vmem:[%s13 + $0x8] sm:$0xf]
      %v2079 = vld [vmem:[%s13 + $0xc] sm:$0xf]
      %v2080 = vld [vmem:[%s13 + $0x10] sm:$0xf]
      %v2081 = vld [vmem:[%s13 + $0x14] sm:$0xf]
      %v2082 = vld [vmem:[%s13 + $0x18] sm:$0xf]
      %v2083 = vld [vmem:[%s13 + $0x1c] sm:$0xf]
      %v2084 = vld [vmem:[%s13 + $0x20] sm:$0xf]
      %v2085 = vld [vmem:[%s13 + $0x24] sm:$0xf]
      %v2086 = vld [vmem:[%s13 + $0x28] sm:$0xf]
      %v2087 = vld [vmem:[%s13 + $0x2c] sm:$0xf]
      %v2088 = vld [vmem:[%s13 + $0x30] sm:$0xf]
      %v2089 = vld [vmem:[%s13 + $0x34] sm:$0xf]
      %v2090 = vld [vmem:[%s13 + $0x38] sm:$0xf]
      %v2091 = vld [vmem:[%s13 + $0x3c] sm:$0xf]
      %v2092 = vld [vmem:[%s13 + $0x40] sm:$0xf]
      %v2093 = vld [vmem:[%s13 + $0x44] sm:$0xf]
      %v2094 = vld [vmem:[%s13 + $0x48] sm:$0xf]
      %v2095 = vld [vmem:[%s13 + $0x4c] sm:$0xf]
      %v2096 = vld [vmem:[%s13 + $0x50] sm:$0xf]
      %v2097 = vld [vmem:[%s13 + $0x54] sm:$0xf]
      %v2098 = vld [vmem:[%s13 + $0x58] sm:$0xf]
      %v2099 = vld [vmem:[%s13 + $0x5c] sm:$0xf]
      %v2100 = vld [vmem:[%s13 + $0x60] sm:$0xf]
      %v2101 = vld [vmem:[%s13 + $0x64] sm:$0xf]
      %v2102 = vld [vmem:[%s13 + $0x68] sm:$0xf]
      %v2103 = vld [vmem:[%s13 + $0x6c] sm:$0xf]
      %v2104 = vld [vmem:[%s13 + $0x70] sm:$0xf]
      %v2105 = vld [vmem:[%s13 + $0x74] sm:$0xf]
      %v2106 = vld [vmem:[%s13 + $0x78] sm:$0xf]
      %v2107 = vld [vmem:[%s13 + $0x7c] sm:$0xf]
      %v2108 = vlaneseq
      %v2109 = vshrl.u32 %v2108, 7
      %v2110 = vsub.s32 6, %v2109
      %v2111 = vrot.slane %v1147, %v2110
      %v2144 = vunpack.c.l.b16 %v2076
      %v2145 = vunpack.c.l.b16 %v2077
      %v2146 = vunpack.c.l.b16 %v2078
      %v2147 = vunpack.c.l.b16 %v2079
      %v2148 = vunpack.c.l.b16 %v2080
      %v2149 = vunpack.c.l.b16 %v2081
      %v2150 = vunpack.c.l.b16 %v2082
      %v2151 = vunpack.c.l.b16 %v2083
      %v2152 = vunpack.c.l.b16 %v2084
      %v2153 = vunpack.c.l.b16 %v2085
      %v2154 = vunpack.c.l.b16 %v2086
      %v2155 = vunpack.c.l.b16 %v2087
      %v2156 = vunpack.c.l.b16 %v2088
      %v2157 = vunpack.c.l.b16 %v2089
      %v2158 = vunpack.c.l.b16 %v2090
      %v2159 = vunpack.c.l.b16 %v2091
      %v2160 = vunpack.c.l.b16 %v2092
      %v2161 = vunpack.c.l.b16 %v2093
      %v2162 = vunpack.c.l.b16 %v2094
      %v2163 = vunpack.c.l.b16 %v2095
      %v2164 = vunpack.c.l.b16 %v2096
      %v2165 = vunpack.c.l.b16 %v2097
      %v2166 = vunpack.c.l.b16 %v2098
      %v2167 = vunpack.c.l.b16 %v2099
      %v2168 = vunpack.c.l.b16 %v2100
      %v2169 = vunpack.c.l.b16 %v2101
      %v2170 = vunpack.c.l.b16 %v2102
      %v2171 = vunpack.c.l.b16 %v2103
      %v2172 = vunpack.c.l.b16 %v2104
      %v2173 = vunpack.c.l.b16 %v2105
      %v2174 = vunpack.c.l.b16 %v2106
      %v2175 = vunpack.c.l.b16 %v2107
      %v2176 = vpack.c.b16 %v2145, %v2144
      %v2177 = vpack.c.b16 %v2147, %v2146
      %v2178 = vpack.c.b16 %v2149, %v2148
      %v2179 = vpack.c.b16 %v2151, %v2150
      %v2180 = vpack.c.b16 %v2153, %v2152
      %v2181 = vpack.c.b16 %v2155, %v2154
      %v2182 = vpack.c.b16 %v2157, %v2156
      %v2183 = vpack.c.b16 %v2159, %v2158
      %v2184 = vpack.c.b16 %v2161, %v2160
      %v2185 = vpack.c.b16 %v2163, %v2162
      %v2186 = vpack.c.b16 %v2165, %v2164
      %v2187 = vpack.c.b16 %v2167, %v2166
      %v2188 = vpack.c.b16 %v2169, %v2168
      %v2189 = vpack.c.b16 %v2171, %v2170
      %v2190 = vpack.c.b16 %v2173, %v2172
      %v2191 = vpack.c.b16 %v2175, %v2174
      %2208 = vmatprep.subr.bf16.mxu0 0
      %2209 = vmatpush1.bf16.msra.mxu0 %v2176
      %2210 = vmatprep.subr.bf16.mxu0 0
      %2211 = vmatpush1.bf16.msra.mxu0 %v2177
      %2212 = vmatprep.subr.bf16.mxu0 0
      %2213 = vmatpush1.bf16.msra.mxu0 %v2178
      %2214 = vmatprep.subr.bf16.mxu0 0
      %2215 = vmatpush1.bf16.msra.mxu0 %v2179
      %2216 = vmatprep.subr.bf16.mxu0 0
      %2217 = vmatpush1.bf16.msra.mxu0 %v2180
      %2218 = vmatprep.subr.bf16.mxu0 0
      %2219 = vmatpush1.bf16.msra.mxu0 %v2181
      %2220 = vmatprep.subr.bf16.mxu0 0
      %2221 = vmatpush1.bf16.msra.mxu0 %v2182
      %2222 = vmatprep.subr.bf16.mxu0 0
      %2223 = vmatpush1.bf16.msra.mxu0 %v2183
      %2224 = vmatprep.subr.bf16.mxu0 0
      %2225 = vmatpush1.bf16.msra.mxu0 %v2184
      %2226 = vmatprep.subr.bf16.mxu0 0
      %2227 = vmatpush1.bf16.msra.mxu0 %v2185
      %2228 = vmatprep.subr.bf16.mxu0 0
      %2229 = vmatpush1.bf16.msra.mxu0 %v2186
      %2230 = vmatprep.subr.bf16.mxu0 0
      %2231 = vmatpush1.bf16.msra.mxu0 %v2187
      %2232 = vmatprep.subr.bf16.mxu0 0
      %2233 = vmatpush1.bf16.msra.mxu0 %v2188
      %2234 = vmatprep.subr.bf16.mxu0 0
      %2235 = vmatpush1.bf16.msra.mxu0 %v2189
      %2236 = vmatprep.subr.bf16.mxu0 0
      %2237 = vmatpush1.bf16.msra.mxu0 %v2190
      %2238 = vmatprep.subr.bf16.mxu0 0
      %2239 = vmatpush1.bf16.msra.mxu0 %v2191
      %2240 = vmatprep.mubr.bf16.mxu0 %v2069
      %2241 = vmatmul.mubr.bf16.gmra.mrb[0].mxu0 %v2068
      %v2242 = vpop.f32.mrb[0].mxu0
      %v2243 = vadd.f32 %v2111, %v2242
      %v2244 = vpop.f32.mrb[0].mxu0
      %v2245 = vpop.f32.mrb[0].mxu0
      %v2246 = vadd.f32 %v2111, %v2245
      %v2247 = vpop.f32.mrb[0].mxu0
      %2248 = vmatprep.mubr.bf16.mxu0 %v2071
      %2249 = vmatmul.mubr.bf16.gmra.mrb[0].mxu0 %v2070
      %v2250 = vpop.f32.mrb[0].mxu0
      %v2251 = vadd.f32 %v2111, %v2250
      %v2252 = vpop.f32.mrb[0].mxu0
      %v2253 = vpop.f32.mrb[0].mxu0
      %v2254 = vadd.f32 %v2111, %v2253
      %v2255 = vpop.f32.mrb[0].mxu0
      %2256 = vmatprep.mubr.bf16.mxu0 %v2073
      %2257 = vmatmul.mubr.bf16.gmra.mrb[0].mxu0 %v2072
      %v2258 = vpop.f32.mrb[0].mxu0
      %v2259 = vadd.f32 %v2111, %v2258
      %v2260 = vpop.f32.mrb[0].mxu0
      %v2261 = vpop.f32.mrb[0].mxu0
      %v2262 = vadd.f32 %v2111, %v2261
      %v2263 = vpop.f32.mrb[0].mxu0
      %2264 = vmatprep.mubr.bf16.mxu0 %v2075
      %2265 = vmatmul.mubr.bf16.gmra.mrb[0].mxu0 %v2074
      %v2266 = vpop.f32.mrb[0].mxu0
      %v2267 = vadd.f32 %v2111, %v2266
      %v2268 = vpop.f32.mrb[0].mxu0
      %v2269 = vpop.f32.mrb[0].mxu0
      %v2270 = vadd.f32 %v2111, %v2269
      %v2271 = vpop.f32.mrb[0].mxu0
      %2272 = vdwg.mxu0
      %v2273 = vtanh.pop %v2243
      %v2274 = vtanh.pop %v2246
      %v2275 = vtanh.pop %v2251
      %v2276 = vtanh.pop %v2254
      %v2277 = vtanh.pop %v2259
      %v2278 = vtanh.pop %v2262
      %v2279 = vtanh.pop %v2267
      %v2280 = vtanh.pop %v2270
      %2281 = vst.msk [vmem:[#allocation4] sm:$0xff] %vm981, %v2273
      %2282 = vst.msk [vmem:[#allocation4 + $0x8] sm:$0xff] %vm981, %v2274
      %2283 = vst.msk [vmem:[#allocation4 + $0x10] sm:$0xff] %vm981, %v2275
      %2284 = vst.msk [vmem:[#allocation4 + $0x18] sm:$0xff] %vm981, %v2276
      %2285 = vst.msk [vmem:[#allocation4 + $0x20] sm:$0xff] %vm981, %v2277
      %2286 = vst.msk [vmem:[#allocation4 + $0x28] sm:$0xff] %vm981, %v2278
      %2287 = vst.msk [vmem:[#allocation4 + $0x30] sm:$0xff] %vm981, %v2279
      %2288 = vst.msk [vmem:[#allocation4 + $0x38] sm:$0xff] %vm981, %v2280
      %2289 = vst.msk [vmem:[#allocation5] sm:$0xff] %vm981, 0.0
      %2290 = vst.msk [vmem:[#allocation5 + $0x8] sm:$0xff] %vm981, 0.0
      %2291 = vst.msk [vmem:[#allocation5 + $0x10] sm:$0xff] %vm981, 0.0
      %2292 = vst.msk [vmem:[#allocation5 + $0x18] sm:$0xff] %vm981, 0.0
      loop: start=0, step=1, limit=8
      $region136: #{gnn_forward.1} parent=125 // loop_pre_header
        _
      $region137: #{gnn_forward.1} parent=125 // loop_header
        %s2294 = sphi 0, %s2298
        %p2295 = scmp.ge.s32.totalorder %s2294, 8
      $region138: #{gnn_forward.1} parent=125 // loop_header_branch
        %2297 = sbr.rel (%p2295) target = $region142
      $region139: #{gnn_forward.1} parent=125 // loop_body
        %s2299 = smul.u32 %s2294, 8
        %s2300 = sld [smem:[#allocation9 + %s2294]]
        %s2301 = smul.u32 %s2300, 8
        %s2302 = scalar_lea.vmem [#allocation5], %s2301
        %v2303 = vld [vmem:[%s2302] sm:$0xff]
        %s2304 = scalar_lea.vmem [#allocation4], %s2299
        %v2305 = vld [vmem:[%s2304] sm:$0xff]
        %v2306 = vadd.f32 %v2303, %v2305
        %2307 = vst.msk [vmem:[%s2302] sm:$0xff] %vm981, %v2306
      $region140: #{gnn_forward.1} parent=125 // loop_footer
        %s2298 = sadd.s32 1, %s2294
      $region141: #{gnn_forward.1} parent=125 // loop_footer_branch
        %2293 = sbr.rel target = $region137
      $region142: #{gnn_forward.1} parent=125 // loop_exit
        _
      %v2308 = vld [vmem:[#allocation5] sm:$0xff]
      %v2309 = vld [vmem:[#allocation5 + $0x8] sm:$0xff]
      %v2310 = vld [vmem:[#allocation5 + $0x10] sm:$0xff]
      %v2311 = vld [vmem:[#allocation5 + $0x18] sm:$0xff]
      %2313 = vset.pattern.permute.xlu0 0
      %2314 = vperm.xlu0 %2313, %v1143
      %v2315 = vpop.permute.xlu0 %2314
      %2318 = vset.pattern.permute.xlu0 0
      %2319 = vperm.xlu0 %2318, %v1144
      %v2320 = vpop.permute.xlu0 %2319
      %2323 = vset.pattern.permute.xlu0 0
      %2324 = vperm.xlu0 %2323, %v1145
      %v2325 = vpop.permute.xlu0 %2324
      %2328 = vset.pattern.permute.xlu0 0
      %2329 = vperm.xlu0 %2328, %v1146
      %v2330 = vpop.permute.xlu0 %2329
      %v2332 = vmul.f32 %v2308, %v2315
      %v2333 = vmul.f32 %v2309, %v2320
      %v2334 = vmul.f32 %v2310, %v2325
      %v2335 = vmul.f32 %v2311, %v2330
      %v2336 = vpack.c.bf16 %v2333, %v2332
      %v2337 = vpack.c.bf16 %v2335, %v2334
      %v2338 = vld [vmem:[#allocation18] sm:$0xff]
      %v2339 = vld [vmem:[#allocation18 + $0x8] sm:$0xff]
      %v2340 = vld [vmem:[#allocation18 + $0x10] sm:$0xff]
      %v2341 = vld [vmem:[#allocation18 + $0x18] sm:$0xff]
      %v2342 = vld [vmem:[#allocation18 + $0x20] sm:$0xff]
      %v2343 = vld [vmem:[#allocation18 + $0x28] sm:$0xff]
      %v2344 = vld [vmem:[#allocation18 + $0x30] sm:$0xff]
      %v2345 = vld [vmem:[#allocation18 + $0x38] sm:$0xff]
      %v2346 = vld [vmem:[#allocation2] sm:$0xff]
      %v2347 = vld [vmem:[#allocation2 + $0x8] sm:$0xff]
      %v2348 = vld [vmem:[#allocation2 + $0x10] sm:$0xff]
      %v2349 = vld [vmem:[#allocation2 + $0x18] sm:$0xff]
      %v2350 = vpack.c.bf16 %v2347, %v2346
      %v2351 = vpack.c.bf16 %v2349, %v2348
      %v2352 = vld [vmem:[#allocation20] sm:$0xff]
      %v2353 = vld [vmem:[#allocation20 + $0x8] sm:$0xff]
      %v2354 = vld [vmem:[#allocation20 + $0x10] sm:$0xff]
      %v2355 = vld [vmem:[#allocation20 + $0x18] sm:$0xff]
      %v2356 = vld [vmem:[#allocation20 + $0x20] sm:$0xff]
      %v2357 = vld [vmem:[#allocation20 + $0x28] sm:$0xff]
      %v2358 = vld [vmem:[#allocation20 + $0x30] sm:$0xff]
      %v2359 = vld [vmem:[#allocation20 + $0x38] sm:$0xff]
      %v2368 = vunpack.c.l.b16 %v2352
      %v2369 = vunpack.c.h.b16 %v2352
      %v2370 = vunpack.c.l.b16 %v2353
      %v2371 = vunpack.c.h.b16 %v2353
      %v2372 = vunpack.c.l.b16 %v2354
      %v2373 = vunpack.c.h.b16 %v2354
      %v2374 = vunpack.c.l.b16 %v2355
      %v2375 = vunpack.c.h.b16 %v2355
      %v2376 = vunpack.c.l.b16 %v2356
      %v2377 = vunpack.c.h.b16 %v2356
      %v2378 = vunpack.c.l.b16 %v2357
      %v2379 = vunpack.c.h.b16 %v2357
      %v2380 = vunpack.c.l.b16 %v2358
      %v2381 = vunpack.c.h.b16 %v2358
      %v2382 = vunpack.c.l.b16 %v2359
      %v2383 = vunpack.c.h.b16 %v2359
      %v2384 = vpack.c.b16 %v2370, %v2368
      %v2385 = vpack.c.b16 %v2371, %v2369
      %v2386 = vpack.c.b16 %v2374, %v2372
      %v2387 = vpack.c.b16 %v2375, %v2373
      %v2388 = vpack.c.b16 %v2378, %v2376
      %v2389 = vpack.c.b16 %v2379, %v2377
      %v2390 = vpack.c.b16 %v2382, %v2380
      %v2391 = vpack.c.b16 %v2383, %v2381
      %v2401 = vsel %vm981, %v2350, 0
      %v2404 = vsel %vm981, %v2351, 0
      %2406 = vmatprep.subr.bf16.mxu0 %v2385
      %2407 = vmatpush1.bf16.msra.mxu0 %v2384
      %2408 = vmatprep.subr.bf16.mxu0 %v2387
      %2409 = vmatpush1.bf16.msra.mxu0 %v2386
      %2410 = vmatprep.subr.bf16.mxu0 %v2389
      %2411 = vmatpush1.bf16.msra.mxu0 %v2388
      %2412 = vmatprep.subr.bf16.mxu0 %v2391
      %2413 = vmatpush1.bf16.msra.mxu0 %v2390
      %2414 = vmatprep.subr.bf16.mxu0 0
      %2415 = vmatpush1.bf16.msra.mxu0 0
      %2416 = vmatprep.subr.bf16.mxu0 0
      %2417 = vmatpush1.bf16.msra.mxu0 0
      %2418 = vmatprep.subr.bf16.mxu0 0
      %2419 = vmatpush1.bf16.msra.mxu0 0
      %2420 = vmatprep.subr.bf16.mxu0 0
      %2421 = vmatpush1.bf16.msra.mxu0 0
      %2422 = vmatprep.subr.bf16.mxu0 0
      %2423 = vmatpush1.bf16.msra.mxu0 0
      %2424 = vmatprep.subr.bf16.mxu0 0
      %2425 = vmatpush1.bf16.msra.mxu0 0
      %2426 = vmatprep.subr.bf16.mxu0 0
      %2427 = vmatpush1.bf16.msra.mxu0 0
      %2428 = vmatprep.subr.bf16.mxu0 0
      %2429 = vmatpush1.bf16.msra.mxu0 0
      %2430 = vmatprep.subr.bf16.mxu0 0
      %2431 = vmatpush1.bf16.msra.mxu0 0
      %2432 = vmatprep.subr.bf16.mxu0 0
      %2433 = vmatpush1.bf16.msra.mxu0 0
      %2434 = vmatprep.subr.bf16.mxu0 0
      %2435 = vmatpush1.bf16.msra.mxu0 0
      %2436 = vmatprep.subr.bf16.mxu0 0
      %2437 = vmatpush1.bf16.msra.mxu0 0
      %2438 = vmatprep.mubr.bf16.mxu0 0
      %2439 = vmatmul.mubr.bf16.gmra.mrb[0].mxu0 %v2401
      %v2440 = vpop.f32.mrb[0].mxu0
      %v2441 = vadd.f32 0.0, %v2440
      %v2442 = vpop.f32.mrb[0].mxu0
      %v2443 = vadd.f32 0.0, %v2442
      %v2444 = vpop.f32.mrb[0].mxu0
      %v2445 = vadd.f32 0.0, %v2444
      %v2446 = vpop.f32.mrb[0].mxu0
      %v2447 = vadd.f32 0.0, %v2446
      %2448 = vmatprep.mubr.bf16.mxu0 0
      %2449 = vmatmul.mubr.bf16.gmra.mrb[0].mxu0 %v2404
      %v2450 = vpop.f32.mrb[0].mxu0
      %v2451 = vadd.f32 0.0, %v2450
      %v2452 = vpop.f32.mrb[0].mxu0
      %v2453 = vadd.f32 0.0, %v2452
      %v2454 = vpop.f32.mrb[0].mxu0
      %v2455 = vadd.f32 0.0, %v2454
      %v2456 = vpop.f32.mrb[0].mxu0
      %v2457 = vadd.f32 0.0, %v2456
      %2458 = vdwg.mxu0
      %v2467 = vunpack.c.l.b16 %v2338
      %v2468 = vunpack.c.h.b16 %v2338
      %v2469 = vunpack.c.l.b16 %v2339
      %v2470 = vunpack.c.h.b16 %v2339
      %v2471 = vunpack.c.l.b16 %v2340
      %v2472 = vunpack.c.h.b16 %v2340
      %v2473 = vunpack.c.l.b16 %v2341
      %v2474 = vunpack.c.h.b16 %v2341
      %v2475 = vunpack.c.l.b16 %v2342
      %v2476 = vunpack.c.h.b16 %v2342
      %v2477 = vunpack.c.l.b16 %v2343
      %v2478 = vunpack.c.h.b16 %v2343
      %v2479 = vunpack.c.l.b16 %v2344
      %v2480 = vunpack.c.h.b16 %v2344
      %v2481 = vunpack.c.l.b16 %v2345
      %v2482 = vunpack.c.h.b16 %v2345
      %v2483 = vpack.c.b16 %v2469, %v2467
      %v2484 = vpack.c.b16 %v2470, %v2468
      %v2485 = vpack.c.b16 %v2473, %v2471
      %v2486 = vpack.c.b16 %v2474, %v2472
      %v2487 = vpack.c.b16 %v2477, %v2475
      %v2488 = vpack.c.b16 %v2478, %v2476
      %v2489 = vpack.c.b16 %v2481, %v2479
      %v2490 = vpack.c.b16 %v2482, %v2480
      %v2500 = vsel %vm981, %v2336, 0
      %v2503 = vsel %vm981, %v2337, 0
      %2505 = vmatprep.subr.bf16.mxu0 %v2484
      %2506 = vmatpush1.bf16.msra.mxu0 %v2483
      %2507 = vmatprep.subr.bf16.mxu0 %v2486
      %2508 = vmatpush1.bf16.msra.mxu0 %v2485
      %2509 = vmatprep.subr.bf16.mxu0 %v2488
      %2510 = vmatpush1.bf16.msra.mxu0 %v2487
      %2511 = vmatprep.subr.bf16.mxu0 %v2490
      %2512 = vmatpush1.bf16.msra.mxu0 %v2489
      %2513 = vmatprep.subr.bf16.mxu0 0
      %2514 = vmatpush1.bf16.msra.mxu0 0
      %2515 = vmatprep.subr.bf16.mxu0 0
      %2516 = vmatpush1.bf16.msra.mxu0 0
      %2517 = vmatprep.subr.bf16.mxu0 0
      %2518 = vmatpush1.bf16.msra.mxu0 0
      %2519 = vmatprep.subr.bf16.mxu0 0
      %2520 = vmatpush1.bf16.msra.mxu0 0
      %2521 = vmatprep.subr.bf16.mxu0 0
      %2522 = vmatpush1.bf16.msra.mxu0 0
      %2523 = vmatprep.subr.bf16.mxu0 0
      %2524 = vmatpush1.bf16.msra.mxu0 0
      %2525 = vmatprep.subr.bf16.mxu0 0
      %2526 = vmatpush1.bf16.msra.mxu0 0
      %2527 = vmatprep.subr.bf16.mxu0 0
      %2528 = vmatpush1.bf16.msra.mxu0 0
      %2529 = vmatprep.subr.bf16.mxu0 0
      %2530 = vmatpush1.bf16.msra.mxu0 0
      %2531 = vmatprep.subr.bf16.mxu0 0
      %2532 = vmatpush1.bf16.msra.mxu0 0
      %2533 = vmatprep.subr.bf16.mxu0 0
      %2534 = vmatpush1.bf16.msra.mxu0 0
      %2535 = vmatprep.subr.bf16.mxu0 0
      %2536 = vmatpush1.bf16.msra.mxu0 0
      %2537 = vmatprep.mubr.bf16.mxu0 0
      %2538 = vmatmul.mubr.bf16.gmra.mrb[0].mxu0 %v2500
      %v2539 = vpop.f32.mrb[0].mxu0
      %v2540 = vadd.f32 %v2441, %v2539
      %v2541 = vpop.f32.mrb[0].mxu0
      %v2542 = vadd.f32 %v2443, %v2541
      %v2543 = vpop.f32.mrb[0].mxu0
      %v2544 = vadd.f32 %v2445, %v2543
      %v2545 = vpop.f32.mrb[0].mxu0
      %v2546 = vadd.f32 %v2447, %v2545
      %2547 = vmatprep.mubr.bf16.mxu0 0
      %2548 = vmatmul.mubr.bf16.gmra.mrb[0].mxu0 %v2503
      %v2549 = vpop.f32.mrb[0].mxu0
      %v2550 = vadd.f32 %v2451, %v2549
      %v2551 = vpop.f32.mrb[0].mxu0
      %v2552 = vadd.f32 %v2453, %v2551
      %v2553 = vpop.f32.mrb[0].mxu0
      %v2554 = vadd.f32 %v2455, %v2553
      %v2555 = vpop.f32.mrb[0].mxu0
      %v2556 = vadd.f32 %v2457, %v2555
      %2557 = vdwg.mxu0
      %v2558 = vlaneseq
      %v2559 = vshrl.u32 %v2558, 7
      %v2560 = vsub.s32 0, %v2559
      %v2561 = vrot.slane %v1149, %v2560
      %v2562 = vlaneseq
      %v2563 = vshrl.u32 %v2562, 7
      %v2564 = vsub.s32 0, %v2563
      %v2565 = vrot.slane %v1150, %v2564
      %v2566 = vadd.f32 %v2540, %v2561
      %v2567 = vadd.f32 %v2542, %v2565
      %v2568 = vadd.f32 %v2544, %v2561
      %v2569 = vadd.f32 %v2546, %v2565
      %v2570 = vadd.f32 %v2550, %v2561
      %v2571 = vadd.f32 %v2552, %v2565
      %v2572 = vadd.f32 %v2554, %v2561
      %v2573 = vadd.f32 %v2556, %v2565
      %v2574 = vadd.f32 %v2566, %v2567
      %2575 = vadd.xlane.f32.xlu0 %v2574
      %v2576 = vpop.xlane.xlu0 %2575
      %v2577 = vadd.f32 %v2568, %v2569
      %2578 = vadd.xlane.f32.xlu0 %v2577
      %v2579 = vpop.xlane.xlu0 %2578
      %v2580 = vadd.f32 %v2570, %v2571
      %2581 = vadd.xlane.f32.xlu0 %v2580
      %v2582 = vpop.xlane.xlu0 %2581
      %v2583 = vadd.f32 %v2572, %v2573
      %2584 = vadd.xlane.f32.xlu0 %v2583
      %v2585 = vpop.xlane.xlu0 %2584
      %v2586 = vmul.f32 %v2576, %v318
      %v2587 = vmul.f32 %v2579, %v318
      %v2588 = vmul.f32 %v2582, %v318
      %v2589 = vmul.f32 %v2585, %v318
      %v2590 = vmul.f32 %v2566, %v2566
      %v2591 = vmul.f32 %v2567, %v2567
      %v2592 = vmul.f32 %v2568, %v2568
      %v2593 = vmul.f32 %v2569, %v2569
      %v2594 = vmul.f32 %v2570, %v2570
      %v2595 = vmul.f32 %v2571, %v2571
      %v2596 = vmul.f32 %v2572, %v2572
      %v2597 = vmul.f32 %v2573, %v2573
      %v2598 = vadd.f32 %v2590, %v2591
      %2599 = vadd.xlane.f32.xlu0 %v2598
      %v2600 = vpop.xlane.xlu0 %2599
      %v2601 = vadd.f32 %v2592, %v2593
      %2602 = vadd.xlane.f32.xlu0 %v2601
      %v2603 = vpop.xlane.xlu0 %2602
      %v2604 = vadd.f32 %v2594, %v2595
      %2605 = vadd.xlane.f32.xlu0 %v2604
      %v2606 = vpop.xlane.xlu0 %2605
      %v2607 = vadd.f32 %v2596, %v2597
      %2608 = vadd.xlane.f32.xlu0 %v2607
      %v2609 = vpop.xlane.xlu0 %2608
      %v2610 = vmul.f32 %v2600, %v318
      %v2611 = vmul.f32 %v2603, %v318
      %v2612 = vmul.f32 %v2606, %v318
      %v2613 = vmul.f32 %v2609, %v318
      %v2614 = vmul.f32 %v2586, %v2586
      %v2615 = vmul.f32 %v2587, %v2587
      %v2616 = vmul.f32 %v2588, %v2588
      %v2617 = vmul.f32 %v2589, %v2589
      %v2618 = vsub.f32 %v2610, %v2614
      %v2619 = vsub.f32 %v2611, %v2615
      %v2620 = vsub.f32 %v2612, %v2616
      %v2621 = vsub.f32 %v2613, %v2617
      %v2622 = vmax.f32 %v2618, 0.0
      %v2623 = vmax.f32 %v2619, 0.0
      %v2624 = vmax.f32 %v2620, 0.0
      %v2625 = vmax.f32 %v2621, 0.0
      %v2626 = vsub.f32 %v2566, %v2586
      %v2627 = vsub.f32 %v2567, %v2586
      %v2628 = vsub.f32 %v2568, %v2587
      %v2629 = vsub.f32 %v2569, %v2587
      %v2630 = vsub.f32 %v2570, %v2588
      %v2631 = vsub.f32 %v2571, %v2588
      %v2632 = vsub.f32 %v2572, %v2589
      %v2633 = vsub.f32 %v2573, %v2589
      %v2634 = vadd.f32 %v2622, 1e-05
      %v2635 = vadd.f32 %v2623, 1e-05
      %v2636 = vadd.f32 %v2624, 1e-05
      %v2637 = vadd.f32 %v2625, 1e-05
      %v2638 = vrsqrt.pop %v2634
      %v2639 = vrsqrt.pop %v2635
      %v2640 = vrsqrt.pop %v2636
      %v2641 = vrsqrt.pop %v2637
      %v2642 = vmul.f32 %v2626, %v2638
      %v2643 = vmul.f32 %v2627, %v2638
      %v2644 = vmul.f32 %v2628, %v2639
      %v2645 = vmul.f32 %v2629, %v2639
      %v2646 = vmul.f32 %v2630, %v2640
      %v2647 = vmul.f32 %v2631, %v2640
      %v2648 = vmul.f32 %v2632, %v2641
      %v2649 = vmul.f32 %v2633, %v2641
      %v2650 = vlaneseq
      %v2651 = vshrl.u32 %v2650, 7
      %v2652 = vsub.s32 1, %v2651
      %v2653 = vrot.slane %v1149, %v2652
      %v2654 = vlaneseq
      %v2655 = vshrl.u32 %v2654, 7
      %v2656 = vsub.s32 1, %v2655
      %v2657 = vrot.slane %v1150, %v2656
      %v2658 = vmul.f32 %v2642, %v2653
      %v2659 = vmul.f32 %v2643, %v2657
      %v2660 = vmul.f32 %v2644, %v2653
      %v2661 = vmul.f32 %v2645, %v2657
      %v2662 = vmul.f32 %v2646, %v2653
      %v2663 = vmul.f32 %v2647, %v2657
      %v2664 = vmul.f32 %v2648, %v2653
      %v2665 = vmul.f32 %v2649, %v2657
      %v2666 = vlaneseq
      %v2667 = vshrl.u32 %v2666, 7
      %v2668 = vsub.s32 2, %v2667
      %v2669 = vrot.slane %v1149, %v2668
      %v2670 = vlaneseq
      %v2671 = vshrl.u32 %v2670, 7
      %v2672 = vsub.s32 2, %v2671
      %v2673 = vrot.slane %v1150, %v2672
      %v2674 = vadd.f32 %v2658, %v2669
      %v2675 = vadd.f32 %v2659, %v2673
      %v2676 = vadd.f32 %v2660, %v2669
      %v2677 = vadd.f32 %v2661, %v2673
      %v2678 = vadd.f32 %v2662, %v2669
      %v2679 = vadd.f32 %v2663, %v2673
      %v2680 = vadd.f32 %v2664, %v2669
      %v2681 = vadd.f32 %v2665, %v2673
      %v2682 = vmax.f32 %v2674, 0.0
      %v2683 = vmax.f32 %v2675, 0.0
      %v2684 = vmax.f32 %v2676, 0.0
      %v2685 = vmax.f32 %v2677, 0.0
      %v2686 = vmax.f32 %v2678, 0.0
      %v2687 = vmax.f32 %v2679, 0.0
      %v2688 = vmax.f32 %v2680, 0.0
      %v2689 = vmax.f32 %v2681, 0.0
      %v2690 = vpack.c.bf16 %v2684, %v2682
      %v2691 = vpack.c.bf16 %v2685, %v2683
      %v2692 = vpack.c.bf16 %v2688, %v2686
      %v2693 = vpack.c.bf16 %v2689, %v2687
      %v2694 = vld [vmem:[%s17] sm:$0xff]
      %v2695 = vld [vmem:[%s17 + $0x8] sm:$0xff]
      %v2696 = vld [vmem:[%s17 + $0x10] sm:$0xff]
      %v2697 = vld [vmem:[%s17 + $0x18] sm:$0xff]
      %v2698 = vld [vmem:[%s17 + $0x20] sm:$0xff]
      %v2699 = vld [vmem:[%s17 + $0x28] sm:$0xff]
      %v2700 = vld [vmem:[%s17 + $0x30] sm:$0xff]
      %v2701 = vld [vmem:[%s17 + $0x38] sm:$0xff]
      %v2702 = vld [vmem:[%s17 + $0x40] sm:$0xff]
      %v2703 = vld [vmem:[%s17 + $0x48] sm:$0xff]
      %v2704 = vld [vmem:[%s17 + $0x50] sm:$0xff]
      %v2705 = vld [vmem:[%s17 + $0x58] sm:$0xff]
      %v2706 = vld [vmem:[%s17 + $0x60] sm:$0xff]
      %v2707 = vld [vmem:[%s17 + $0x68] sm:$0xff]
      %v2708 = vld [vmem:[%s17 + $0x70] sm:$0xff]
      %v2709 = vld [vmem:[%s17 + $0x78] sm:$0xff]
      %v2710 = vld [vmem:[%s17 + $0x80] sm:$0xff]
      %v2711 = vld [vmem:[%s17 + $0x88] sm:$0xff]
      %v2712 = vld [vmem:[%s17 + $0x90] sm:$0xff]
      %v2713 = vld [vmem:[%s17 + $0x98] sm:$0xff]
      %v2714 = vld [vmem:[%s17 + $0xa0] sm:$0xff]
      %v2715 = vld [vmem:[%s17 + $0xa8] sm:$0xff]
      %v2716 = vld [vmem:[%s17 + $0xb0] sm:$0xff]
      %v2717 = vld [vmem:[%s17 + $0xb8] sm:$0xff]
      %v2718 = vld [vmem:[%s17 + $0xc0] sm:$0xff]
      %v2719 = vld [vmem:[%s17 + $0xc8] sm:$0xff]
      %v2720 = vld [vmem:[%s17 + $0xd0] sm:$0xff]
      %v2721 = vld [vmem:[%s17 + $0xd8] sm:$0xff]
      %v2722 = vld [vmem:[%s17 + $0xe0] sm:$0xff]
      %v2723 = vld [vmem:[%s17 + $0xe8] sm:$0xff]
      %v2724 = vld [vmem:[%s17 + $0xf0] sm:$0xff]
      %v2725 = vld [vmem:[%s17 + $0xf8] sm:$0xff]
      %v2726 = vlaneseq
      %v2727 = vshrl.u32 %v2726, 7
      %v2728 = vsub.s32 3, %v2727
      %v2729 = vrot.slane %v1149, %v2728
      %v2730 = vlaneseq
      %v2731 = vshrl.u32 %v2730, 7
      %v2732 = vsub.s32 3, %v2731
      %v2733 = vrot.slane %v1150, %v2732
      %v2766 = vunpack.c.l.b16 %v2694
      %v2767 = vunpack.c.h.b16 %v2694
      %v2768 = vunpack.c.l.b16 %v2695
      %v2769 = vunpack.c.h.b16 %v2695
      %v2770 = vunpack.c.l.b16 %v2696
      %v2771 = vunpack.c.h.b16 %v2696
      %v2772 = vunpack.c.l.b16 %v2697
      %v2773 = vunpack.c.h.b16 %v2697
      %v2774 = vunpack.c.l.b16 %v2698
      %v2775 = vunpack.c.h.b16 %v2698
      %v2776 = vunpack.c.l.b16 %v2699
      %v2777 = vunpack.c.h.b16 %v2699
      %v2778 = vunpack.c.l.b16 %v2700
      %v2779 = vunpack.c.h.b16 %v2700
      %v2780 = vunpack.c.l.b16 %v2701
      %v2781 = vunpack.c.h.b16 %v2701
      %v2782 = vunpack.c.l.b16 %v2702
      %v2783 = vunpack.c.h.b16 %v2702
      %v2784 = vunpack.c.l.b16 %v2703
      %v2785 = vunpack.c.h.b16 %v2703
      %v2786 = vunpack.c.l.b16 %v2704
      %v2787 = vunpack.c.h.b16 %v2704
      %v2788 = vunpack.c.l.b16 %v2705
      %v2789 = vunpack.c.h.b16 %v2705
      %v2790 = vunpack.c.l.b16 %v2706
      %v2791 = vunpack.c.h.b16 %v2706
      %v2792 = vunpack.c.l.b16 %v2707
      %v2793 = vunpack.c.h.b16 %v2707
      %v2794 = vunpack.c.l.b16 %v2708
      %v2795 = vunpack.c.h.b16 %v2708
      %v2796 = vunpack.c.l.b16 %v2709
      %v2797 = vunpack.c.h.b16 %v2709
      %v2798 = vunpack.c.l.b16 %v2710
      %v2799 = vunpack.c.h.b16 %v2710
      %v2800 = vunpack.c.l.b16 %v2711
      %v2801 = vunpack.c.h.b16 %v2711
      %v2802 = vunpack.c.l.b16 %v2712
      %v2803 = vunpack.c.h.b16 %v2712
      %v2804 = vunpack.c.l.b16 %v2713
      %v2805 = vunpack.c.h.b16 %v2713
      %v2806 = vunpack.c.l.b16 %v2714
      %v2807 = vunpack.c.h.b16 %v2714
      %v2808 = vunpack.c.l.b16 %v2715
      %v2809 = vunpack.c.h.b16 %v2715
      %v2810 = vunpack.c.l.b16 %v2716
      %v2811 = vunpack.c.h.b16 %v2716
      %v2812 = vunpack.c.l.b16 %v2717
      %v2813 = vunpack.c.h.b16 %v2717
      %v2814 = vunpack.c.l.b16 %v2718
      %v2815 = vunpack.c.h.b16 %v2718
      %v2816 = vunpack.c.l.b16 %v2719
      %v2817 = vunpack.c.h.b16 %v2719
      %v2818 = vunpack.c.l.b16 %v2720
      %v2819 = vunpack.c.h.b16 %v2720
      %v2820 = vunpack.c.l.b16 %v2721
      %v2821 = vunpack.c.h.b16 %v2721
      %v2822 = vunpack.c.l.b16 %v2722
      %v2823 = vunpack.c.h.b16 %v2722
      %v2824 = vunpack.c.l.b16 %v2723
      %v2825 = vunpack.c.h.b16 %v2723
      %v2826 = vunpack.c.l.b16 %v2724
      %v2827 = vunpack.c.h.b16 %v2724
      %v2828 = vunpack.c.l.b16 %v2725
      %v2829 = vunpack.c.h.b16 %v2725
      %v2830 = vpack.c.b16 %v2768, %v2766
      %v2831 = vpack.c.b16 %v2769, %v2767
      %v2832 = vpack.c.b16 %v2772, %v2770
      %v2833 = vpack.c.b16 %v2773, %v2771
      %v2834 = vpack.c.b16 %v2776, %v2774
      %v2835 = vpack.c.b16 %v2777, %v2775
      %v2836 = vpack.c.b16 %v2780, %v2778
      %v2837 = vpack.c.b16 %v2781, %v2779
      %v2838 = vpack.c.b16 %v2784, %v2782
      %v2839 = vpack.c.b16 %v2785, %v2783
      %v2840 = vpack.c.b16 %v2788, %v2786
      %v2841 = vpack.c.b16 %v2789, %v2787
      %v2842 = vpack.c.b16 %v2792, %v2790
      %v2843 = vpack.c.b16 %v2793, %v2791
      %v2844 = vpack.c.b16 %v2796, %v2794
      %v2845 = vpack.c.b16 %v2797, %v2795
      %v2846 = vpack.c.b16 %v2800, %v2798
      %v2847 = vpack.c.b16 %v2801, %v2799
      %v2848 = vpack.c.b16 %v2804, %v2802
      %v2849 = vpack.c.b16 %v2805, %v2803
      %v2850 = vpack.c.b16 %v2808, %v2806
      %v2851 = vpack.c.b16 %v2809, %v2807
      %v2852 = vpack.c.b16 %v2812, %v2810
      %v2853 = vpack.c.b16 %v2813, %v2811
      %v2854 = vpack.c.b16 %v2816, %v2814
      %v2855 = vpack.c.b16 %v2817, %v2815
      %v2856 = vpack.c.b16 %v2820, %v2818
      %v2857 = vpack.c.b16 %v2821, %v2819
      %v2858 = vpack.c.b16 %v2824, %v2822
      %v2859 = vpack.c.b16 %v2825, %v2823
      %v2860 = vpack.c.b16 %v2828, %v2826
      %v2861 = vpack.c.b16 %v2829, %v2827
      %2894 = vmatprep.subr.bf16.mxu0 %v2831
      %2895 = vmatpush1.bf16.msra.mxu0 %v2830
      %2896 = vmatprep.subr.bf16.mxu0 %v2833
      %2897 = vmatpush1.bf16.msra.mxu0 %v2832
      %2898 = vmatprep.subr.bf16.mxu0 %v2835
      %2899 = vmatpush1.bf16.msra.mxu0 %v2834
      %2900 = vmatprep.subr.bf16.mxu0 %v2837
      %2901 = vmatpush1.bf16.msra.mxu0 %v2836
      %2902 = vmatprep.subr.bf16.mxu0 %v2839
      %2903 = vmatpush1.bf16.msra.mxu0 %v2838
      %2904 = vmatprep.subr.bf16.mxu0 %v2841
      %2905 = vmatpush1.bf16.msra.mxu0 %v2840
      %2906 = vmatprep.subr.bf16.mxu0 %v2843
      %2907 = vmatpush1.bf16.msra.mxu0 %v2842
      %2908 = vmatprep.subr.bf16.mxu0 %v2845
      %2909 = vmatpush1.bf16.msra.mxu0 %v2844
      %2910 = vmatprep.subr.bf16.mxu0 %v2847
      %2911 = vmatpush1.bf16.msra.mxu0 %v2846
      %2912 = vmatprep.subr.bf16.mxu0 %v2849
      %2913 = vmatpush1.bf16.msra.mxu0 %v2848
      %2914 = vmatprep.subr.bf16.mxu0 %v2851
      %2915 = vmatpush1.bf16.msra.mxu0 %v2850
      %2916 = vmatprep.subr.bf16.mxu0 %v2853
      %2917 = vmatpush1.bf16.msra.mxu0 %v2852
      %2918 = vmatprep.subr.bf16.mxu0 %v2855
      %2919 = vmatpush1.bf16.msra.mxu0 %v2854
      %2920 = vmatprep.subr.bf16.mxu0 %v2857
      %2921 = vmatpush1.bf16.msra.mxu0 %v2856
      %2922 = vmatprep.subr.bf16.mxu0 %v2859
      %2923 = vmatpush1.bf16.msra.mxu0 %v2858
      %2924 = vmatprep.subr.bf16.mxu0 %v2861
      %2925 = vmatpush1.bf16.msra.mxu0 %v2860
      %2926 = vmatprep.mubr.bf16.mxu0 %v2691
      %2927 = vmatmul.mubr.bf16.gmra.mrb[0].mxu0 %v2690
      %v2928 = vpop.f32.mrb[0].mxu0
      %v2929 = vadd.f32 %v2729, %v2928
      %v2930 = vpop.f32.mrb[0].mxu0
      %v2931 = vadd.f32 %v2733, %v2930
      %v2932 = vpop.f32.mrb[0].mxu0
      %v2933 = vadd.f32 %v2729, %v2932
      %v2934 = vpop.f32.mrb[0].mxu0
      %v2935 = vadd.f32 %v2733, %v2934
      %2936 = vmatprep.mubr.bf16.mxu0 %v2693
      %2937 = vmatmul.mubr.bf16.gmra.mrb[0].mxu0 %v2692
      %v2938 = vpop.f32.mrb[0].mxu0
      %v2939 = vadd.f32 %v2729, %v2938
      %v2940 = vpop.f32.mrb[0].mxu0
      %v2941 = vadd.f32 %v2733, %v2940
      %v2942 = vpop.f32.mrb[0].mxu0
      %v2943 = vadd.f32 %v2729, %v2942
      %v2944 = vpop.f32.mrb[0].mxu0
      %v2945 = vadd.f32 %v2733, %v2944
      %2946 = vdwg.mxu0
      %v2947 = vadd.f32 %v2929, %v2931
      %2948 = vadd.xlane.f32.xlu0 %v2947
      %v2949 = vpop.xlane.xlu0 %2948
      %v2950 = vadd.f32 %v2933, %v2935
      %2951 = vadd.xlane.f32.xlu0 %v2950
      %v2952 = vpop.xlane.xlu0 %2951
      %v2953 = vadd.f32 %v2939, %v2941
      %2954 = vadd.xlane.f32.xlu0 %v2953
      %v2955 = vpop.xlane.xlu0 %2954
      %v2956 = vadd.f32 %v2943, %v2945
      %2957 = vadd.xlane.f32.xlu0 %v2956
      %v2958 = vpop.xlane.xlu0 %2957
      %v2959 = vmul.f32 %v2949, %v318
      %v2960 = vmul.f32 %v2952, %v318
      %v2961 = vmul.f32 %v2955, %v318
      %v2962 = vmul.f32 %v2958, %v318
      %v2963 = vmul.f32 %v2929, %v2929
      %v2964 = vmul.f32 %v2931, %v2931
      %v2965 = vmul.f32 %v2933, %v2933
      %v2966 = vmul.f32 %v2935, %v2935
      %v2967 = vmul.f32 %v2939, %v2939
      %v2968 = vmul.f32 %v2941, %v2941
      %v2969 = vmul.f32 %v2943, %v2943
      %v2970 = vmul.f32 %v2945, %v2945
      %v2971 = vadd.f32 %v2963, %v2964
      %2972 = vadd.xlane.f32.xlu0 %v2971
      %v2973 = vpop.xlane.xlu0 %2972
      %v2974 = vadd.f32 %v2965, %v2966
      %2975 = vadd.xlane.f32.xlu0 %v2974
      %v2976 = vpop.xlane.xlu0 %2975
      %v2977 = vadd.f32 %v2967, %v2968
      %2978 = vadd.xlane.f32.xlu0 %v2977
      %v2979 = vpop.xlane.xlu0 %2978
      %v2980 = vadd.f32 %v2969, %v2970
      %2981 = vadd.xlane.f32.xlu0 %v2980
      %v2982 = vpop.xlane.xlu0 %2981
      %v2983 = vmul.f32 %v2973, %v318
      %v2984 = vmul.f32 %v2976, %v318
      %v2985 = vmul.f32 %v2979, %v318
      %v2986 = vmul.f32 %v2982, %v318
      %v2987 = vmul.f32 %v2959, %v2959
      %v2988 = vmul.f32 %v2960, %v2960
      %v2989 = vmul.f32 %v2961, %v2961
      %v2990 = vmul.f32 %v2962, %v2962
      %v2991 = vsub.f32 %v2983, %v2987
      %v2992 = vsub.f32 %v2984, %v2988
      %v2993 = vsub.f32 %v2985, %v2989
      %v2994 = vsub.f32 %v2986, %v2990
      %v2995 = vmax.f32 %v2991, 0.0
      %v2996 = vmax.f32 %v2992, 0.0
      %v2997 = vmax.f32 %v2993, 0.0
      %v2998 = vmax.f32 %v2994, 0.0
      %v2999 = vsub.f32 %v2929, %v2959
      %v3000 = vsub.f32 %v2931, %v2959
      %v3001 = vsub.f32 %v2933, %v2960
      %v3002 = vsub.f32 %v2935, %v2960
      %v3003 = vsub.f32 %v2939, %v2961
      %v3004 = vsub.f32 %v2941, %v2961
      %v3005 = vsub.f32 %v2943, %v2962
      %v3006 = vsub.f32 %v2945, %v2962
      %v3007 = vadd.f32 %v2995, 1e-05
      %v3008 = vadd.f32 %v2996, 1e-05
      %v3009 = vadd.f32 %v2997, 1e-05
      %v3010 = vadd.f32 %v2998, 1e-05
      %v3011 = vrsqrt.pop %v3007
      %v3012 = vrsqrt.pop %v3008
      %v3013 = vrsqrt.pop %v3009
      %v3014 = vrsqrt.pop %v3010
      %v3015 = vmul.f32 %v2999, %v3011
      %v3016 = vmul.f32 %v3000, %v3011
      %v3017 = vmul.f32 %v3001, %v3012
      %v3018 = vmul.f32 %v3002, %v3012
      %v3019 = vmul.f32 %v3003, %v3013
      %v3020 = vmul.f32 %v3004, %v3013
      %v3021 = vmul.f32 %v3005, %v3014
      %v3022 = vmul.f32 %v3006, %v3014
      %v3023 = vlaneseq
      %v3024 = vshrl.u32 %v3023, 7
      %v3025 = vsub.s32 4, %v3024
      %v3026 = vrot.slane %v1149, %v3025
      %v3027 = vlaneseq
      %v3028 = vshrl.u32 %v3027, 7
      %v3029 = vsub.s32 4, %v3028
      %v3030 = vrot.slane %v1150, %v3029
      %v3031 = vmul.f32 %v3015, %v3026
      %v3032 = vmul.f32 %v3016, %v3030
      %v3033 = vmul.f32 %v3017, %v3026
      %v3034 = vmul.f32 %v3018, %v3030
      %v3035 = vmul.f32 %v3019, %v3026
      %v3036 = vmul.f32 %v3020, %v3030
      %v3037 = vmul.f32 %v3021, %v3026
      %v3038 = vmul.f32 %v3022, %v3030
      %v3039 = vlaneseq
      %v3040 = vshrl.u32 %v3039, 7
      %v3041 = vsub.s32 5, %v3040
      %v3042 = vrot.slane %v1149, %v3041
      %v3043 = vlaneseq
      %v3044 = vshrl.u32 %v3043, 7
      %v3045 = vsub.s32 5, %v3044
      %v3046 = vrot.slane %v1150, %v3045
      %v3047 = vadd.f32 %v3031, %v3042
      %v3048 = vadd.f32 %v3032, %v3046
      %v3049 = vadd.f32 %v3033, %v3042
      %v3050 = vadd.f32 %v3034, %v3046
      %v3051 = vadd.f32 %v3035, %v3042
      %v3052 = vadd.f32 %v3036, %v3046
      %v3053 = vadd.f32 %v3037, %v3042
      %v3054 = vadd.f32 %v3038, %v3046
      %v3055 = vmax.f32 %v3047, 0.0
      %v3056 = vmax.f32 %v3048, 0.0
      %v3057 = vmax.f32 %v3049, 0.0
      %v3058 = vmax.f32 %v3050, 0.0
      %v3059 = vmax.f32 %v3051, 0.0
      %v3060 = vmax.f32 %v3052, 0.0
      %v3061 = vmax.f32 %v3053, 0.0
      %v3062 = vmax.f32 %v3054, 0.0
      %v3063 = vpack.c.bf16 %v3057, %v3055
      %v3064 = vpack.c.bf16 %v3058, %v3056
      %v3065 = vpack.c.bf16 %v3061, %v3059
      %v3066 = vpack.c.bf16 %v3062, %v3060
      %v3067 = vld [vmem:[%s18] sm:$0xf]
      %v3068 = vld [vmem:[%s18 + $0x4] sm:$0xf]
      %v3069 = vld [vmem:[%s18 + $0x8] sm:$0xf]
      %v3070 = vld [vmem:[%s18 + $0xc] sm:$0xf]
      %v3071 = vld [vmem:[%s18 + $0x10] sm:$0xf]
      %v3072 = vld [vmem:[%s18 + $0x14] sm:$0xf]
      %v3073 = vld [vmem:[%s18 + $0x18] sm:$0xf]
      %v3074 = vld [vmem:[%s18 + $0x1c] sm:$0xf]
      %v3075 = vld [vmem:[%s18 + $0x20] sm:$0xf]
      %v3076 = vld [vmem:[%s18 + $0x24] sm:$0xf]
      %v3077 = vld [vmem:[%s18 + $0x28] sm:$0xf]
      %v3078 = vld [vmem:[%s18 + $0x2c] sm:$0xf]
      %v3079 = vld [vmem:[%s18 + $0x30] sm:$0xf]
      %v3080 = vld [vmem:[%s18 + $0x34] sm:$0xf]
      %v3081 = vld [vmem:[%s18 + $0x38] sm:$0xf]
      %v3082 = vld [vmem:[%s18 + $0x3c] sm:$0xf]
      %v3083 = vld [vmem:[%s18 + $0x40] sm:$0xf]
      %v3084 = vld [vmem:[%s18 + $0x44] sm:$0xf]
      %v3085 = vld [vmem:[%s18 + $0x48] sm:$0xf]
      %v3086 = vld [vmem:[%s18 + $0x4c] sm:$0xf]
      %v3087 = vld [vmem:[%s18 + $0x50] sm:$0xf]
      %v3088 = vld [vmem:[%s18 + $0x54] sm:$0xf]
      %v3089 = vld [vmem:[%s18 + $0x58] sm:$0xf]
      %v3090 = vld [vmem:[%s18 + $0x5c] sm:$0xf]
      %v3091 = vld [vmem:[%s18 + $0x60] sm:$0xf]
      %v3092 = vld [vmem:[%s18 + $0x64] sm:$0xf]
      %v3093 = vld [vmem:[%s18 + $0x68] sm:$0xf]
      %v3094 = vld [vmem:[%s18 + $0x6c] sm:$0xf]
      %v3095 = vld [vmem:[%s18 + $0x70] sm:$0xf]
      %v3096 = vld [vmem:[%s18 + $0x74] sm:$0xf]
      %v3097 = vld [vmem:[%s18 + $0x78] sm:$0xf]
      %v3098 = vld [vmem:[%s18 + $0x7c] sm:$0xf]
      %v3099 = vlaneseq
      %v3100 = vshrl.u32 %v3099, 7
      %v3101 = vsub.s32 6, %v3100
      %v3102 = vrot.slane %v1149, %v3101
      %v3135 = vunpack.c.l.b16 %v3067
      %v3136 = vunpack.c.l.b16 %v3068
      %v3137 = vunpack.c.l.b16 %v3069
      %v3138 = vunpack.c.l.b16 %v3070
      %v3139 = vunpack.c.l.b16 %v3071
      %v3140 = vunpack.c.l.b16 %v3072
      %v3141 = vunpack.c.l.b16 %v3073
      %v3142 = vunpack.c.l.b16 %v3074
      %v3143 = vunpack.c.l.b16 %v3075
      %v3144 = vunpack.c.l.b16 %v3076
      %v3145 = vunpack.c.l.b16 %v3077
      %v3146 = vunpack.c.l.b16 %v3078
      %v3147 = vunpack.c.l.b16 %v3079
      %v3148 = vunpack.c.l.b16 %v3080
      %v3149 = vunpack.c.l.b16 %v3081
      %v3150 = vunpack.c.l.b16 %v3082
      %v3151 = vunpack.c.l.b16 %v3083
      %v3152 = vunpack.c.l.b16 %v3084
      %v3153 = vunpack.c.l.b16 %v3085
      %v3154 = vunpack.c.l.b16 %v3086
      %v3155 = vunpack.c.l.b16 %v3087
      %v3156 = vunpack.c.l.b16 %v3088
      %v3157 = vunpack.c.l.b16 %v3089
      %v3158 = vunpack.c.l.b16 %v3090
      %v3159 = vunpack.c.l.b16 %v3091
      %v3160 = vunpack.c.l.b16 %v3092
      %v3161 = vunpack.c.l.b16 %v3093
      %v3162 = vunpack.c.l.b16 %v3094
      %v3163 = vunpack.c.l.b16 %v3095
      %v3164 = vunpack.c.l.b16 %v3096
      %v3165 = vunpack.c.l.b16 %v3097
      %v3166 = vunpack.c.l.b16 %v3098
      %v3167 = vpack.c.b16 %v3136, %v3135
      %v3168 = vpack.c.b16 %v3138, %v3137
      %v3169 = vpack.c.b16 %v3140, %v3139
      %v3170 = vpack.c.b16 %v3142, %v3141
      %v3171 = vpack.c.b16 %v3144, %v3143
      %v3172 = vpack.c.b16 %v3146, %v3145
      %v3173 = vpack.c.b16 %v3148, %v3147
      %v3174 = vpack.c.b16 %v3150, %v3149
      %v3175 = vpack.c.b16 %v3152, %v3151
      %v3176 = vpack.c.b16 %v3154, %v3153
      %v3177 = vpack.c.b16 %v3156, %v3155
      %v3178 = vpack.c.b16 %v3158, %v3157
      %v3179 = vpack.c.b16 %v3160, %v3159
      %v3180 = vpack.c.b16 %v3162, %v3161
      %v3181 = vpack.c.b16 %v3164, %v3163
      %v3182 = vpack.c.b16 %v3166, %v3165
      %3199 = vmatprep.subr.bf16.mxu0 0
      %3200 = vmatpush1.bf16.msra.mxu0 %v3167
      %3201 = vmatprep.subr.bf16.mxu0 0
      %3202 = vmatpush1.bf16.msra.mxu0 %v3168
      %3203 = vmatprep.subr.bf16.mxu0 0
      %3204 = vmatpush1.bf16.msra.mxu0 %v3169
      %3205 = vmatprep.subr.bf16.mxu0 0
      %3206 = vmatpush1.bf16.msra.mxu0 %v3170
      %3207 = vmatprep.subr.bf16.mxu0 0
      %3208 = vmatpush1.bf16.msra.mxu0 %v3171
      %3209 = vmatprep.subr.bf16.mxu0 0
      %3210 = vmatpush1.bf16.msra.mxu0 %v3172
      %3211 = vmatprep.subr.bf16.mxu0 0
      %3212 = vmatpush1.bf16.msra.mxu0 %v3173
      %3213 = vmatprep.subr.bf16.mxu0 0
      %3214 = vmatpush1.bf16.msra.mxu0 %v3174
      %3215 = vmatprep.subr.bf16.mxu0 0
      %3216 = vmatpush1.bf16.msra.mxu0 %v3175
      %3217 = vmatprep.subr.bf16.mxu0 0
      %3218 = vmatpush1.bf16.msra.mxu0 %v3176
      %3219 = vmatprep.subr.bf16.mxu0 0
      %3220 = vmatpush1.bf16.msra.mxu0 %v3177
      %3221 = vmatprep.subr.bf16.mxu0 0
      %3222 = vmatpush1.bf16.msra.mxu0 %v3178
      %3223 = vmatprep.subr.bf16.mxu0 0
      %3224 = vmatpush1.bf16.msra.mxu0 %v3179
      %3225 = vmatprep.subr.bf16.mxu0 0
      %3226 = vmatpush1.bf16.msra.mxu0 %v3180
      %3227 = vmatprep.subr.bf16.mxu0 0
      %3228 = vmatpush1.bf16.msra.mxu0 %v3181
      %3229 = vmatprep.subr.bf16.mxu0 0
      %3230 = vmatpush1.bf16.msra.mxu0 %v3182
      %3231 = vmatprep.mubr.bf16.mxu0 %v3064
      %3232 = vmatmul.mubr.bf16.gmra.mrb[0].mxu0 %v3063
      %v3233 = vpop.f32.mrb[0].mxu0
      %v3234 = vadd.f32 %v3102, %v3233
      %v3235 = vpop.f32.mrb[0].mxu0
      %v3236 = vpop.f32.mrb[0].mxu0
      %v3237 = vadd.f32 %v3102, %v3236
      %v3238 = vpop.f32.mrb[0].mxu0
      %3239 = vmatprep.mubr.bf16.mxu0 %v3066
      %3240 = vmatmul.mubr.bf16.gmra.mrb[0].mxu0 %v3065
      %v3241 = vpop.f32.mrb[0].mxu0
      %v3242 = vadd.f32 %v3102, %v3241
      %v3243 = vpop.f32.mrb[0].mxu0
      %v3244 = vpop.f32.mrb[0].mxu0
      %v3245 = vadd.f32 %v3102, %v3244
      %v3246 = vpop.f32.mrb[0].mxu0
      %3247 = vdwg.mxu0
      %3248 = vst.msk [vmem:[#allocation2] sm:$0xff] %vm981, %v3234
      %3249 = vst.msk [vmem:[#allocation2 + $0x8] sm:$0xff] %vm981, %v3237
      %3250 = vst.msk [vmem:[#allocation2 + $0x10] sm:$0xff] %vm981, %v3242
      %3251 = vst.msk [vmem:[#allocation2 + $0x18] sm:$0xff] %vm981, %v3245
    $region126: #{gnn_forward.1} parent=1 // loop_footer
      %s1156 = sadd.s32 1, %s1152
    $region127: #{gnn_forward.1} parent=1 // loop_footer_branch
      %1151 = sbr.rel target = $region123
    $region128: #{gnn_forward.1} parent=1 // loop_exit
      _
    %v3252 = vld [vmem:[#allocation2] sm:$0xff]
    %v3253 = vld [vmem:[#allocation2 + $0x8] sm:$0xff]
    %v3254 = vld [vmem:[#allocation2 + $0x10] sm:$0xff]
    %v3255 = vld [vmem:[#allocation2 + $0x18] sm:$0xff]
    %v3256 = vpack.c.bf16 %v3253, %v3252
    %v3257 = vpack.c.bf16 %v3255, %v3254
    %v3258 = vld [vmem:[#allocation21] sm:$0xff]
    %v3259 = vld [vmem:[#allocation21 + $0x8] sm:$0xff]
    %v3260 = vld [vmem:[#allocation21 + $0x10] sm:$0xff]
    %v3261 = vld [vmem:[#allocation21 + $0x18] sm:$0xff]
    %v3262 = vld [vmem:[#allocation21 + $0x20] sm:$0xff]
    %v3263 = vld [vmem:[#allocation21 + $0x28] sm:$0xff]
    %v3264 = vld [vmem:[#allocation21 + $0x30] sm:$0xff]
    %v3265 = vld [vmem:[#allocation21 + $0x38] sm:$0xff]
    %v3266 = vld [vmem:[#allocation23] sm:$0xff]
    %v3267 = vld [vmem:[#allocation23 + $0x8] sm:$0xff]
    %v3268 = vlaneseq
    %v3269 = vshrl.u32 %v3268, 7
    %v3270 = vsub.s32 0, %v3269
    %v3271 = vrot.slane %v3266, %v3270
    %v3272 = vlaneseq
    %v3273 = vshrl.u32 %v3272, 7
    %v3274 = vsub.s32 0, %v3273
    %v3275 = vrot.slane %v3267, %v3274
    %v3284 = vunpack.c.l.b16 %v3258
    %v3285 = vunpack.c.h.b16 %v3258
    %v3286 = vunpack.c.l.b16 %v3259
    %v3287 = vunpack.c.h.b16 %v3259
    %v3288 = vunpack.c.l.b16 %v3260
    %v3289 = vunpack.c.h.b16 %v3260
    %v3290 = vunpack.c.l.b16 %v3261
    %v3291 = vunpack.c.h.b16 %v3261
    %v3292 = vunpack.c.l.b16 %v3262
    %v3293 = vunpack.c.h.b16 %v3262
    %v3294 = vunpack.c.l.b16 %v3263
    %v3295 = vunpack.c.h.b16 %v3263
    %v3296 = vunpack.c.l.b16 %v3264
    %v3297 = vunpack.c.h.b16 %v3264
    %v3298 = vunpack.c.l.b16 %v3265
    %v3299 = vunpack.c.h.b16 %v3265
    %v3300 = vpack.c.b16 %v3286, %v3284
    %v3301 = vpack.c.b16 %v3287, %v3285
    %v3302 = vpack.c.b16 %v3290, %v3288
    %v3303 = vpack.c.b16 %v3291, %v3289
    %v3304 = vpack.c.b16 %v3294, %v3292
    %v3305 = vpack.c.b16 %v3295, %v3293
    %v3306 = vpack.c.b16 %v3298, %v3296
    %v3307 = vpack.c.b16 %v3299, %v3297
    %v3317 = vsel %vm981, %v3256, 0
    %v3320 = vsel %vm981, %v3257, 0
    %3322 = vmatprep.subr.bf16.mxu0 %v3301
    %3323 = vmatpush1.bf16.msra.mxu0 %v3300
    %3324 = vmatprep.subr.bf16.mxu0 %v3303
    %3325 = vmatpush1.bf16.msra.mxu0 %v3302
    %3326 = vmatprep.subr.bf16.mxu0 %v3305
    %3327 = vmatpush1.bf16.msra.mxu0 %v3304
    %3328 = vmatprep.subr.bf16.mxu0 %v3307
    %3329 = vmatpush1.bf16.msra.mxu0 %v3306
    %3330 = vmatprep.subr.bf16.mxu0 0
    %3331 = vmatpush1.bf16.msra.mxu0 0
    %3332 = vmatprep.subr.bf16.mxu0 0
    %3333 = vmatpush1.bf16.msra.mxu0 0
    %3334 = vmatprep.subr.bf16.mxu0 0
    %3335 = vmatpush1.bf16.msra.mxu0 0
    %3336 = vmatprep.subr.bf16.mxu0 0
    %3337 = vmatpush1.bf16.msra.mxu0 0
    %3338 = vmatprep.subr.bf16.mxu0 0
    %3339 = vmatpush1.bf16.msra.mxu0 0
    %3340 = vmatprep.subr.bf16.mxu0 0
    %3341 = vmatpush1.bf16.msra.mxu0 0
    %3342 = vmatprep.subr.bf16.mxu0 0
    %3343 = vmatpush1.bf16.msra.mxu0 0
    %3344 = vmatprep.subr.bf16.mxu0 0
    %3345 = vmatpush1.bf16.msra.mxu0 0
    %3346 = vmatprep.subr.bf16.mxu0 0
    %3347 = vmatpush1.bf16.msra.mxu0 0
    %3348 = vmatprep.subr.bf16.mxu0 0
    %3349 = vmatpush1.bf16.msra.mxu0 0
    %3350 = vmatprep.subr.bf16.mxu0 0
    %3351 = vmatpush1.bf16.msra.mxu0 0
    %3352 = vmatprep.subr.bf16.mxu0 0
    %3353 = vmatpush1.bf16.msra.mxu0 0
    %3354 = vmatprep.mubr.bf16.mxu0 0
    %3355 = vmatmul.mubr.bf16.gmra.mrb[0].mxu0 %v3317
    %v3356 = vpop.f32.mrb[0].mxu0
    %v3357 = vadd.f32 %v3271, %v3356
    %v3358 = vpop.f32.mrb[0].mxu0
    %v3359 = vadd.f32 %v3275, %v3358
    %v3360 = vpop.f32.mrb[0].mxu0
    %v3361 = vadd.f32 %v3271, %v3360
    %v3362 = vpop.f32.mrb[0].mxu0
    %v3363 = vadd.f32 %v3275, %v3362
    %3364 = vmatprep.mubr.bf16.mxu0 0
    %3365 = vmatmul.mubr.bf16.gmra.mrb[0].mxu0 %v3320
    %v3366 = vpop.f32.mrb[0].mxu0
    %v3367 = vadd.f32 %v3271, %v3366
    %v3368 = vpop.f32.mrb[0].mxu0
    %v3369 = vadd.f32 %v3275, %v3368
    %v3370 = vpop.f32.mrb[0].mxu0
    %v3371 = vadd.f32 %v3271, %v3370
    %v3372 = vpop.f32.mrb[0].mxu0
    %v3373 = vadd.f32 %v3275, %v3372
    %3374 = vdwg.mxu0
    %v3375 = vadd.f32 %v3357, %v3359
    %3376 = vadd.xlane.f32.xlu0 %v3375
    %v3377 = vpop.xlane.xlu0 %3376
    %v3378 = vadd.f32 %v3361, %v3363
    %3379 = vadd.xlane.f32.xlu0 %v3378
    %v3380 = vpop.xlane.xlu0 %3379
    %v3381 = vadd.f32 %v3367, %v3369
    %3382 = vadd.xlane.f32.xlu0 %v3381
    %v3383 = vpop.xlane.xlu0 %3382
    %v3384 = vadd.f32 %v3371, %v3373
    %3385 = vadd.xlane.f32.xlu0 %v3384
    %v3386 = vpop.xlane.xlu0 %3385
    %v3387 = vmul.f32 %v3377, %v318
    %v3388 = vmul.f32 %v3380, %v318
    %v3389 = vmul.f32 %v3383, %v318
    %v3390 = vmul.f32 %v3386, %v318
    %v3391 = vmul.f32 %v3357, %v3357
    %v3392 = vmul.f32 %v3359, %v3359
    %v3393 = vmul.f32 %v3361, %v3361
    %v3394 = vmul.f32 %v3363, %v3363
    %v3395 = vmul.f32 %v3367, %v3367
    %v3396 = vmul.f32 %v3369, %v3369
    %v3397 = vmul.f32 %v3371, %v3371
    %v3398 = vmul.f32 %v3373, %v3373
    %v3399 = vadd.f32 %v3391, %v3392
    %3400 = vadd.xlane.f32.xlu0 %v3399
    %v3401 = vpop.xlane.xlu0 %3400
    %v3402 = vadd.f32 %v3393, %v3394
    %3403 = vadd.xlane.f32.xlu0 %v3402
    %v3404 = vpop.xlane.xlu0 %3403
    %v3405 = vadd.f32 %v3395, %v3396
    %3406 = vadd.xlane.f32.xlu0 %v3405
    %v3407 = vpop.xlane.xlu0 %3406
    %v3408 = vadd.f32 %v3397, %v3398
    %3409 = vadd.xlane.f32.xlu0 %v3408
    %v3410 = vpop.xlane.xlu0 %3409
    %v3411 = vmul.f32 %v3401, %v318
    %v3412 = vmul.f32 %v3404, %v318
    %v3413 = vmul.f32 %v3407, %v318
    %v3414 = vmul.f32 %v3410, %v318
    %v3415 = vmul.f32 %v3387, %v3387
    %v3416 = vmul.f32 %v3388, %v3388
    %v3417 = vmul.f32 %v3389, %v3389
    %v3418 = vmul.f32 %v3390, %v3390
    %v3419 = vsub.f32 %v3411, %v3415
    %v3420 = vsub.f32 %v3412, %v3416
    %v3421 = vsub.f32 %v3413, %v3417
    %v3422 = vsub.f32 %v3414, %v3418
    %v3423 = vmax.f32 %v3419, 0.0
    %v3424 = vmax.f32 %v3420, 0.0
    %v3425 = vmax.f32 %v3421, 0.0
    %v3426 = vmax.f32 %v3422, 0.0
    %v3427 = vsub.f32 %v3357, %v3387
    %v3428 = vsub.f32 %v3359, %v3387
    %v3429 = vsub.f32 %v3361, %v3388
    %v3430 = vsub.f32 %v3363, %v3388
    %v3431 = vsub.f32 %v3367, %v3389
    %v3432 = vsub.f32 %v3369, %v3389
    %v3433 = vsub.f32 %v3371, %v3390
    %v3434 = vsub.f32 %v3373, %v3390
    %v3435 = vadd.f32 %v3423, 1e-05
    %v3436 = vadd.f32 %v3424, 1e-05
    %v3437 = vadd.f32 %v3425, 1e-05
    %v3438 = vadd.f32 %v3426, 1e-05
    %v3439 = vrsqrt.pop %v3435
    %v3440 = vrsqrt.pop %v3436
    %v3441 = vrsqrt.pop %v3437
    %v3442 = vrsqrt.pop %v3438
    %v3443 = vmul.f32 %v3427, %v3439
    %v3444 = vmul.f32 %v3428, %v3439
    %v3445 = vmul.f32 %v3429, %v3440
    %v3446 = vmul.f32 %v3430, %v3440
    %v3447 = vmul.f32 %v3431, %v3441
    %v3448 = vmul.f32 %v3432, %v3441
    %v3449 = vmul.f32 %v3433, %v3442
    %v3450 = vmul.f32 %v3434, %v3442
    %v3451 = vlaneseq
    %v3452 = vshrl.u32 %v3451, 7
    %v3453 = vsub.s32 1, %v3452
    %v3454 = vrot.slane %v3266, %v3453
    %v3455 = vlaneseq
    %v3456 = vshrl.u32 %v3455, 7
    %v3457 = vsub.s32 1, %v3456
    %v3458 = vrot.slane %v3267, %v3457
    %v3459 = vmul.f32 %v3443, %v3454
    %v3460 = vmul.f32 %v3444, %v3458
    %v3461 = vmul.f32 %v3445, %v3454
    %v3462 = vmul.f32 %v3446, %v3458
    %v3463 = vmul.f32 %v3447, %v3454
    %v3464 = vmul.f32 %v3448, %v3458
    %v3465 = vmul.f32 %v3449, %v3454
    %v3466 = vmul.f32 %v3450, %v3458
    %v3467 = vlaneseq
    %v3468 = vshrl.u32 %v3467, 7
    %v3469 = vsub.s32 2, %v3468
    %v3470 = vrot.slane %v3266, %v3469
    %v3471 = vlaneseq
    %v3472 = vshrl.u32 %v3471, 7
    %v3473 = vsub.s32 2, %v3472
    %v3474 = vrot.slane %v3267, %v3473
    %v3475 = vadd.f32 %v3459, %v3470
    %v3476 = vadd.f32 %v3460, %v3474
    %v3477 = vadd.f32 %v3461, %v3470
    %v3478 = vadd.f32 %v3462, %v3474
    %v3479 = vadd.f32 %v3463, %v3470
    %v3480 = vadd.f32 %v3464, %v3474
    %v3481 = vadd.f32 %v3465, %v3470
    %v3482 = vadd.f32 %v3466, %v3474
    %v3483 = vmax.f32 %v3475, 0.0
    %v3484 = vmax.f32 %v3476, 0.0
    %v3485 = vmax.f32 %v3477, 0.0
    %v3486 = vmax.f32 %v3478, 0.0
    %v3487 = vmax.f32 %v3479, 0.0
    %v3488 = vmax.f32 %v3480, 0.0
    %v3489 = vmax.f32 %v3481, 0.0
    %v3490 = vmax.f32 %v3482, 0.0
    %v3491 = vpack.c.bf16 %v3485, %v3483
    %v3492 = vpack.c.bf16 %v3486, %v3484
    %v3493 = vpack.c.bf16 %v3489, %v3487
    %v3494 = vpack.c.bf16 %v3490, %v3488
    %v3495 = vld [vmem:[%s21] sm:$0xff]
    %v3496 = vld [vmem:[%s21 + $0x8] sm:$0xff]
    %v3497 = vld [vmem:[%s21 + $0x10] sm:$0xff]
    %v3498 = vld [vmem:[%s21 + $0x18] sm:$0xff]
    %v3499 = vld [vmem:[%s21 + $0x20] sm:$0xff]
    %v3500 = vld [vmem:[%s21 + $0x28] sm:$0xff]
    %v3501 = vld [vmem:[%s21 + $0x30] sm:$0xff]
    %v3502 = vld [vmem:[%s21 + $0x38] sm:$0xff]
    %v3503 = vld [vmem:[%s21 + $0x40] sm:$0xff]
    %v3504 = vld [vmem:[%s21 + $0x48] sm:$0xff]
    %v3505 = vld [vmem:[%s21 + $0x50] sm:$0xff]
    %v3506 = vld [vmem:[%s21 + $0x58] sm:$0xff]
    %v3507 = vld [vmem:[%s21 + $0x60] sm:$0xff]
    %v3508 = vld [vmem:[%s21 + $0x68] sm:$0xff]
    %v3509 = vld [vmem:[%s21 + $0x70] sm:$0xff]
    %v3510 = vld [vmem:[%s21 + $0x78] sm:$0xff]
    %v3511 = vld [vmem:[%s21 + $0x80] sm:$0xff]
    %v3512 = vld [vmem:[%s21 + $0x88] sm:$0xff]
    %v3513 = vld [vmem:[%s21 + $0x90] sm:$0xff]
    %v3514 = vld [vmem:[%s21 + $0x98] sm:$0xff]
    %v3515 = vld [vmem:[%s21 + $0xa0] sm:$0xff]
    %v3516 = vld [vmem:[%s21 + $0xa8] sm:$0xff]
    %v3517 = vld [vmem:[%s21 + $0xb0] sm:$0xff]
    %v3518 = vld [vmem:[%s21 + $0xb8] sm:$0xff]
    %v3519 = vld [vmem:[%s21 + $0xc0] sm:$0xff]
    %v3520 = vld [vmem:[%s21 + $0xc8] sm:$0xff]
    %v3521 = vld [vmem:[%s21 + $0xd0] sm:$0xff]
    %v3522 = vld [vmem:[%s21 + $0xd8] sm:$0xff]
    %v3523 = vld [vmem:[%s21 + $0xe0] sm:$0xff]
    %v3524 = vld [vmem:[%s21 + $0xe8] sm:$0xff]
    %v3525 = vld [vmem:[%s21 + $0xf0] sm:$0xff]
    %v3526 = vld [vmem:[%s21 + $0xf8] sm:$0xff]
    %v3527 = vlaneseq
    %v3528 = vshrl.u32 %v3527, 7
    %v3529 = vsub.s32 3, %v3528
    %v3530 = vrot.slane %v3266, %v3529
    %v3531 = vlaneseq
    %v3532 = vshrl.u32 %v3531, 7
    %v3533 = vsub.s32 3, %v3532
    %v3534 = vrot.slane %v3267, %v3533
    %v3567 = vunpack.c.l.b16 %v3495
    %v3568 = vunpack.c.h.b16 %v3495
    %v3569 = vunpack.c.l.b16 %v3496
    %v3570 = vunpack.c.h.b16 %v3496
    %v3571 = vunpack.c.l.b16 %v3497
    %v3572 = vunpack.c.h.b16 %v3497
    %v3573 = vunpack.c.l.b16 %v3498
    %v3574 = vunpack.c.h.b16 %v3498
    %v3575 = vunpack.c.l.b16 %v3499
    %v3576 = vunpack.c.h.b16 %v3499
    %v3577 = vunpack.c.l.b16 %v3500
    %v3578 = vunpack.c.h.b16 %v3500
    %v3579 = vunpack.c.l.b16 %v3501
    %v3580 = vunpack.c.h.b16 %v3501
    %v3581 = vunpack.c.l.b16 %v3502
    %v3582 = vunpack.c.h.b16 %v3502
    %v3583 = vunpack.c.l.b16 %v3503
    %v3584 = vunpack.c.h.b16 %v3503
    %v3585 = vunpack.c.l.b16 %v3504
    %v3586 = vunpack.c.h.b16 %v3504
    %v3587 = vunpack.c.l.b16 %v3505
    %v3588 = vunpack.c.h.b16 %v3505
    %v3589 = vunpack.c.l.b16 %v3506
    %v3590 = vunpack.c.h.b16 %v3506
    %v3591 = vunpack.c.l.b16 %v3507
    %v3592 = vunpack.c.h.b16 %v3507
    %v3593 = vunpack.c.l.b16 %v3508
    %v3594 = vunpack.c.h.b16 %v3508
    %v3595 = vunpack.c.l.b16 %v3509
    %v3596 = vunpack.c.h.b16 %v3509
    %v3597 = vunpack.c.l.b16 %v3510
    %v3598 = vunpack.c.h.b16 %v3510
    %v3599 = vunpack.c.l.b16 %v3511
    %v3600 = vunpack.c.h.b16 %v3511
    %v3601 = vunpack.c.l.b16 %v3512
    %v3602 = vunpack.c.h.b16 %v3512
    %v3603 = vunpack.c.l.b16 %v3513
    %v3604 = vunpack.c.h.b16 %v3513
    %v3605 = vunpack.c.l.b16 %v3514
    %v3606 = vunpack.c.h.b16 %v3514
    %v3607 = vunpack.c.l.b16 %v3515
    %v3608 = vunpack.c.h.b16 %v3515
    %v3609 = vunpack.c.l.b16 %v3516
    %v3610 = vunpack.c.h.b16 %v3516
    %v3611 = vunpack.c.l.b16 %v3517
    %v3612 = vunpack.c.h.b16 %v3517
    %v3613 = vunpack.c.l.b16 %v3518
    %v3614 = vunpack.c.h.b16 %v3518
    %v3615 = vunpack.c.l.b16 %v3519
    %v3616 = vunpack.c.h.b16 %v3519
    %v3617 = vunpack.c.l.b16 %v3520
    %v3618 = vunpack.c.h.b16 %v3520
    %v3619 = vunpack.c.l.b16 %v3521
    %v3620 = vunpack.c.h.b16 %v3521
    %v3621 = vunpack.c.l.b16 %v3522
    %v3622 = vunpack.c.h.b16 %v3522
    %v3623 = vunpack.c.l.b16 %v3523
    %v3624 = vunpack.c.h.b16 %v3523
    %v3625 = vunpack.c.l.b16 %v3524
    %v3626 = vunpack.c.h.b16 %v3524
    %v3627 = vunpack.c.l.b16 %v3525
    %v3628 = vunpack.c.h.b16 %v3525
    %v3629 = vunpack.c.l.b16 %v3526
    %v3630 = vunpack.c.h.b16 %v3526
    %v3631 = vpack.c.b16 %v3569, %v3567
    %v3632 = vpack.c.b16 %v3570, %v3568
    %v3633 = vpack.c.b16 %v3573, %v3571
    %v3634 = vpack.c.b16 %v3574, %v3572
    %v3635 = vpack.c.b16 %v3577, %v3575
    %v3636 = vpack.c.b16 %v3578, %v3576
    %v3637 = vpack.c.b16 %v3581, %v3579
    %v3638 = vpack.c.b16 %v3582, %v3580
    %v3639 = vpack.c.b16 %v3585, %v3583
    %v3640 = vpack.c.b16 %v3586, %v3584
    %v3641 = vpack.c.b16 %v3589, %v3587
    %v3642 = vpack.c.b16 %v3590, %v3588
    %v3643 = vpack.c.b16 %v3593, %v3591
    %v3644 = vpack.c.b16 %v3594, %v3592
    %v3645 = vpack.c.b16 %v3597, %v3595
    %v3646 = vpack.c.b16 %v3598, %v3596
    %v3647 = vpack.c.b16 %v3601, %v3599
    %v3648 = vpack.c.b16 %v3602, %v3600
    %v3649 = vpack.c.b16 %v3605, %v3603
    %v3650 = vpack.c.b16 %v3606, %v3604
    %v3651 = vpack.c.b16 %v3609, %v3607
    %v3652 = vpack.c.b16 %v3610, %v3608
    %v3653 = vpack.c.b16 %v3613, %v3611
    %v3654 = vpack.c.b16 %v3614, %v3612
    %v3655 = vpack.c.b16 %v3617, %v3615
    %v3656 = vpack.c.b16 %v3618, %v3616
    %v3657 = vpack.c.b16 %v3621, %v3619
    %v3658 = vpack.c.b16 %v3622, %v3620
    %v3659 = vpack.c.b16 %v3625, %v3623
    %v3660 = vpack.c.b16 %v3626, %v3624
    %v3661 = vpack.c.b16 %v3629, %v3627
    %v3662 = vpack.c.b16 %v3630, %v3628
    %3695 = vmatprep.subr.bf16.mxu0 %v3632
    %3696 = vmatpush1.bf16.msra.mxu0 %v3631
    %3697 = vmatprep.subr.bf16.mxu0 %v3634
    %3698 = vmatpush1.bf16.msra.mxu0 %v3633
    %3699 = vmatprep.subr.bf16.mxu0 %v3636
    %3700 = vmatpush1.bf16.msra.mxu0 %v3635
    %3701 = vmatprep.subr.bf16.mxu0 %v3638
    %3702 = vmatpush1.bf16.msra.mxu0 %v3637
    %3703 = vmatprep.subr.bf16.mxu0 %v3640
    %3704 = vmatpush1.bf16.msra.mxu0 %v3639
    %3705 = vmatprep.subr.bf16.mxu0 %v3642
    %3706 = vmatpush1.bf16.msra.mxu0 %v3641
    %3707 = vmatprep.subr.bf16.mxu0 %v3644
    %3708 = vmatpush1.bf16.msra.mxu0 %v3643
    %3709 = vmatprep.subr.bf16.mxu0 %v3646
    %3710 = vmatpush1.bf16.msra.mxu0 %v3645
    %3711 = vmatprep.subr.bf16.mxu0 %v3648
    %3712 = vmatpush1.bf16.msra.mxu0 %v3647
    %3713 = vmatprep.subr.bf16.mxu0 %v3650
    %3714 = vmatpush1.bf16.msra.mxu0 %v3649
    %3715 = vmatprep.subr.bf16.mxu0 %v3652
    %3716 = vmatpush1.bf16.msra.mxu0 %v3651
    %3717 = vmatprep.subr.bf16.mxu0 %v3654
    %3718 = vmatpush1.bf16.msra.mxu0 %v3653
    %3719 = vmatprep.subr.bf16.mxu0 %v3656
    %3720 = vmatpush1.bf16.msra.mxu0 %v3655
    %3721 = vmatprep.subr.bf16.mxu0 %v3658
    %3722 = vmatpush1.bf16.msra.mxu0 %v3657
    %3723 = vmatprep.subr.bf16.mxu0 %v3660
    %3724 = vmatpush1.bf16.msra.mxu0 %v3659
    %3725 = vmatprep.subr.bf16.mxu0 %v3662
    %3726 = vmatpush1.bf16.msra.mxu0 %v3661
    %3727 = vmatprep.mubr.bf16.mxu0 %v3492
    %3728 = vmatmul.mubr.bf16.gmra.mrb[0].mxu0 %v3491
    %v3729 = vpop.f32.mrb[0].mxu0
    %v3730 = vadd.f32 %v3530, %v3729
    %v3731 = vpop.f32.mrb[0].mxu0
    %v3732 = vadd.f32 %v3534, %v3731
    %v3733 = vpop.f32.mrb[0].mxu0
    %v3734 = vadd.f32 %v3530, %v3733
    %v3735 = vpop.f32.mrb[0].mxu0
    %v3736 = vadd.f32 %v3534, %v3735
    %3737 = vmatprep.mubr.bf16.mxu0 %v3494
    %3738 = vmatmul.mubr.bf16.gmra.mrb[0].mxu0 %v3493
    %v3739 = vpop.f32.mrb[0].mxu0
    %v3740 = vadd.f32 %v3530, %v3739
    %v3741 = vpop.f32.mrb[0].mxu0
    %v3742 = vadd.f32 %v3534, %v3741
    %v3743 = vpop.f32.mrb[0].mxu0
    %v3744 = vadd.f32 %v3530, %v3743
    %v3745 = vpop.f32.mrb[0].mxu0
    %v3746 = vadd.f32 %v3534, %v3745
    %3747 = vdwg.mxu0
    %v3748 = vadd.f32 %v3730, %v3732
    %3749 = vadd.xlane.f32.xlu0 %v3748
    %v3750 = vpop.xlane.xlu0 %3749
    %v3751 = vadd.f32 %v3734, %v3736
    %3752 = vadd.xlane.f32.xlu0 %v3751
    %v3753 = vpop.xlane.xlu0 %3752
    %v3754 = vadd.f32 %v3740, %v3742
    %3755 = vadd.xlane.f32.xlu0 %v3754
    %v3756 = vpop.xlane.xlu0 %3755
    %v3757 = vadd.f32 %v3744, %v3746
    %3758 = vadd.xlane.f32.xlu0 %v3757
    %v3759 = vpop.xlane.xlu0 %3758
    %v3760 = vmul.f32 %v3750, %v318
    %v3761 = vmul.f32 %v3753, %v318
    %v3762 = vmul.f32 %v3756, %v318
    %v3763 = vmul.f32 %v3759, %v318
    %v3764 = vmul.f32 %v3730, %v3730
    %v3765 = vmul.f32 %v3732, %v3732
    %v3766 = vmul.f32 %v3734, %v3734
    %v3767 = vmul.f32 %v3736, %v3736
    %v3768 = vmul.f32 %v3740, %v3740
    %v3769 = vmul.f32 %v3742, %v3742
    %v3770 = vmul.f32 %v3744, %v3744
    %v3771 = vmul.f32 %v3746, %v3746
    %v3772 = vadd.f32 %v3764, %v3765
    %3773 = vadd.xlane.f32.xlu0 %v3772
    %v3774 = vpop.xlane.xlu0 %3773
    %v3775 = vadd.f32 %v3766, %v3767
    %3776 = vadd.xlane.f32.xlu0 %v3775
    %v3777 = vpop.xlane.xlu0 %3776
    %v3778 = vadd.f32 %v3768, %v3769
    %3779 = vadd.xlane.f32.xlu0 %v3778
    %v3780 = vpop.xlane.xlu0 %3779
    %v3781 = vadd.f32 %v3770, %v3771
    %3782 = vadd.xlane.f32.xlu0 %v3781
    %v3783 = vpop.xlane.xlu0 %3782
    %v3784 = vmul.f32 %v3774, %v318
    %v3785 = vmul.f32 %v3777, %v318
    %v3786 = vmul.f32 %v3780, %v318
    %v3787 = vmul.f32 %v3783, %v318
    %v3788 = vmul.f32 %v3760, %v3760
    %v3789 = vmul.f32 %v3761, %v3761
    %v3790 = vmul.f32 %v3762, %v3762
    %v3791 = vmul.f32 %v3763, %v3763
    %v3792 = vsub.f32 %v3784, %v3788
    %v3793 = vsub.f32 %v3785, %v3789
    %v3794 = vsub.f32 %v3786, %v3790
    %v3795 = vsub.f32 %v3787, %v3791
    %v3796 = vmax.f32 %v3792, 0.0
    %v3797 = vmax.f32 %v3793, 0.0
    %v3798 = vmax.f32 %v3794, 0.0
    %v3799 = vmax.f32 %v3795, 0.0
    %v3800 = vsub.f32 %v3730, %v3760
    %v3801 = vsub.f32 %v3732, %v3760
    %v3802 = vsub.f32 %v3734, %v3761
    %v3803 = vsub.f32 %v3736, %v3761
    %v3804 = vsub.f32 %v3740, %v3762
    %v3805 = vsub.f32 %v3742, %v3762
    %v3806 = vsub.f32 %v3744, %v3763
    %v3807 = vsub.f32 %v3746, %v3763
    %v3808 = vadd.f32 %v3796, 1e-05
    %v3809 = vadd.f32 %v3797, 1e-05
    %v3810 = vadd.f32 %v3798, 1e-05
    %v3811 = vadd.f32 %v3799, 1e-05
    %v3812 = vrsqrt.pop %v3808
    %v3813 = vrsqrt.pop %v3809
    %v3814 = vrsqrt.pop %v3810
    %v3815 = vrsqrt.pop %v3811
    %v3816 = vmul.f32 %v3800, %v3812
    %v3817 = vmul.f32 %v3801, %v3812
    %v3818 = vmul.f32 %v3802, %v3813
    %v3819 = vmul.f32 %v3803, %v3813
    %v3820 = vmul.f32 %v3804, %v3814
    %v3821 = vmul.f32 %v3805, %v3814
    %v3822 = vmul.f32 %v3806, %v3815
    %v3823 = vmul.f32 %v3807, %v3815
    %v3824 = vlaneseq
    %v3825 = vshrl.u32 %v3824, 7
    %v3826 = vsub.s32 4, %v3825
    %v3827 = vrot.slane %v3266, %v3826
    %v3828 = vlaneseq
    %v3829 = vshrl.u32 %v3828, 7
    %v3830 = vsub.s32 4, %v3829
    %v3831 = vrot.slane %v3267, %v3830
    %v3832 = vmul.f32 %v3816, %v3827
    %v3833 = vmul.f32 %v3817, %v3831
    %v3834 = vmul.f32 %v3818, %v3827
    %v3835 = vmul.f32 %v3819, %v3831
    %v3836 = vmul.f32 %v3820, %v3827
    %v3837 = vmul.f32 %v3821, %v3831
    %v3838 = vmul.f32 %v3822, %v3827
    %v3839 = vmul.f32 %v3823, %v3831
    %v3840 = vlaneseq
    %v3841 = vshrl.u32 %v3840, 7
    %v3842 = vsub.s32 5, %v3841
    %v3843 = vrot.slane %v3266, %v3842
    %v3844 = vlaneseq
    %v3845 = vshrl.u32 %v3844, 7
    %v3846 = vsub.s32 5, %v3845
    %v3847 = vrot.slane %v3267, %v3846
    %v3848 = vadd.f32 %v3832, %v3843
    %v3849 = vadd.f32 %v3833, %v3847
    %v3850 = vadd.f32 %v3834, %v3843
    %v3851 = vadd.f32 %v3835, %v3847
    %v3852 = vadd.f32 %v3836, %v3843
    %v3853 = vadd.f32 %v3837, %v3847
    %v3854 = vadd.f32 %v3838, %v3843
    %v3855 = vadd.f32 %v3839, %v3847
    %v3856 = vmax.f32 %v3848, 0.0
    %v3857 = vmax.f32 %v3849, 0.0
    %v3858 = vmax.f32 %v3850, 0.0
    %v3859 = vmax.f32 %v3851, 0.0
    %v3860 = vmax.f32 %v3852, 0.0
    %v3861 = vmax.f32 %v3853, 0.0
    %v3862 = vmax.f32 %v3854, 0.0
    %v3863 = vmax.f32 %v3855, 0.0
    %v3864 = vpack.c.bf16 %v3858, %v3856
    %v3865 = vpack.c.bf16 %v3859, %v3857
    %v3866 = vpack.c.bf16 %v3862, %v3860
    %v3867 = vpack.c.bf16 %v3863, %v3861
    %v3868 = vld [vmem:[%s22] sm:$0xf]
    %v3869 = vld [vmem:[%s22 + $0x4] sm:$0xf]
    %v3870 = vld [vmem:[%s22 + $0x8] sm:$0xf]
    %v3871 = vld [vmem:[%s22 + $0xc] sm:$0xf]
    %v3872 = vld [vmem:[%s22 + $0x10] sm:$0xf]
    %v3873 = vld [vmem:[%s22 + $0x14] sm:$0xf]
    %v3874 = vld [vmem:[%s22 + $0x18] sm:$0xf]
    %v3875 = vld [vmem:[%s22 + $0x1c] sm:$0xf]
    %v3876 = vld [vmem:[%s22 + $0x20] sm:$0xf]
    %v3877 = vld [vmem:[%s22 + $0x24] sm:$0xf]
    %v3878 = vld [vmem:[%s22 + $0x28] sm:$0xf]
    %v3879 = vld [vmem:[%s22 + $0x2c] sm:$0xf]
    %v3880 = vld [vmem:[%s22 + $0x30] sm:$0xf]
    %v3881 = vld [vmem:[%s22 + $0x34] sm:$0xf]
    %v3882 = vld [vmem:[%s22 + $0x38] sm:$0xf]
    %v3883 = vld [vmem:[%s22 + $0x3c] sm:$0xf]
    %v3884 = vld [vmem:[%s22 + $0x40] sm:$0xf]
    %v3885 = vld [vmem:[%s22 + $0x44] sm:$0xf]
    %v3886 = vld [vmem:[%s22 + $0x48] sm:$0xf]
    %v3887 = vld [vmem:[%s22 + $0x4c] sm:$0xf]
    %v3888 = vld [vmem:[%s22 + $0x50] sm:$0xf]
    %v3889 = vld [vmem:[%s22 + $0x54] sm:$0xf]
    %v3890 = vld [vmem:[%s22 + $0x58] sm:$0xf]
    %v3891 = vld [vmem:[%s22 + $0x5c] sm:$0xf]
    %v3892 = vld [vmem:[%s22 + $0x60] sm:$0xf]
    %v3893 = vld [vmem:[%s22 + $0x64] sm:$0xf]
    %v3894 = vld [vmem:[%s22 + $0x68] sm:$0xf]
    %v3895 = vld [vmem:[%s22 + $0x6c] sm:$0xf]
    %v3896 = vld [vmem:[%s22 + $0x70] sm:$0xf]
    %v3897 = vld [vmem:[%s22 + $0x74] sm:$0xf]
    %v3898 = vld [vmem:[%s22 + $0x78] sm:$0xf]
    %v3899 = vld [vmem:[%s22 + $0x7c] sm:$0xf]
    %v3900 = vlaneseq
    %v3901 = vshrl.u32 %v3900, 7
    %v3902 = vsub.s32 6, %v3901
    %v3903 = vrot.slane %v3266, %v3902
    %v3936 = vunpack.c.l.b16 %v3868
    %v3937 = vunpack.c.l.b16 %v3869
    %v3938 = vunpack.c.l.b16 %v3870
    %v3939 = vunpack.c.l.b16 %v3871
    %v3940 = vunpack.c.l.b16 %v3872
    %v3941 = vunpack.c.l.b16 %v3873
    %v3942 = vunpack.c.l.b16 %v3874
    %v3943 = vunpack.c.l.b16 %v3875
    %v3944 = vunpack.c.l.b16 %v3876
    %v3945 = vunpack.c.l.b16 %v3877
    %v3946 = vunpack.c.l.b16 %v3878
    %v3947 = vunpack.c.l.b16 %v3879
    %v3948 = vunpack.c.l.b16 %v3880
    %v3949 = vunpack.c.l.b16 %v3881
    %v3950 = vunpack.c.l.b16 %v3882
    %v3951 = vunpack.c.l.b16 %v3883
    %v3952 = vunpack.c.l.b16 %v3884
    %v3953 = vunpack.c.l.b16 %v3885
    %v3954 = vunpack.c.l.b16 %v3886
    %v3955 = vunpack.c.l.b16 %v3887
    %v3956 = vunpack.c.l.b16 %v3888
    %v3957 = vunpack.c.l.b16 %v3889
    %v3958 = vunpack.c.l.b16 %v3890
    %v3959 = vunpack.c.l.b16 %v3891
    %v3960 = vunpack.c.l.b16 %v3892
    %v3961 = vunpack.c.l.b16 %v3893
    %v3962 = vunpack.c.l.b16 %v3894
    %v3963 = vunpack.c.l.b16 %v3895
    %v3964 = vunpack.c.l.b16 %v3896
    %v3965 = vunpack.c.l.b16 %v3897
    %v3966 = vunpack.c.l.b16 %v3898
    %v3967 = vunpack.c.l.b16 %v3899
    %v3968 = vpack.c.b16 %v3937, %v3936
    %v3969 = vpack.c.b16 %v3939, %v3938
    %v3970 = vpack.c.b16 %v3941, %v3940
    %v3971 = vpack.c.b16 %v3943, %v3942
    %v3972 = vpack.c.b16 %v3945, %v3944
    %v3973 = vpack.c.b16 %v3947, %v3946
    %v3974 = vpack.c.b16 %v3949, %v3948
    %v3975 = vpack.c.b16 %v3951, %v3950
    %v3976 = vpack.c.b16 %v3953, %v3952
    %v3977 = vpack.c.b16 %v3955, %v3954
    %v3978 = vpack.c.b16 %v3957, %v3956
    %v3979 = vpack.c.b16 %v3959, %v3958
    %v3980 = vpack.c.b16 %v3961, %v3960
    %v3981 = vpack.c.b16 %v3963, %v3962
    %v3982 = vpack.c.b16 %v3965, %v3964
    %v3983 = vpack.c.b16 %v3967, %v3966
    %4000 = vmatprep.subr.bf16.mxu0 0
    %4001 = vmatpush1.bf16.msra.mxu0 %v3968
    %4002 = vmatprep.subr.bf16.mxu0 0
    %4003 = vmatpush1.bf16.msra.mxu0 %v3969
    %4004 = vmatprep.subr.bf16.mxu0 0
    %4005 = vmatpush1.bf16.msra.mxu0 %v3970
    %4006 = vmatprep.subr.bf16.mxu0 0
    %4007 = vmatpush1.bf16.msra.mxu0 %v3971
    %4008 = vmatprep.subr.bf16.mxu0 0
    %4009 = vmatpush1.bf16.msra.mxu0 %v3972
    %4010 = vmatprep.subr.bf16.mxu0 0
    %4011 = vmatpush1.bf16.msra.mxu0 %v3973
    %4012 = vmatprep.subr.bf16.mxu0 0
    %4013 = vmatpush1.bf16.msra.mxu0 %v3974
    %4014 = vmatprep.subr.bf16.mxu0 0
    %4015 = vmatpush1.bf16.msra.mxu0 %v3975
    %4016 = vmatprep.subr.bf16.mxu0 0
    %4017 = vmatpush1.bf16.msra.mxu0 %v3976
    %4018 = vmatprep.subr.bf16.mxu0 0
    %4019 = vmatpush1.bf16.msra.mxu0 %v3977
    %4020 = vmatprep.subr.bf16.mxu0 0
    %4021 = vmatpush1.bf16.msra.mxu0 %v3978
    %4022 = vmatprep.subr.bf16.mxu0 0
    %4023 = vmatpush1.bf16.msra.mxu0 %v3979
    %4024 = vmatprep.subr.bf16.mxu0 0
    %4025 = vmatpush1.bf16.msra.mxu0 %v3980
    %4026 = vmatprep.subr.bf16.mxu0 0
    %4027 = vmatpush1.bf16.msra.mxu0 %v3981
    %4028 = vmatprep.subr.bf16.mxu0 0
    %4029 = vmatpush1.bf16.msra.mxu0 %v3982
    %4030 = vmatprep.subr.bf16.mxu0 0
    %4031 = vmatpush1.bf16.msra.mxu0 %v3983
    %4032 = vmatprep.mubr.bf16.mxu0 %v3865
    %4033 = vmatmul.mubr.bf16.gmra.mrb[0].mxu0 %v3864
    %v4034 = vpop.f32.mrb[0].mxu0
    %v4035 = vadd.f32 %v3903, %v4034
    %v4036 = vpop.f32.mrb[0].mxu0
    %v4037 = vpop.f32.mrb[0].mxu0
    %v4038 = vadd.f32 %v3903, %v4037
    %v4039 = vpop.f32.mrb[0].mxu0
    %4040 = vmatprep.mubr.bf16.mxu0 %v3867
    %4041 = vmatmul.mubr.bf16.gmra.mrb[0].mxu0 %v3866
    %v4042 = vpop.f32.mrb[0].mxu0
    %v4043 = vadd.f32 %v3903, %v4042
    %v4044 = vpop.f32.mrb[0].mxu0
    %v4045 = vpop.f32.mrb[0].mxu0
    %v4046 = vadd.f32 %v3903, %v4045
    %v4047 = vpop.f32.mrb[0].mxu0
    %4048 = vdwg.mxu0
    %v4049 = vtanh.pop %v4035
    %v4050 = vtanh.pop %v4038
    %v4051 = vtanh.pop %v4043
    %v4052 = vtanh.pop %v4046
    %vm4053 = vcmask 7168
    %4054 = vst.msk [vmem:[%s23] sm:$0xff] %vm4053, %v4049
    %4055 = vst.msk [vmem:[%s23 + $0x8] sm:$0xff] %vm4053, %v4050
    %4056 = vst.msk [vmem:[%s23 + $0x10] sm:$0xff] %vm4053, %v4051
    %4057 = vst.msk [vmem:[%s23 + $0x18] sm:$0xff] %vm4053, %v4052
    // Predicated region
    $region143: #{gnn_forward.1} parent=1 // pred_check
      _
    $region144: #{gnn_forward.1} parent=1 // pred_check_branch
      %4059 = sbr.rel (0) target = $region146
    $region145: #{gnn_forward.1} parent=1 // pred_region
      _
    $region146: #{gnn_forward.1} parent=1 // pred_fallthru
      _
    // Predicated region
    $region147: #{gnn_forward.1} parent=1 // pred_check
      _
    $region148: #{gnn_forward.1} parent=1 // pred_check_branch
      %4061 = sbr.rel (0) target = $region150
    $region149: #{gnn_forward.1} parent=1 // pred_region
      _
    $region150: #{gnn_forward.1} parent=1 // pred_fallthru
      _
    %4062 = vsyncpa [#allocation11], 1
    %4063 = vsyncpa [#allocation13], 1
    %4064 = vsyncpa [#allocation16], 1
    %4065 = vsyncpa [#allocation19], 1
    %4066 = vsyncpa [#allocation22], 1

</llo_original>
